<compile_context>
chip_gen: v7x
topology: tpu7x:2x2x1
jax: 0.10.0
libtpu: 0.0.40
codegen_flags: <defaults>
</compile_context>

<pallas_src>
import jax
import jax.numpy as jnp
from jax.experimental import pallas as pl
from jax.experimental.pallas import tpu as pltpu

IN_CHANNELS = 3
HIDDEN_CHANNELS = 64
HIDDEN_DIM = 256
FEATURE_DIM = 128
BN_EPS = 1e-5
NORM_EPS = 1e-12


# ----------------------------- kernel helpers ------------------------------

def _bn_per_view(y, gamma, beta):
    # BatchNorm1d training-mode forward with PER-VIEW batch statistics.
    # y: (2N, D) = two stacked encoder/predictor calls of N rows each; the
    # reference calls the module once per view, so stats are over each view's
    # N rows only (biased variance, like nn.BatchNorm1d).
    two_n, d = y.shape
    v = y.reshape(2, two_n // 2, d)
    mean = jnp.mean(v, axis=1, keepdims=True)
    var = jnp.mean((v - mean) ** 2, axis=1, keepdims=True)
    out = (v - mean) * jax.lax.rsqrt(var + BN_EPS) * gamma[None] + beta[None]
    return out.reshape(two_n, d)


def _argmin_onehot(dist):
    # Row-wise argmin of (N, N) dist as a one-hot f32 matrix.  Smallest-index
    # tie-break; the reference's torch.randint tie-break is a no-op for k = 1.
    n = dist.shape[1]
    mind = jnp.min(dist, axis=-1, keepdims=True)
    col = jax.lax.broadcasted_iota(jnp.int32, dist.shape, 1)
    cand = jnp.where(dist <= mind, col, jnp.int32(n))
    idx = jnp.min(cand, axis=-1, keepdims=True)           # (N, 1)
    return (col == idx).astype(jnp.float32)               # (N, N)


# ------------------------------ fused kernel --------------------------------

def _fused_pair_kernel(x_ref,
                       w_in_t_ref, b_in_ref, w_hid_ref, b_hid_ref,
                       fc1_w_ref, fc1_b_ref, fc1_g_ref, fc1_bt_ref,
                       fc2_w_ref, fc2_b_ref, fc2_g_ref, fc2_bt_ref,
                       fc3_w_ref, fc3_b_ref, fc3_g_ref, fc3_bt_ref,
                       p1_w_ref, p1_b_ref, p1_g_ref, p1_bt_ref,
                       p2_w_ref, p2_b_ref,
                       z_ref, n_ref, p_ref):
    # One grid step == one encoder (joint or motion) applied to BOTH its views.
    x = x_ref[...]                                         # (2, N, C, P)
    two, n_rows, n_ch, _ = x.shape
    x2 = x.reshape(two * n_rows, n_ch, x.shape[-1])        # leading-dim merge

    wt = w_in_t_ref[0]                                     # (H, C)
    bi = b_in_ref[0]                                       # (H, 1)

    # Surrogate ST-GCN backbone: per-node 1x1 channel conv + ReLU + mean pool.
    # C == 3 (static) -> unrolled VPU broadcast-FMAs (no MXU for a 3-deep
    # contraction); P = M*T*V = 128 sits on the 128-wide lane axis.
    # TODO(synk): chunk over H if bundle dumps ever show vld/vst spill traffic.
    h = bi[None, :, :]                                     # (1, H, 1)
    for c in range(n_ch):                                  # static C
        h = h + x2[:, c:c + 1, :] * wt[None, :, c:c + 1]   # (2N, H, P)
    h = jnp.maximum(h, 0.0)
    feat = jnp.mean(h, axis=-1)                            # (2N, H)

    # Hidden projection + pretrain MLP head; activations never leave VMEM.
    hid = jnp.dot(feat, w_hid_ref[0],
                  preferred_element_type=jnp.float32) + b_hid_ref[0]
    hid = jnp.maximum(hid, 0.0)                            # (2N, 256)

    h1 = jnp.dot(hid, fc1_w_ref[0],
                 preferred_element_type=jnp.float32) + fc1_b_ref[0]
    h1 = jnp.maximum(_bn_per_view(h1, fc1_g_ref[0], fc1_bt_ref[0]), 0.0)

    h2 = jnp.dot(h1, fc2_w_ref[0],
                 preferred_element_type=jnp.float32) + fc2_b_ref[0]
    h2 = jnp.maximum(_bn_per_view(h2, fc2_g_ref[0], fc2_bt_ref[0]), 0.0)

    z = jnp.dot(h2, fc3_w_ref[0],
                preferred_element_type=jnp.float32) + fc3_b_ref[0]
    z = _bn_per_view(z, fc3_g_ref[0], fc3_bt_ref[0])       # (2N, F)

    # ---- kNN view mining within the pair (k = 1) + in-kernel gather ----
    # F.normalize(p=2): x / max(||x||, 1e-12).  mine_views(x, y_pool) is read
    # as _knn(x, y_pool) (query x, pool y_pool), as in the reference forward.
    norm = jnp.sqrt(jnp.sum(z * z, axis=-1, keepdims=True))
    zn = z / jnp.maximum(norm, NORM_EPS)
    zv = z.reshape(two, n_rows, -1)                        # (2, N, F)
    znv = zn.reshape(two, n_rows, -1)
    za, zb = zv[0], zv[1]
    zan, zbn = znv[0], znv[1]

    dist_ab = 2.0 - 2.0 * jax.lax.dot_general(             # queries za, pool zb
        zan, zbn, dimension_numbers=(((1,), (1,)), ((), ())),
        preferred_element_type=jnp.float32)                # (N, N)
    dist_ba = 2.0 - 2.0 * jax.lax.dot_general(             # queries zb, pool za
        zbn, zan, dimension_numbers=(((1,), (1,)), ((), ())),
        preferred_element_type=jnp.float32)

    # Reference gathers from the QUERY tensor: n1 = z1[ids1] with
    # ids1 = knn(z1, pool=z2).  Reproduced literally via one-hot matmuls so
    # the result stays lane-dense (no int-index output, no XLA gathers).
    n_a = jnp.dot(_argmin_onehot(dist_ab), za,
                  preferred_element_type=jnp.float32)      # (N, F)
    n_b = jnp.dot(_argmin_onehot(dist_ba), zb,
                  preferred_element_type=jnp.float32)

    # ---- predictor (Linear + BN + ReLU + Linear), both views at once ----
    y = jnp.dot(z, p1_w_ref[0],
                preferred_element_type=jnp.float32) + p1_b_ref[0]
    y = jnp.maximum(_bn_per_view(y, p1_g_ref[0], p1_bt_ref[0]), 0.0)
    p = jnp.dot(y, p2_w_ref[0],
                preferred_element_type=jnp.float32) + p2_b_ref[0]

    z_ref[...] = zv.astype(z_ref.dtype)
    n_ref[0] = n_a.astype(n_ref.dtype)
    n_ref[1] = n_b.astype(n_ref.dtype)
    p_ref[...] = p.reshape(two, n_rows, -1).astype(p_ref.dtype)


# --------------------------------- wrapper -----------------------------------

def fused_forward(enc_stacked, pred_stacked, x_views):
    # x_views: (4, N, C, P) ordered [im_1, im_2, im_1_motion, im_2_motion];
    # step e consumes views [2e, 2e+1] and weight set e (0=joint, 1=motion).
    n_views, N, C, P = x_views.shape
    H, D, F = HIDDEN_CHANNELS, HIDDEN_DIM, FEATURE_DIM
    pair4 = lambda e: (e, 0, 0, 0)
    pair3 = lambda e: (e, 0, 0)
    par3 = lambda e: (e, 0, 0)
    in_specs = [
        pl.BlockSpec((2, N, C, P), pair4),        # two views of encoder e
        pl.BlockSpec((1, H, C), par3),            # w_in^T
        pl.BlockSpec((1, H, 1), par3),            # b_in (column)
        pl.BlockSpec((1, H, D), par3),            # w_hid
        pl.BlockSpec((1, 1, D), par3),            # b_hid
        pl.BlockSpec((1, D, D), par3),            # fc1_w
        pl.BlockSpec((1, 1, D), par3),            # fc1_b
        pl.BlockSpec((1, 1, D), par3),            # fc1_g
        pl.BlockSpec((1, 1, D), par3),            # fc1_bt
        pl.BlockSpec((1, D, D), par3),            # fc2_w
        pl.BlockSpec((1, 1, D), par3),            # fc2_b
        pl.BlockSpec((1, 1, D), par3),            # fc2_g
        pl.BlockSpec((1, 1, D), par3),            # fc2_bt
        pl.BlockSpec((1, D, F), par3),            # fc3_w
        pl.BlockSpec((1, 1, F), par3),            # fc3_b
        pl.BlockSpec((1, 1, F), par3),            # fc3_g
        pl.BlockSpec((1, 1, F), par3),            # fc3_bt
        pl.BlockSpec((1, F, F), par3),            # p1_w
        pl.BlockSpec((1, 1, F), par3),            # p1_b
        pl.BlockSpec((1, 1, F), par3),            # p1_g
        pl.BlockSpec((1, 1, F), par3),            # p1_bt
        pl.BlockSpec((1, F, F), par3),            # p2_w
        pl.BlockSpec((1, 1, F), par3),            # p2_b
    ]
    out_specs = (
        pl.BlockSpec((2, N, F), pair3),           # z
        pl.BlockSpec((2, N, F), pair3),           # mined neighbors n
        pl.BlockSpec((2, N, F), pair3),           # predictor output p
    )
    out_shape = (
        jax.ShapeDtypeStruct((n_views, N, F), jnp.float32),
        jax.ShapeDtypeStruct((n_views, N, F), jnp.float32),
        jax.ShapeDtypeStruct((n_views, N, F), jnp.float32),
    )
    return pl.pallas_call(
        _fused_pair_kernel,
        out_shape=out_shape,
        grid=(2,),
        in_specs=in_specs,
        out_specs=out_specs,
        compiler_params=pltpu.CompilerParams(
            dimension_semantics=("parallel",)),   # v7x: one encoder per TC
    )(x_views, *enc_stacked, *pred_stacked)


# ------------------------ parameters (deterministic) ------------------------

def _init_linear(key, din, dout):
    kw, kb = jax.random.split(key)
    w = jax.random.normal(kw, (din, dout), jnp.float32) * (1.0 / din) ** 0.5
    b = jax.random.normal(kb, (dout,), jnp.float32) * 0.01
    return w, b


def _init_bn(dout):
    return jnp.ones((1, dout), jnp.float32), jnp.zeros((1, dout), jnp.float32)


def init_encoder(key):
    k = jax.random.split(key, 5)
    p = {}
    p['w_in'], p['b_in'] = _init_linear(k[0], IN_CHANNELS, HIDDEN_CHANNELS)
    p['w_hid'], p['b_hid'] = _init_linear(k[1], HIDDEN_CHANNELS, HIDDEN_DIM)
    # Pretrain MLP head replacing encoder.fc:
    # Linear+BN+ReLU, Linear+BN+ReLU, fc(D->F), BN(F).
    p['fc1_w'], p['fc1_b'] = _init_linear(k[2], HIDDEN_DIM, HIDDEN_DIM)
    p['fc1_g'], p['fc1_bt'] = _init_bn(HIDDEN_DIM)
    p['fc2_w'], p['fc2_b'] = _init_linear(k[3], HIDDEN_DIM, HIDDEN_DIM)
    p['fc2_g'], p['fc2_bt'] = _init_bn(HIDDEN_DIM)
    p['fc3_w'], p['fc3_b'] = _init_linear(k[4], HIDDEN_DIM, FEATURE_DIM)
    p['fc3_g'], p['fc3_bt'] = _init_bn(FEATURE_DIM)
    return p


def init_predictor(key):
    k = jax.random.split(key, 2)
    p = {}
    p['p1_w'], p['p1_b'] = _init_linear(k[0], FEATURE_DIM, FEATURE_DIM)
    p['p1_g'], p['p1_bt'] = _init_bn(FEATURE_DIM)
    p['p2_w'], p['p2_b'] = _init_linear(k[1], FEATURE_DIM, FEATURE_DIM)
    return p


def init_params(key):
    k = jax.random.split(key, 4)
    return {
        'joint': init_encoder(k[0]),
        'motion': init_encoder(k[1]),
        'pred_joint': init_predictor(k[2]),
        'pred_motion': init_predictor(k[3]),
    }


def _stack_encoder_params(pj, pm):
    H, D, F = HIDDEN_CHANNELS, HIDDEN_DIM, FEATURE_DIM
    s = lambda f: jnp.stack([f(pj), f(pm)], axis=0)
    return [
        s(lambda p: p['w_in'].T),                 # (2, H, C)
        s(lambda p: p['b_in'].reshape(H, 1)),     # (2, H, 1)
        s(lambda p: p['w_hid']),                  # (2, H, D)
        s(lambda p: p['b_hid'].reshape(1, D)),    # (2, 1, D)
        s(lambda p: p['fc1_w']),
        s(lambda p: p['fc1_b'].reshape(1, D)),
        s(lambda p: p['fc1_g']),
        s(lambda p: p['fc1_bt']),
        s(lambda p: p['fc2_w']),
        s(lambda p: p['fc2_b'].reshape(1, D)),
        s(lambda p: p['fc2_g']),
        s(lambda p: p['fc2_bt']),
        s(lambda p: p['fc3_w']),
        s(lambda p: p['fc3_b'].reshape(1, F)),
        s(lambda p: p['fc3_g']),
        s(lambda p: p['fc3_bt']),
    ]


def _stack_predictor_params(pj, pm):
    F = FEATURE_DIM
    s = lambda f: jnp.stack([f(pj), f(pm)], axis=0)
    return [
        s(lambda p: p['p1_w']),                   # (2, F, F)
        s(lambda p: p['p1_b'].reshape(1, F)),     # (2, 1, F)
        s(lambda p: p['p1_g']),
        s(lambda p: p['p1_bt']),
        s(lambda p: p['p2_w']),
        s(lambda p: p['p2_b'].reshape(1, F)),
    ]


# ------------------------------ forward pass --------------------------------

def motion_diff(x):
    # torch: motion[:, :, :-1] = x[:, :, 1:] - x[:, :, :-1]; last frame = 0.
    # TODO(synk): optional — fold this into the fused kernel via a lane shift
    # (pltpu.roll by V*M) to drop the XLA diff/concat/stack prep; kept in XLA
    # here for robustness (it is one small fusion at this size).
    diff = x[:, :, 1:] - x[:, :, :-1]
    return jnp.concatenate([diff, jnp.zeros_like(x[:, :, :1])], axis=2)


def skeleton_simnn_forward(params, im_1, im_2):
    # pretrain=True branch of SkeletonSimnn.forward.
    N, C, T, V, M = im_1.shape
    P = T * V * M

    im_1_motion = motion_diff(im_1)
    im_2_motion = motion_diff(im_2)

    # View stack (pure reshapes, no transpose): kernel step 0 consumes
    # [im_1, im_2] (joint encoder), step 1 consumes the motion views.
    x_views = jnp.stack([
        im_1.reshape(N, C, P),
        im_2.reshape(N, C, P),
        im_1_motion.reshape(N, C, P),
        im_2_motion.reshape(N, C, P),
    ], axis=0)                                              # (4, N, C, P)

    enc_stacked = _stack_encoder_params(params['joint'], params['motion'])
    pred_stacked = _stack_predictor_params(params['pred_joint'],
                                           params['pred_motion'])

    z, n, p = fused_forward(enc_stacked, pred_stacked, x_views)  # each (4,N,F)

    sg = jax.lax.stop_gradient   # mirrors .detach()
    return (p[0], p[1], p[2], p[3],
            sg(z[0]), sg(z[1]), sg(z[2]), sg(z[3]),
            sg(n[0]), sg(n[1]), sg(n[2]), sg(n[3]))


# ---------------------------------- main ------------------------------------

if __name__ == "__main__":
    key = jax.random.PRNGKey(0)
    kp, k1, k2 = jax.random.split(key, 3)
    params = init_params(kp)

    # Small skeleton clip: N=8 samples, C=3 coords, T=8 frames, V=8 joints,
    # M=2 bodies  ->  P = T*V*M = 128 nodes per sample (lane-dense).
    N, C, T, V, M = 8, 3, 8, 8, 2
    im_1 = jax.random.normal(k1, (N, C, T, V, M), jnp.float32)
    im_2 = jax.random.normal(k2, (N, C, T, V, M), jnp.float32)

    outs = jax.jit(skeleton_simnn_forward)(params, im_1, im_2)
    jax.block_until_ready(outs)

    assert len(outs) == 12
    for o in outs:
        assert o.shape == (N, FEATURE_DIM), o.shape
        assert bool(jnp.all(jnp.isfinite(o)))
    print("KERNEL_OK")
</pallas_src>

<mosaic_0001>
module attributes {stable_mosaic.version = 11 : i64} {
  func.func @_fused_pair_kernel(%arg0: i32, %arg1: memref<2x8x3x128xf32, #tpu.memory_space<vmem>>, %arg2: memref<1x64x3xf32, #tpu.memory_space<vmem>>, %arg3: memref<1x64x1xf32, #tpu.memory_space<vmem>>, %arg4: memref<1x64x256xf32, #tpu.memory_space<vmem>>, %arg5: memref<1x1x256xf32, #tpu.memory_space<vmem>>, %arg6: memref<1x256x256xf32, #tpu.memory_space<vmem>>, %arg7: memref<1x1x256xf32, #tpu.memory_space<vmem>>, %arg8: memref<1x1x256xf32, #tpu.memory_space<vmem>>, %arg9: memref<1x1x256xf32, #tpu.memory_space<vmem>>, %arg10: memref<1x256x256xf32, #tpu.memory_space<vmem>>, %arg11: memref<1x1x256xf32, #tpu.memory_space<vmem>>, %arg12: memref<1x1x256xf32, #tpu.memory_space<vmem>>, %arg13: memref<1x1x256xf32, #tpu.memory_space<vmem>>, %arg14: memref<1x256x128xf32, #tpu.memory_space<vmem>>, %arg15: memref<1x1x128xf32, #tpu.memory_space<vmem>>, %arg16: memref<1x1x128xf32, #tpu.memory_space<vmem>>, %arg17: memref<1x1x128xf32, #tpu.memory_space<vmem>>, %arg18: memref<1x128x128xf32, #tpu.memory_space<vmem>>, %arg19: memref<1x1x128xf32, #tpu.memory_space<vmem>>, %arg20: memref<1x1x128xf32, #tpu.memory_space<vmem>>, %arg21: memref<1x1x128xf32, #tpu.memory_space<vmem>>, %arg22: memref<1x128x128xf32, #tpu.memory_space<vmem>>, %arg23: memref<1x1x128xf32, #tpu.memory_space<vmem>>, %arg24: memref<2x8x128xf32, #tpu.memory_space<vmem>>, %arg25: memref<2x8x128xf32, #tpu.memory_space<vmem>>, %arg26: memref<2x8x128xf32, #tpu.memory_space<vmem>>) attributes {dimension_semantics = [#tpu.dimension_semantics<parallel>], iteration_bounds = array<i64: 2>, scalar_prefetch = 0 : i64, scratch_operands = 0 : i64, tpu.core_type = #tpu.core_type<tc>, window_params = [{transform_indices = @transform_0, window_bounds = array<i64: 2, 8, 3, 128>}, {transform_indices = @transform_1, window_bounds = array<i64: 1, 64, 3>}, {transform_indices = @transform_2, window_bounds = array<i64: 1, 64, 1>}, {transform_indices = @transform_3, window_bounds = array<i64: 1, 64, 256>}, {transform_indices = @transform_4, window_bounds = array<i64: 1, 1, 256>}, {transform_indices = @transform_5, window_bounds = array<i64: 1, 256, 256>}, {transform_indices = @transform_6, window_bounds = array<i64: 1, 1, 256>}, {transform_indices = @transform_7, window_bounds = array<i64: 1, 1, 256>}, {transform_indices = @transform_8, window_bounds = array<i64: 1, 1, 256>}, {transform_indices = @transform_9, window_bounds = array<i64: 1, 256, 256>}, {transform_indices = @transform_10, window_bounds = array<i64: 1, 1, 256>}, {transform_indices = @transform_11, window_bounds = array<i64: 1, 1, 256>}, {transform_indices = @transform_12, window_bounds = array<i64: 1, 1, 256>}, {transform_indices = @transform_13, window_bounds = array<i64: 1, 256, 128>}, {transform_indices = @transform_14, window_bounds = array<i64: 1, 1, 128>}, {transform_indices = @transform_15, window_bounds = array<i64: 1, 1, 128>}, {transform_indices = @transform_16, window_bounds = array<i64: 1, 1, 128>}, {transform_indices = @transform_17, window_bounds = array<i64: 1, 128, 128>}, {transform_indices = @transform_18, window_bounds = array<i64: 1, 1, 128>}, {transform_indices = @transform_19, window_bounds = array<i64: 1, 1, 128>}, {transform_indices = @transform_20, window_bounds = array<i64: 1, 1, 128>}, {transform_indices = @transform_21, window_bounds = array<i64: 1, 128, 128>}, {transform_indices = @transform_22, window_bounds = array<i64: 1, 1, 128>}, {transform_indices = @transform_23, window_bounds = array<i64: 2, 8, 128>}, {transform_indices = @transform_24, window_bounds = array<i64: 2, 8, 128>}, {transform_indices = @transform_25, window_bounds = array<i64: 2, 8, 128>}]} {
    %c0 = arith.constant 0 : index
    %c0_0 = arith.constant 0 : index
    %c0_1 = arith.constant 0 : index
    %c0_2 = arith.constant 0 : index
    %0 = vector.load %arg1[%c0, %c0_0, %c0_1, %c0_2] : memref<2x8x3x128xf32, #tpu.memory_space<vmem>>, vector<2x8x3x128xf32>
    %1 = vector.shape_cast %0 : vector<2x8x3x128xf32> to vector<16x3x128xf32>
    %c0_3 = arith.constant 0 : index
    %c0_4 = arith.constant 0 : index
    %c0_5 = arith.constant 0 : index
    %2 = vector.load %arg2[%c0_3, %c0_4, %c0_5] : memref<1x64x3xf32, #tpu.memory_space<vmem>>, vector<1x64x3xf32>
    %3 = vector.shape_cast %2 : vector<1x64x3xf32> to vector<64x3xf32>
    %c0_6 = arith.constant 0 : index
    %c0_7 = arith.constant 0 : index
    %c0_8 = arith.constant 0 : index
    %4 = vector.load %arg3[%c0_6, %c0_7, %c0_8] : memref<1x64x1xf32, #tpu.memory_space<vmem>>, vector<1x64x1xf32>
    %5 = vector.shape_cast %4 : vector<1x64x1xf32> to vector<64x1xf32>
    %6 = vector.shape_cast %5 : vector<64x1xf32> to vector<1x64x1xf32>
    %7 = vector.extract_strided_slice %1 {offsets = [0, 0, 0], sizes = [16, 1, 128], strides = [1, 1, 1]} : vector<16x3x128xf32> to vector<16x1x128xf32>
    %8 = vector.extract_strided_slice %3 {offsets = [0, 0], sizes = [64, 1], strides = [1, 1]} : vector<64x3xf32> to vector<64x1xf32>
    %9 = vector.shape_cast %8 : vector<64x1xf32> to vector<1x64x1xf32>
    %10 = vector.broadcast %7 : vector<16x1x128xf32> to vector<16x64x128xf32>
    %11 = vector.broadcast %9 : vector<1x64x1xf32> to vector<16x64x128xf32>
    %12 = arith.mulf %10, %11 : vector<16x64x128xf32>
    %13 = vector.broadcast %6 : vector<1x64x1xf32> to vector<16x64x128xf32>
    %14 = arith.addf %13, %12 : vector<16x64x128xf32>
    %15 = vector.extract_strided_slice %1 {offsets = [0, 1, 0], sizes = [16, 1, 128], strides = [1, 1, 1]} : vector<16x3x128xf32> to vector<16x1x128xf32>
    %16 = vector.extract_strided_slice %3 {offsets = [0, 1], sizes = [64, 1], strides = [1, 1]} : vector<64x3xf32> to vector<64x1xf32>
    %17 = vector.shape_cast %16 : vector<64x1xf32> to vector<1x64x1xf32>
    %18 = vector.broadcast %15 : vector<16x1x128xf32> to vector<16x64x128xf32>
    %19 = vector.broadcast %17 : vector<1x64x1xf32> to vector<16x64x128xf32>
    %20 = arith.mulf %18, %19 : vector<16x64x128xf32>
    %21 = arith.addf %14, %20 : vector<16x64x128xf32>
    %22 = vector.extract_strided_slice %1 {offsets = [0, 2, 0], sizes = [16, 1, 128], strides = [1, 1, 1]} : vector<16x3x128xf32> to vector<16x1x128xf32>
    %23 = vector.extract_strided_slice %3 {offsets = [0, 2], sizes = [64, 1], strides = [1, 1]} : vector<64x3xf32> to vector<64x1xf32>
    %24 = vector.shape_cast %23 : vector<64x1xf32> to vector<1x64x1xf32>
    %25 = vector.broadcast %22 : vector<16x1x128xf32> to vector<16x64x128xf32>
    %26 = vector.broadcast %24 : vector<1x64x1xf32> to vector<16x64x128xf32>
    %27 = arith.mulf %25, %26 : vector<16x64x128xf32>
    %28 = arith.addf %21, %27 : vector<16x64x128xf32>
    %cst = arith.constant 0.000000e+00 : f32
    %29 = vector.broadcast %cst : f32 to vector<16x64x128xf32>
    %30 = arith.maximumf %28, %29 : vector<16x64x128xf32>
    %cst_9 = arith.constant dense<0.000000e+00> : vector<16x64xf32>
    %31 = vector.multi_reduction <add>, %30, %cst_9 [2] : vector<16x64x128xf32> to vector<16x64xf32>
    %cst_10 = arith.constant 1.280000e+02 : f32
    %32 = vector.broadcast %cst_10 : f32 to vector<16x64xf32>
    %33 = arith.divf %31, %32 : vector<16x64xf32>
    %c0_11 = arith.constant 0 : index
    %c0_12 = arith.constant 0 : index
    %c0_13 = arith.constant 0 : index
    %34 = vector.load %arg4[%c0_11, %c0_12, %c0_13] : memref<1x64x256xf32, #tpu.memory_space<vmem>>, vector<1x64x256xf32>
    %35 = vector.shape_cast %34 : vector<1x64x256xf32> to vector<64x256xf32>
    %cst_14 = arith.constant dense<0.000000e+00> : vector<16x256xf32>
    %36 = tpu.matmul %33, %35, %cst_14 {dimension_numbers = #tpu.dot_dimension_numbers<[1], [0], [0], [1], [0, 0, 1, 1], [], []>} : vector<16x64xf32>, vector<64x256xf32>, vector<16x256xf32> -> vector<16x256xf32>
    %c0_15 = arith.constant 0 : index
    %c0_16 = arith.constant 0 : index
    %c0_17 = arith.constant 0 : index
    %37 = vector.load %arg5[%c0_15, %c0_16, %c0_17] : memref<1x1x256xf32, #tpu.memory_space<vmem>>, vector<1x1x256xf32>
    %38 = vector.shape_cast %37 : vector<1x1x256xf32> to vector<1x256xf32>
    %39 = vector.broadcast %38 : vector<1x256xf32> to vector<16x256xf32>
    %40 = arith.addf %36, %39 : vector<16x256xf32>
    %cst_18 = arith.constant 0.000000e+00 : f32
    %41 = vector.broadcast %cst_18 : f32 to vector<16x256xf32>
    %42 = arith.maximumf %40, %41 : vector<16x256xf32>
    %c0_19 = arith.constant 0 : index
    %c0_20 = arith.constant 0 : index
    %c0_21 = arith.constant 0 : index
    %43 = vector.load %arg6[%c0_19, %c0_20, %c0_21] : memref<1x256x256xf32, #tpu.memory_space<vmem>>, vector<1x256x256xf32>
    %44 = vector.shape_cast %43 : vector<1x256x256xf32> to vector<256x256xf32>
    %cst_22 = arith.constant dense<0.000000e+00> : vector<16x256xf32>
    %45 = tpu.matmul %42, %44, %cst_22 {dimension_numbers = #tpu.dot_dimension_numbers<[1], [0], [0], [1], [0, 0, 1, 1], [], []>} : vector<16x256xf32>, vector<256x256xf32>, vector<16x256xf32> -> vector<16x256xf32>
    %c0_23 = arith.constant 0 : index
    %c0_24 = arith.constant 0 : index
    %c0_25 = arith.constant 0 : index
    %46 = vector.load %arg7[%c0_23, %c0_24, %c0_25] : memref<1x1x256xf32, #tpu.memory_space<vmem>>, vector<1x1x256xf32>
    %47 = vector.shape_cast %46 : vector<1x1x256xf32> to vector<1x256xf32>
    %48 = vector.broadcast %47 : vector<1x256xf32> to vector<16x256xf32>
    %49 = arith.addf %45, %48 : vector<16x256xf32>
    %c0_26 = arith.constant 0 : index
    %c0_27 = arith.constant 0 : index
    %c0_28 = arith.constant 0 : index
    %50 = vector.load %arg8[%c0_26, %c0_27, %c0_28] : memref<1x1x256xf32, #tpu.memory_space<vmem>>, vector<1x1x256xf32>
    %51 = vector.shape_cast %50 : vector<1x1x256xf32> to vector<1x256xf32>
    %c0_29 = arith.constant 0 : index
    %c0_30 = arith.constant 0 : index
    %c0_31 = arith.constant 0 : index
    %52 = vector.load %arg9[%c0_29, %c0_30, %c0_31] : memref<1x1x256xf32, #tpu.memory_space<vmem>>, vector<1x1x256xf32>
    %53 = vector.shape_cast %52 : vector<1x1x256xf32> to vector<1x256xf32>
    %54 = vector.shape_cast %49 : vector<16x256xf32> to vector<2x8x256xf32>
    %cst_32 = arith.constant dense<0.000000e+00> : vector<2x256xf32>
    %55 = vector.multi_reduction <add>, %54, %cst_32 [1] : vector<2x8x256xf32> to vector<2x256xf32>
    %56 = vector.shape_cast %55 : vector<2x256xf32> to vector<2x1x256xf32>
    %cst_33 = arith.constant 8.000000e+00 : f32
    %57 = vector.broadcast %cst_33 : f32 to vector<2x1x256xf32>
    %58 = arith.divf %56, %57 : vector<2x1x256xf32>
    %59 = vector.broadcast %58 : vector<2x1x256xf32> to vector<2x8x256xf32>
    %60 = arith.subf %54, %59 : vector<2x8x256xf32>
    %61 = arith.mulf %60, %60 : vector<2x8x256xf32>
    %cst_34 = arith.constant dense<0.000000e+00> : vector<2x256xf32>
    %62 = vector.multi_reduction <add>, %61, %cst_34 [1] : vector<2x8x256xf32> to vector<2x256xf32>
    %63 = vector.shape_cast %62 : vector<2x256xf32> to vector<2x1x256xf32>
    %cst_35 = arith.constant 8.000000e+00 : f32
    %64 = vector.broadcast %cst_35 : f32 to vector<2x1x256xf32>
    %65 = arith.divf %63, %64 : vector<2x1x256xf32>
    %66 = vector.broadcast %58 : vector<2x1x256xf32> to vector<2x8x256xf32>
    %67 = arith.subf %54, %66 : vector<2x8x256xf32>
    %cst_36 = arith.constant 9.99999974E-6 : f32
    %68 = vector.broadcast %cst_36 : f32 to vector<2x1x256xf32>
    %69 = arith.addf %65, %68 : vector<2x1x256xf32>
    %70 = math.rsqrt %69 : vector<2x1x256xf32>
    %71 = vector.broadcast %70 : vector<2x1x256xf32> to vector<2x8x256xf32>
    %72 = arith.mulf %67, %71 : vector<2x8x256xf32>
    %73 = vector.shape_cast %51 : vector<1x256xf32> to vector<1x1x256xf32>
    %74 = vector.broadcast %73 : vector<1x1x256xf32> to vector<2x8x256xf32>
    %75 = arith.mulf %72, %74 : vector<2x8x256xf32>
    %76 = vector.shape_cast %53 : vector<1x256xf32> to vector<1x1x256xf32>
    %77 = vector.broadcast %76 : vector<1x1x256xf32> to vector<2x8x256xf32>
    %78 = arith.addf %75, %77 : vector<2x8x256xf32>
    %79 = vector.shape_cast %78 : vector<2x8x256xf32> to vector<16x256xf32>
    %cst_37 = arith.constant 0.000000e+00 : f32
    %80 = vector.broadcast %cst_37 : f32 to vector<16x256xf32>
    %81 = arith.maximumf %79, %80 : vector<16x256xf32>
    %c0_38 = arith.constant 0 : index
    %c0_39 = arith.constant 0 : index
    %c0_40 = arith.constant 0 : index
    %82 = vector.load %arg10[%c0_38, %c0_39, %c0_40] : memref<1x256x256xf32, #tpu.memory_space<vmem>>, vector<1x256x256xf32>
    %83 = vector.shape_cast %82 : vector<1x256x256xf32> to vector<256x256xf32>
    %cst_41 = arith.constant dense<0.000000e+00> : vector<16x256xf32>
    %84 = tpu.matmul %81, %83, %cst_41 {dimension_numbers = #tpu.dot_dimension_numbers<[1], [0], [0], [1], [0, 0, 1, 1], [], []>} : vector<16x256xf32>, vector<256x256xf32>, vector<16x256xf32> -> vector<16x256xf32>
    %c0_42 = arith.constant 0 : index
    %c0_43 = arith.constant 0 : index
    %c0_44 = arith.constant 0 : index
    %85 = vector.load %arg11[%c0_42, %c0_43, %c0_44] : memref<1x1x256xf32, #tpu.memory_space<vmem>>, vector<1x1x256xf32>
    %86 = vector.shape_cast %85 : vector<1x1x256xf32> to vector<1x256xf32>
    %87 = vector.broadcast %86 : vector<1x256xf32> to vector<16x256xf32>
    %88 = arith.addf %84, %87 : vector<16x256xf32>
    %c0_45 = arith.constant 0 : index
    %c0_46 = arith.constant 0 : index
    %c0_47 = arith.constant 0 : index
    %89 = vector.load %arg12[%c0_45, %c0_46, %c0_47] : memref<1x1x256xf32, #tpu.memory_space<vmem>>, vector<1x1x256xf32>
    %90 = vector.shape_cast %89 : vector<1x1x256xf32> to vector<1x256xf32>
    %c0_48 = arith.constant 0 : index
    %c0_49 = arith.constant 0 : index
    %c0_50 = arith.constant 0 : index
    %91 = vector.load %arg13[%c0_48, %c0_49, %c0_50] : memref<1x1x256xf32, #tpu.memory_space<vmem>>, vector<1x1x256xf32>
    %92 = vector.shape_cast %91 : vector<1x1x256xf32> to vector<1x256xf32>
    %93 = vector.shape_cast %88 : vector<16x256xf32> to vector<2x8x256xf32>
    %cst_51 = arith.constant dense<0.000000e+00> : vector<2x256xf32>
    %94 = vector.multi_reduction <add>, %93, %cst_51 [1] : vector<2x8x256xf32> to vector<2x256xf32>
    %95 = vector.shape_cast %94 : vector<2x256xf32> to vector<2x1x256xf32>
    %cst_52 = arith.constant 8.000000e+00 : f32
    %96 = vector.broadcast %cst_52 : f32 to vector<2x1x256xf32>
    %97 = arith.divf %95, %96 : vector<2x1x256xf32>
    %98 = vector.broadcast %97 : vector<2x1x256xf32> to vector<2x8x256xf32>
    %99 = arith.subf %93, %98 : vector<2x8x256xf32>
    %100 = arith.mulf %99, %99 : vector<2x8x256xf32>
    %cst_53 = arith.constant dense<0.000000e+00> : vector<2x256xf32>
    %101 = vector.multi_reduction <add>, %100, %cst_53 [1] : vector<2x8x256xf32> to vector<2x256xf32>
    %102 = vector.shape_cast %101 : vector<2x256xf32> to vector<2x1x256xf32>
    %cst_54 = arith.constant 8.000000e+00 : f32
    %103 = vector.broadcast %cst_54 : f32 to vector<2x1x256xf32>
    %104 = arith.divf %102, %103 : vector<2x1x256xf32>
    %105 = vector.broadcast %97 : vector<2x1x256xf32> to vector<2x8x256xf32>
    %106 = arith.subf %93, %105 : vector<2x8x256xf32>
    %cst_55 = arith.constant 9.99999974E-6 : f32
    %107 = vector.broadcast %cst_55 : f32 to vector<2x1x256xf32>
    %108 = arith.addf %104, %107 : vector<2x1x256xf32>
    %109 = math.rsqrt %108 : vector<2x1x256xf32>
    %110 = vector.broadcast %109 : vector<2x1x256xf32> to vector<2x8x256xf32>
    %111 = arith.mulf %106, %110 : vector<2x8x256xf32>
    %112 = vector.shape_cast %90 : vector<1x256xf32> to vector<1x1x256xf32>
    %113 = vector.broadcast %112 : vector<1x1x256xf32> to vector<2x8x256xf32>
    %114 = arith.mulf %111, %113 : vector<2x8x256xf32>
    %115 = vector.shape_cast %92 : vector<1x256xf32> to vector<1x1x256xf32>
    %116 = vector.broadcast %115 : vector<1x1x256xf32> to vector<2x8x256xf32>
    %117 = arith.addf %114, %116 : vector<2x8x256xf32>
    %118 = vector.shape_cast %117 : vector<2x8x256xf32> to vector<16x256xf32>
    %cst_56 = arith.constant 0.000000e+00 : f32
    %119 = vector.broadcast %cst_56 : f32 to vector<16x256xf32>
    %120 = arith.maximumf %118, %119 : vector<16x256xf32>
    %c0_57 = arith.constant 0 : index
    %c0_58 = arith.constant 0 : index
    %c0_59 = arith.constant 0 : index
    %121 = vector.load %arg14[%c0_57, %c0_58, %c0_59] : memref<1x256x128xf32, #tpu.memory_space<vmem>>, vector<1x256x128xf32>
    %122 = vector.shape_cast %121 : vector<1x256x128xf32> to vector<256x128xf32>
    %cst_60 = arith.constant dense<0.000000e+00> : vector<16x128xf32>
    %123 = tpu.matmul %120, %122, %cst_60 {dimension_numbers = #tpu.dot_dimension_numbers<[1], [0], [0], [1], [0, 0, 1, 1], [], []>} : vector<16x256xf32>, vector<256x128xf32>, vector<16x128xf32> -> vector<16x128xf32>
    %c0_61 = arith.constant 0 : index
    %c0_62 = arith.constant 0 : index
    %c0_63 = arith.constant 0 : index
    %124 = vector.load %arg15[%c0_61, %c0_62, %c0_63] : memref<1x1x128xf32, #tpu.memory_space<vmem>>, vector<1x1x128xf32>
    %125 = vector.shape_cast %124 : vector<1x1x128xf32> to vector<1x128xf32>
    %126 = vector.broadcast %125 : vector<1x128xf32> to vector<16x128xf32>
    %127 = arith.addf %123, %126 : vector<16x128xf32>
    %c0_64 = arith.constant 0 : index
    %c0_65 = arith.constant 0 : index
    %c0_66 = arith.constant 0 : index
    %128 = vector.load %arg16[%c0_64, %c0_65, %c0_66] : memref<1x1x128xf32, #tpu.memory_space<vmem>>, vector<1x1x128xf32>
    %129 = vector.shape_cast %128 : vector<1x1x128xf32> to vector<1x128xf32>
    %c0_67 = arith.constant 0 : index
    %c0_68 = arith.constant 0 : index
    %c0_69 = arith.constant 0 : index
    %130 = vector.load %arg17[%c0_67, %c0_68, %c0_69] : memref<1x1x128xf32, #tpu.memory_space<vmem>>, vector<1x1x128xf32>
    %131 = vector.shape_cast %130 : vector<1x1x128xf32> to vector<1x128xf32>
    %132 = vector.shape_cast %127 : vector<16x128xf32> to vector<2x8x128xf32>
    %cst_70 = arith.constant dense<0.000000e+00> : vector<2x128xf32>
    %133 = vector.multi_reduction <add>, %132, %cst_70 [1] : vector<2x8x128xf32> to vector<2x128xf32>
    %134 = vector.shape_cast %133 : vector<2x128xf32> to vector<2x1x128xf32>
    %cst_71 = arith.constant 8.000000e+00 : f32
    %135 = vector.broadcast %cst_71 : f32 to vector<2x1x128xf32>
    %136 = arith.divf %134, %135 : vector<2x1x128xf32>
    %137 = vector.broadcast %136 : vector<2x1x128xf32> to vector<2x8x128xf32>
    %138 = arith.subf %132, %137 : vector<2x8x128xf32>
    %139 = arith.mulf %138, %138 : vector<2x8x128xf32>
    %cst_72 = arith.constant dense<0.000000e+00> : vector<2x128xf32>
    %140 = vector.multi_reduction <add>, %139, %cst_72 [1] : vector<2x8x128xf32> to vector<2x128xf32>
    %141 = vector.shape_cast %140 : vector<2x128xf32> to vector<2x1x128xf32>
    %cst_73 = arith.constant 8.000000e+00 : f32
    %142 = vector.broadcast %cst_73 : f32 to vector<2x1x128xf32>
    %143 = arith.divf %141, %142 : vector<2x1x128xf32>
    %144 = vector.broadcast %136 : vector<2x1x128xf32> to vector<2x8x128xf32>
    %145 = arith.subf %132, %144 : vector<2x8x128xf32>
    %cst_74 = arith.constant 9.99999974E-6 : f32
    %146 = vector.broadcast %cst_74 : f32 to vector<2x1x128xf32>
    %147 = arith.addf %143, %146 : vector<2x1x128xf32>
    %148 = math.rsqrt %147 : vector<2x1x128xf32>
    %149 = vector.broadcast %148 : vector<2x1x128xf32> to vector<2x8x128xf32>
    %150 = arith.mulf %145, %149 : vector<2x8x128xf32>
    %151 = vector.shape_cast %129 : vector<1x128xf32> to vector<1x1x128xf32>
    %152 = vector.broadcast %151 : vector<1x1x128xf32> to vector<2x8x128xf32>
    %153 = arith.mulf %150, %152 : vector<2x8x128xf32>
    %154 = vector.shape_cast %131 : vector<1x128xf32> to vector<1x1x128xf32>
    %155 = vector.broadcast %154 : vector<1x1x128xf32> to vector<2x8x128xf32>
    %156 = arith.addf %153, %155 : vector<2x8x128xf32>
    %157 = vector.shape_cast %156 : vector<2x8x128xf32> to vector<16x128xf32>
    %158 = arith.mulf %157, %157 : vector<16x128xf32>
    %cst_75 = arith.constant dense<0.000000e+00> : vector<16xf32>
    %159 = vector.multi_reduction <add>, %158, %cst_75 [1] : vector<16x128xf32> to vector<16xf32>
    %160 = vector.shape_cast %159 : vector<16xf32> to vector<16x1xf32>
    %161 = math.sqrt %160 : vector<16x1xf32>
    %cst_76 = arith.constant 9.99999996E-13 : f32
    %162 = vector.broadcast %cst_76 : f32 to vector<16x1xf32>
    %163 = arith.maximumf %161, %162 : vector<16x1xf32>
    %164 = vector.broadcast %163 : vector<16x1xf32> to vector<16x128xf32>
    %165 = arith.divf %157, %164 : vector<16x128xf32>
    %166 = vector.shape_cast %157 : vector<16x128xf32> to vector<2x8x128xf32>
    %167 = vector.shape_cast %165 : vector<16x128xf32> to vector<2x8x128xf32>
    %168 = vector.extract_strided_slice %166 {offsets = [0, 0, 0], sizes = [1, 8, 128], strides = [1, 1, 1]} : vector<2x8x128xf32> to vector<1x8x128xf32>
    %169 = vector.shape_cast %168 : vector<1x8x128xf32> to vector<8x128xf32>
    %170 = vector.extract_strided_slice %166 {offsets = [1, 0, 0], sizes = [1, 8, 128], strides = [1, 1, 1]} : vector<2x8x128xf32> to vector<1x8x128xf32>
    %171 = vector.shape_cast %170 : vector<1x8x128xf32> to vector<8x128xf32>
    %172 = vector.extract_strided_slice %167 {offsets = [0, 0, 0], sizes = [1, 8, 128], strides = [1, 1, 1]} : vector<2x8x128xf32> to vector<1x8x128xf32>
    %173 = vector.shape_cast %172 : vector<1x8x128xf32> to vector<8x128xf32>
    %174 = vector.extract_strided_slice %167 {offsets = [1, 0, 0], sizes = [1, 8, 128], strides = [1, 1, 1]} : vector<2x8x128xf32> to vector<1x8x128xf32>
    %175 = vector.shape_cast %174 : vector<1x8x128xf32> to vector<8x128xf32>
    %cst_77 = arith.constant dense<0.000000e+00> : vector<8x8xf32>
    %176 = tpu.matmul %173, %175, %cst_77 {dimension_numbers = #tpu.dot_dimension_numbers<[1], [1], [0], [0], [0, 0, 1, 0], [], []>} : vector<8x128xf32>, vector<8x128xf32>, vector<8x8xf32> -> vector<8x8xf32>
    %cst_78 = arith.constant 2.000000e+00 : f32
    %177 = vector.broadcast %cst_78 : f32 to vector<8x8xf32>
    %178 = arith.mulf %177, %176 : vector<8x8xf32>
    %cst_79 = arith.constant 2.000000e+00 : f32
    %179 = vector.broadcast %cst_79 : f32 to vector<8x8xf32>
    %180 = arith.subf %179, %178 : vector<8x8xf32>
    %cst_80 = arith.constant dense<0.000000e+00> : vector<8x8xf32>
    %181 = tpu.matmul %175, %173, %cst_80 {dimension_numbers = #tpu.dot_dimension_numbers<[1], [1], [0], [0], [0, 0, 1, 0], [], []>} : vector<8x128xf32>, vector<8x128xf32>, vector<8x8xf32> -> vector<8x8xf32>
    %cst_81 = arith.constant 2.000000e+00 : f32
    %182 = vector.broadcast %cst_81 : f32 to vector<8x8xf32>
    %183 = arith.mulf %182, %181 : vector<8x8xf32>
    %cst_82 = arith.constant 2.000000e+00 : f32
    %184 = vector.broadcast %cst_82 : f32 to vector<8x8xf32>
    %185 = arith.subf %184, %183 : vector<8x8xf32>
    %cst_83 = arith.constant dense<0x7F800000> : vector<8xf32>
    %186 = vector.multi_reduction <minimumf>, %180, %cst_83 [1] : vector<8x8xf32> to vector<8xf32>
    %187 = vector.shape_cast %186 : vector<8xf32> to vector<8x1xf32>
    %188 = tpu.iota {dimensions = array<i32: 1>} : vector<8x8xi32>
    %189 = vector.broadcast %187 : vector<8x1xf32> to vector<8x8xf32>
    %190 = arith.cmpf ole, %180, %189 : vector<8x8xf32>
    %c8_i32 = arith.constant 8 : i32
    %191 = vector.broadcast %c8_i32 : i32 to vector<8x8xi32>
    %192 = arith.select %190, %188, %191 : vector<8x8xi1>, vector<8x8xi32>
    %cst_84 = arith.constant dense<2147483647> : vector<8xi32>
    %193 = vector.multi_reduction <minsi>, %192, %cst_84 [1] : vector<8x8xi32> to vector<8xi32>
    %194 = vector.shape_cast %193 : vector<8xi32> to vector<8x1xi32>
    %195 = vector.broadcast %194 : vector<8x1xi32> to vector<8x8xi32>
    %196 = arith.cmpi eq, %188, %195 : vector<8x8xi32>
    %197 = arith.extui %196 : vector<8x8xi1> to vector<8x8xi32>
    %198 = arith.sitofp %197 : vector<8x8xi32> to vector<8x8xf32>
    %cst_85 = arith.constant dense<0.000000e+00> : vector<8x128xf32>
    %199 = tpu.matmul %198, %169, %cst_85 {dimension_numbers = #tpu.dot_dimension_numbers<[1], [0], [0], [1], [0, 0, 1, 1], [], []>} : vector<8x8xf32>, vector<8x128xf32>, vector<8x128xf32> -> vector<8x128xf32>
    %cst_86 = arith.constant dense<0x7F800000> : vector<8xf32>
    %200 = vector.multi_reduction <minimumf>, %185, %cst_86 [1] : vector<8x8xf32> to vector<8xf32>
    %201 = vector.shape_cast %200 : vector<8xf32> to vector<8x1xf32>
    %202 = tpu.iota {dimensions = array<i32: 1>} : vector<8x8xi32>
    %203 = vector.broadcast %201 : vector<8x1xf32> to vector<8x8xf32>
    %204 = arith.cmpf ole, %185, %203 : vector<8x8xf32>
    %c8_i32_87 = arith.constant 8 : i32
    %205 = vector.broadcast %c8_i32_87 : i32 to vector<8x8xi32>
    %206 = arith.select %204, %202, %205 : vector<8x8xi1>, vector<8x8xi32>
    %cst_88 = arith.constant dense<2147483647> : vector<8xi32>
    %207 = vector.multi_reduction <minsi>, %206, %cst_88 [1] : vector<8x8xi32> to vector<8xi32>
    %208 = vector.shape_cast %207 : vector<8xi32> to vector<8x1xi32>
    %209 = vector.broadcast %208 : vector<8x1xi32> to vector<8x8xi32>
    %210 = arith.cmpi eq, %202, %209 : vector<8x8xi32>
    %211 = arith.extui %210 : vector<8x8xi1> to vector<8x8xi32>
    %212 = arith.sitofp %211 : vector<8x8xi32> to vector<8x8xf32>
    %cst_89 = arith.constant dense<0.000000e+00> : vector<8x128xf32>
    %213 = tpu.matmul %212, %171, %cst_89 {dimension_numbers = #tpu.dot_dimension_numbers<[1], [0], [0], [1], [0, 0, 1, 1], [], []>} : vector<8x8xf32>, vector<8x128xf32>, vector<8x128xf32> -> vector<8x128xf32>
    %c0_90 = arith.constant 0 : index
    %c0_91 = arith.constant 0 : index
    %c0_92 = arith.constant 0 : index
    %214 = vector.load %arg18[%c0_90, %c0_91, %c0_92] : memref<1x128x128xf32, #tpu.memory_space<vmem>>, vector<1x128x128xf32>
    %215 = vector.shape_cast %214 : vector<1x128x128xf32> to vector<128x128xf32>
    %cst_93 = arith.constant dense<0.000000e+00> : vector<16x128xf32>
    %216 = tpu.matmul %157, %215, %cst_93 {dimension_numbers = #tpu.dot_dimension_numbers<[1], [0], [0], [1], [0, 0, 1, 1], [], []>} : vector<16x128xf32>, vector<128x128xf32>, vector<16x128xf32> -> vector<16x128xf32>
    %c0_94 = arith.constant 0 : index
    %c0_95 = arith.constant 0 : index
    %c0_96 = arith.constant 0 : index
    %217 = vector.load %arg19[%c0_94, %c0_95, %c0_96] : memref<1x1x128xf32, #tpu.memory_space<vmem>>, vector<1x1x128xf32>
    %218 = vector.shape_cast %217 : vector<1x1x128xf32> to vector<1x128xf32>
    %219 = vector.broadcast %218 : vector<1x128xf32> to vector<16x128xf32>
    %220 = arith.addf %216, %219 : vector<16x128xf32>
    %c0_97 = arith.constant 0 : index
    %c0_98 = arith.constant 0 : index
    %c0_99 = arith.constant 0 : index
    %221 = vector.load %arg20[%c0_97, %c0_98, %c0_99] : memref<1x1x128xf32, #tpu.memory_space<vmem>>, vector<1x1x128xf32>
    %222 = vector.shape_cast %221 : vector<1x1x128xf32> to vector<1x128xf32>
    %c0_100 = arith.constant 0 : index
    %c0_101 = arith.constant 0 : index
    %c0_102 = arith.constant 0 : index
    %223 = vector.load %arg21[%c0_100, %c0_101, %c0_102] : memref<1x1x128xf32, #tpu.memory_space<vmem>>, vector<1x1x128xf32>
    %224 = vector.shape_cast %223 : vector<1x1x128xf32> to vector<1x128xf32>
    %225 = vector.shape_cast %220 : vector<16x128xf32> to vector<2x8x128xf32>
    %cst_103 = arith.constant dense<0.000000e+00> : vector<2x128xf32>
    %226 = vector.multi_reduction <add>, %225, %cst_103 [1] : vector<2x8x128xf32> to vector<2x128xf32>
    %227 = vector.shape_cast %226 : vector<2x128xf32> to vector<2x1x128xf32>
    %cst_104 = arith.constant 8.000000e+00 : f32
    %228 = vector.broadcast %cst_104 : f32 to vector<2x1x128xf32>
    %229 = arith.divf %227, %228 : vector<2x1x128xf32>
    %230 = vector.broadcast %229 : vector<2x1x128xf32> to vector<2x8x128xf32>
    %231 = arith.subf %225, %230 : vector<2x8x128xf32>
    %232 = arith.mulf %231, %231 : vector<2x8x128xf32>
    %cst_105 = arith.constant dense<0.000000e+00> : vector<2x128xf32>
    %233 = vector.multi_reduction <add>, %232, %cst_105 [1] : vector<2x8x128xf32> to vector<2x128xf32>
    %234 = vector.shape_cast %233 : vector<2x128xf32> to vector<2x1x128xf32>
    %cst_106 = arith.constant 8.000000e+00 : f32
    %235 = vector.broadcast %cst_106 : f32 to vector<2x1x128xf32>
    %236 = arith.divf %234, %235 : vector<2x1x128xf32>
    %237 = vector.broadcast %229 : vector<2x1x128xf32> to vector<2x8x128xf32>
    %238 = arith.subf %225, %237 : vector<2x8x128xf32>
    %cst_107 = arith.constant 9.99999974E-6 : f32
    %239 = vector.broadcast %cst_107 : f32 to vector<2x1x128xf32>
    %240 = arith.addf %236, %239 : vector<2x1x128xf32>
    %241 = math.rsqrt %240 : vector<2x1x128xf32>
    %242 = vector.broadcast %241 : vector<2x1x128xf32> to vector<2x8x128xf32>
    %243 = arith.mulf %238, %242 : vector<2x8x128xf32>
    %244 = vector.shape_cast %222 : vector<1x128xf32> to vector<1x1x128xf32>
    %245 = vector.broadcast %244 : vector<1x1x128xf32> to vector<2x8x128xf32>
    %246 = arith.mulf %243, %245 : vector<2x8x128xf32>
    %247 = vector.shape_cast %224 : vector<1x128xf32> to vector<1x1x128xf32>
    %248 = vector.broadcast %247 : vector<1x1x128xf32> to vector<2x8x128xf32>
    %249 = arith.addf %246, %248 : vector<2x8x128xf32>
    %250 = vector.shape_cast %249 : vector<2x8x128xf32> to vector<16x128xf32>
    %cst_108 = arith.constant 0.000000e+00 : f32
    %251 = vector.broadcast %cst_108 : f32 to vector<16x128xf32>
    %252 = arith.maximumf %250, %251 : vector<16x128xf32>
    %c0_109 = arith.constant 0 : index
    %c0_110 = arith.constant 0 : index
    %c0_111 = arith.constant 0 : index
    %253 = vector.load %arg22[%c0_109, %c0_110, %c0_111] : memref<1x128x128xf32, #tpu.memory_space<vmem>>, vector<1x128x128xf32>
    %254 = vector.shape_cast %253 : vector<1x128x128xf32> to vector<128x128xf32>
    %cst_112 = arith.constant dense<0.000000e+00> : vector<16x128xf32>
    %255 = tpu.matmul %252, %254, %cst_112 {dimension_numbers = #tpu.dot_dimension_numbers<[1], [0], [0], [1], [0, 0, 1, 1], [], []>} : vector<16x128xf32>, vector<128x128xf32>, vector<16x128xf32> -> vector<16x128xf32>
    %c0_113 = arith.constant 0 : index
    %c0_114 = arith.constant 0 : index
    %c0_115 = arith.constant 0 : index
    %256 = vector.load %arg23[%c0_113, %c0_114, %c0_115] : memref<1x1x128xf32, #tpu.memory_space<vmem>>, vector<1x1x128xf32>
    %257 = vector.shape_cast %256 : vector<1x1x128xf32> to vector<1x128xf32>
    %258 = vector.broadcast %257 : vector<1x128xf32> to vector<16x128xf32>
    %259 = arith.addf %255, %258 : vector<16x128xf32>
    %c0_116 = arith.constant 0 : index
    %c0_117 = arith.constant 0 : index
    %c0_118 = arith.constant 0 : index
    %260 = vector.load %arg24[%c0_116, %c0_117, %c0_118] : memref<2x8x128xf32, #tpu.memory_space<vmem>>, vector<2x8x128xf32>
    tpu.vector_store %arg24[%c0_116, %c0_117, %c0_118], %166 {strides = array<i32>} : memref<2x8x128xf32, #tpu.memory_space<vmem>>, vector<2x8x128xf32>,
    %c0_119 = arith.constant 0 : index
    %c0_120 = arith.constant 0 : index
    %c0_121 = arith.constant 0 : index
    %261 = vector.load %arg25[%c0_119, %c0_120, %c0_121] : memref<2x8x128xf32, #tpu.memory_space<vmem>>, vector<1x8x128xf32>
    %262 = vector.shape_cast %261 : vector<1x8x128xf32> to vector<8x128xf32>
    %263 = vector.shape_cast %199 : vector<8x128xf32> to vector<1x8x128xf32>
    tpu.vector_store %arg25[%c0_119, %c0_120, %c0_121], %263 {strides = array<i32>} : memref<2x8x128xf32, #tpu.memory_space<vmem>>, vector<1x8x128xf32>,
    %c1 = arith.constant 1 : index
    %c0_122 = arith.constant 0 : index
    %c0_123 = arith.constant 0 : index
    %264 = vector.load %arg25[%c1, %c0_122, %c0_123] : memref<2x8x128xf32, #tpu.memory_space<vmem>>, vector<1x8x128xf32>
    %265 = vector.shape_cast %264 : vector<1x8x128xf32> to vector<8x128xf32>
    %266 = vector.shape_cast %213 : vector<8x128xf32> to vector<1x8x128xf32>
    tpu.vector_store %arg25[%c1, %c0_122, %c0_123], %266 {strides = array<i32>} : memref<2x8x128xf32, #tpu.memory_space<vmem>>, vector<1x8x128xf32>,
    %267 = vector.shape_cast %259 : vector<16x128xf32> to vector<2x8x128xf32>
    %c0_124 = arith.constant 0 : index
    %c0_125 = arith.constant 0 : index
    %c0_126 = arith.constant 0 : index
    %268 = vector.load %arg26[%c0_124, %c0_125, %c0_126] : memref<2x8x128xf32, #tpu.memory_space<vmem>>, vector<2x8x128xf32>
    tpu.vector_store %arg26[%c0_124, %c0_125, %c0_126], %267 {strides = array<i32>} : memref<2x8x128xf32, #tpu.memory_space<vmem>>, vector<2x8x128xf32>,
    return
  }
  func.func @transform_0(%arg0: i32) -> (i32, i32, i32, i32) {
    %c0_i32 = arith.constant 0 : i32
    %c0_i32_0 = arith.constant 0 : i32
    %c0_i32_1 = arith.constant 0 : i32
    %c0_i32_2 = arith.constant 0 : i32
    return %arg0, %c0_i32, %c0_i32_0, %c0_i32_1 : i32, i32, i32, i32
  }
  func.func @transform_1(%arg0: i32) -> (i32, i32, i32) {
    %c0_i32 = arith.constant 0 : i32
    %c0_i32_0 = arith.constant 0 : i32
    %c0_i32_1 = arith.constant 0 : i32
    return %arg0, %c0_i32, %c0_i32_0 : i32, i32, i32
  }
  func.func @transform_2(%arg0: i32) -> (i32, i32, i32) {
    %c0_i32 = arith.constant 0 : i32
    %c0_i32_0 = arith.constant 0 : i32
    %c0_i32_1 = arith.constant 0 : i32
    return %arg0, %c0_i32, %c0_i32_0 : i32, i32, i32
  }
  func.func @transform_3(%arg0: i32) -> (i32, i32, i32) {
    %c0_i32 = arith.constant 0 : i32
    %c0_i32_0 = arith.constant 0 : i32
    %c0_i32_1 = arith.constant 0 : i32
    return %arg0, %c0_i32, %c0_i32_0 : i32, i32, i32
  }
  func.func @transform_4(%arg0: i32) -> (i32, i32, i32) {
    %c0_i32 = arith.constant 0 : i32
    %c0_i32_0 = arith.constant 0 : i32
    %c0_i32_1 = arith.constant 0 : i32
    return %arg0, %c0_i32, %c0_i32_0 : i32, i32, i32
  }
  func.func @transform_5(%arg0: i32) -> (i32, i32, i32) {
    %c0_i32 = arith.constant 0 : i32
    %c0_i32_0 = arith.constant 0 : i32
    %c0_i32_1 = arith.constant 0 : i32
    return %arg0, %c0_i32, %c0_i32_0 : i32, i32, i32
  }
  func.func @transform_6(%arg0: i32) -> (i32, i32, i32) {
    %c0_i32 = arith.constant 0 : i32
    %c0_i32_0 = arith.constant 0 : i32
    %c0_i32_1 = arith.constant 0 : i32
    return %arg0, %c0_i32, %c0_i32_0 : i32, i32, i32
  }
  func.func @transform_7(%arg0: i32) -> (i32, i32, i32) {
    %c0_i32 = arith.constant 0 : i32
    %c0_i32_0 = arith.constant 0 : i32
    %c0_i32_1 = arith.constant 0 : i32
    return %arg0, %c0_i32, %c0_i32_0 : i32, i32, i32
  }
  func.func @transform_8(%arg0: i32) -> (i32, i32, i32) {
    %c0_i32 = arith.constant 0 : i32
    %c0_i32_0 = arith.constant 0 : i32
    %c0_i32_1 = arith.constant 0 : i32
    return %arg0, %c0_i32, %c0_i32_0 : i32, i32, i32
  }
  func.func @transform_9(%arg0: i32) -> (i32, i32, i32) {
    %c0_i32 = arith.constant 0 : i32
    %c0_i32_0 = arith.constant 0 : i32
    %c0_i32_1 = arith.constant 0 : i32
    return %arg0, %c0_i32, %c0_i32_0 : i32, i32, i32
  }
  func.func @transform_10(%arg0: i32) -> (i32, i32, i32) {
    %c0_i32 = arith.constant 0 : i32
    %c0_i32_0 = arith.constant 0 : i32
    %c0_i32_1 = arith.constant 0 : i32
    return %arg0, %c0_i32, %c0_i32_0 : i32, i32, i32
  }
  func.func @transform_11(%arg0: i32) -> (i32, i32, i32) {
    %c0_i32 = arith.constant 0 : i32
    %c0_i32_0 = arith.constant 0 : i32
    %c0_i32_1 = arith.constant 0 : i32
    return %arg0, %c0_i32, %c0_i32_0 : i32, i32, i32
  }
  func.func @transform_12(%arg0: i32) -> (i32, i32, i32) {
    %c0_i32 = arith.constant 0 : i32
    %c0_i32_0 = arith.constant 0 : i32
    %c0_i32_1 = arith.constant 0 : i32
    return %arg0, %c0_i32, %c0_i32_0 : i32, i32, i32
  }
  func.func @transform_13(%arg0: i32) -> (i32, i32, i32) {
    %c0_i32 = arith.constant 0 : i32
    %c0_i32_0 = arith.constant 0 : i32
    %c0_i32_1 = arith.constant 0 : i32
    return %arg0, %c0_i32, %c0_i32_0 : i32, i32, i32
  }
  func.func @transform_14(%arg0: i32) -> (i32, i32, i32) {
    %c0_i32 = arith.constant 0 : i32
    %c0_i32_0 = arith.constant 0 : i32
    %c0_i32_1 = arith.constant 0 : i32
    return %arg0, %c0_i32, %c0_i32_0 : i32, i32, i32
  }
  func.func @transform_15(%arg0: i32) -> (i32, i32, i32) {
    %c0_i32 = arith.constant 0 : i32
    %c0_i32_0 = arith.constant 0 : i32
    %c0_i32_1 = arith.constant 0 : i32
    return %arg0, %c0_i32, %c0_i32_0 : i32, i32, i32
  }
  func.func @transform_16(%arg0: i32) -> (i32, i32, i32) {
    %c0_i32 = arith.constant 0 : i32
    %c0_i32_0 = arith.constant 0 : i32
    %c0_i32_1 = arith.constant 0 : i32
    return %arg0, %c0_i32, %c0_i32_0 : i32, i32, i32
  }
  func.func @transform_17(%arg0: i32) -> (i32, i32, i32) {
    %c0_i32 = arith.constant 0 : i32
    %c0_i32_0 = arith.constant 0 : i32
    %c0_i32_1 = arith.constant 0 : i32
    return %arg0, %c0_i32, %c0_i32_0 : i32, i32, i32
  }
  func.func @transform_18(%arg0: i32) -> (i32, i32, i32) {
    %c0_i32 = arith.constant 0 : i32
    %c0_i32_0 = arith.constant 0 : i32
    %c0_i32_1 = arith.constant 0 : i32
    return %arg0, %c0_i32, %c0_i32_0 : i32, i32, i32
  }
  func.func @transform_19(%arg0: i32) -> (i32, i32, i32) {
    %c0_i32 = arith.constant 0 : i32
    %c0_i32_0 = arith.constant 0 : i32
    %c0_i32_1 = arith.constant 0 : i32
    return %arg0, %c0_i32, %c0_i32_0 : i32, i32, i32
  }
  func.func @transform_20(%arg0: i32) -> (i32, i32, i32) {
    %c0_i32 = arith.constant 0 : i32
    %c0_i32_0 = arith.constant 0 : i32
    %c0_i32_1 = arith.constant 0 : i32
    return %arg0, %c0_i32, %c0_i32_0 : i32, i32, i32
  }
  func.func @transform_21(%arg0: i32) -> (i32, i32, i32) {
    %c0_i32 = arith.constant 0 : i32
    %c0_i32_0 = arith.constant 0 : i32
    %c0_i32_1 = arith.constant 0 : i32
    return %arg0, %c0_i32, %c0_i32_0 : i32, i32, i32
  }
  func.func @transform_22(%arg0: i32) -> (i32, i32, i32) {
    %c0_i32 = arith.constant 0 : i32
    %c0_i32_0 = arith.constant 0 : i32
    %c0_i32_1 = arith.constant 0 : i32
    return %arg0, %c0_i32, %c0_i32_0 : i32, i32, i32
  }
  func.func @transform_23(%arg0: i32) -> (i32, i32, i32) {
    %c0_i32 = arith.constant 0 : i32
    %c0_i32_0 = arith.constant 0 : i32
    %c0_i32_1 = arith.constant 0 : i32
    return %arg0, %c0_i32, %c0_i32_0 : i32, i32, i32
  }
  func.func @transform_24(%arg0: i32) -> (i32, i32, i32) {
    %c0_i32 = arith.constant 0 : i32
    %c0_i32_0 = arith.constant 0 : i32
    %c0_i32_1 = arith.constant 0 : i32
    return %arg0, %c0_i32, %c0_i32_0 : i32, i32, i32
  }
  func.func @transform_25(%arg0: i32) -> (i32, i32, i32) {
    %c0_i32 = arith.constant 0 : i32
    %c0_i32_0 = arith.constant 0 : i32
    %c0_i32_1 = arith.constant 0 : i32
    return %arg0, %c0_i32, %c0_i32_0 : i32, i32, i32
  }
}

</mosaic_0001>

<llo_original>
// kernel: skeleton_simnn_forward.1
$region0: #{skeleton_simnn_forward.1}
  #allocation0 [shape = 'u32[]', space=smem, size = 0x4, offset = 0x4, fixed_abs, tag = 'smem constant byte address 0x4 - core index']
  #allocation1 [shape = 'u32[144,128]{1,0:T(1,128)}', space=vmem, size = 0x12000, scoped, tag = 'internal scratch']
  %s0 = inlined_call_operand.vmem [shape: f32[4,8,3,128], index: 0, kind: input, shape index: {}]
  %s1 = inlined_call_operand.vmem [shape: f32[2,64,3], index: 1, kind: input, shape index: {}]
  %s2 = inlined_call_operand.vmem [shape: f32[2,64,1], index: 2, kind: input, shape index: {}]
  %s3 = inlined_call_operand.vmem [shape: f32[2,64,256], index: 3, kind: input, shape index: {}]
  %s4 = inlined_call_operand.vmem [shape: f32[2,1,256], index: 4, kind: input, shape index: {}]
  %s5 = inlined_call_operand.vmem [shape: f32[2,256,256], index: 5, kind: input, shape index: {}]
  %s6 = inlined_call_operand.vmem [shape: f32[2,1,256], index: 6, kind: input, shape index: {}]
  %s7 = inlined_call_operand.vmem [shape: f32[2,1,256], index: 7, kind: input, shape index: {}]
  %s8 = inlined_call_operand.vmem [shape: f32[2,1,256], index: 8, kind: input, shape index: {}]
  %s9 = inlined_call_operand.vmem [shape: f32[2,256,256], index: 9, kind: input, shape index: {}]
  %s10 = inlined_call_operand.vmem [shape: f32[2,1,256], index: 10, kind: input, shape index: {}]
  %s11 = inlined_call_operand.vmem [shape: f32[2,1,256], index: 11, kind: input, shape index: {}]
  %s12 = inlined_call_operand.vmem [shape: f32[2,1,256], index: 12, kind: input, shape index: {}]
  %s13 = inlined_call_operand.vmem [shape: f32[2,256,128], index: 13, kind: input, shape index: {}]
  %s14 = inlined_call_operand.vmem [shape: f32[2,1,128], index: 14, kind: input, shape index: {}]
  %s15 = inlined_call_operand.vmem [shape: f32[2,1,128], index: 15, kind: input, shape index: {}]
  %s16 = inlined_call_operand.vmem [shape: f32[2,1,128], index: 16, kind: input, shape index: {}]
  %s17 = inlined_call_operand.vmem [shape: f32[2,128,128], index: 17, kind: input, shape index: {}]
  %s18 = inlined_call_operand.vmem [shape: f32[2,1,128], index: 18, kind: input, shape index: {}]
  %s19 = inlined_call_operand.vmem [shape: f32[2,1,128], index: 19, kind: input, shape index: {}]
  %s20 = inlined_call_operand.vmem [shape: f32[2,1,128], index: 20, kind: input, shape index: {}]
  %s21 = inlined_call_operand.vmem [shape: f32[2,128,128], index: 21, kind: input, shape index: {}]
  %s22 = inlined_call_operand.vmem [shape: f32[2,1,128], index: 22, kind: input, shape index: {}]
  %s23 = inlined_call_operand.vmem [shape: f32[4,8,128], index: 23, kind: output, shape index: {0}]
  %s24 = inlined_call_operand.vmem [shape: f32[4,8,128], index: 24, kind: output, shape index: {1}]
  %s25 = inlined_call_operand.vmem [shape: f32[4,8,128], index: 25, kind: output, shape index: {2}]
  %26 = xla_tuple %s23, %s24, %s25
  %s27 = sld [smem:[#allocation0]]
  $region141: #{skeleton_simnn_forward.1} parent=0
    _
  %s29 = ssub.s32 1, %s27
  %s30 = scalar_select 0, %s29, %s27
  loop: start=0, step=1, limit=4
  $region2: #{skeleton_simnn_forward.1} parent=0 // loop_pre_header
    _
  $region3: #{skeleton_simnn_forward.1} parent=0 // loop_header
    %s32 = sphi 0, %s36
    %p33 = scmp.ge.s32.totalorder %s32, 4
    %s42 = sphi 0, %s44
    %s45 = sphi 0, %s42
    %s46 = sphi 0, %s45
    %s62 = sphi 0, %s46
    %s68 = sphi 0, %s70
    %s71 = sphi 0, %s68
    %s72 = sphi 0, %s71
    %s88 = sphi 0, %s72
    %s94 = sphi 0, %s96
    %s97 = sphi 0, %s94
    %s98 = sphi 0, %s97
    %s114 = sphi 0, %s98
    %s120 = sphi 0, %s122
    %s123 = sphi 0, %s120
    %s124 = sphi 0, %s123
    %s140 = sphi 0, %s124
    %s146 = sphi 0, %s148
    %s149 = sphi 0, %s146
    %s150 = sphi 0, %s149
    %s166 = sphi 0, %s150
    %s172 = sphi 0, %s174
    %s175 = sphi 0, %s172
    %s176 = sphi 0, %s175
    %s192 = sphi 0, %s176
    %s198 = sphi 0, %s200
    %s201 = sphi 0, %s198
    %s202 = sphi 0, %s201
    %s218 = sphi 0, %s202
    %s224 = sphi 0, %s226
    %s227 = sphi 0, %s224
    %s228 = sphi 0, %s227
    %s244 = sphi 0, %s228
    %s250 = sphi 0, %s252
    %s253 = sphi 0, %s250
    %s254 = sphi 0, %s253
    %s270 = sphi 0, %s254
    %s276 = sphi 0, %s278
    %s279 = sphi 0, %s276
    %s280 = sphi 0, %s279
    %s296 = sphi 0, %s280
    %s302 = sphi 0, %s304
    %s305 = sphi 0, %s302
    %s306 = sphi 0, %s305
    %s322 = sphi 0, %s306
    %s328 = sphi 0, %s330
    %s331 = sphi 0, %s328
    %s332 = sphi 0, %s331
    %s348 = sphi 0, %s332
    %s354 = sphi 0, %s356
    %s357 = sphi 0, %s354
    %s358 = sphi 0, %s357
    %s374 = sphi 0, %s358
    %s380 = sphi 0, %s382
    %s383 = sphi 0, %s380
    %s384 = sphi 0, %s383
    %s400 = sphi 0, %s384
    %s406 = sphi 0, %s408
    %s409 = sphi 0, %s406
    %s410 = sphi 0, %s409
    %s426 = sphi 0, %s410
    %s432 = sphi 0, %s434
    %s435 = sphi 0, %s432
    %s436 = sphi 0, %s435
    %s452 = sphi 0, %s436
    %s458 = sphi 0, %s460
    %s461 = sphi 0, %s458
    %s462 = sphi 0, %s461
    %s478 = sphi 0, %s462
    %s484 = sphi 0, %s486
    %s487 = sphi 0, %s484
    %s488 = sphi 0, %s487
    %s504 = sphi 0, %s488
    %s510 = sphi 0, %s512
    %s513 = sphi 0, %s510
    %s514 = sphi 0, %s513
    %s530 = sphi 0, %s514
    %s536 = sphi 0, %s538
    %s539 = sphi 0, %s536
    %s540 = sphi 0, %s539
    %s556 = sphi 0, %s540
    %s562 = sphi 0, %s564
    %s565 = sphi 0, %s562
    %s566 = sphi 0, %s565
    %s582 = sphi 0, %s566
    %s588 = sphi 0, %s590
    %s591 = sphi 0, %s588
    %s592 = sphi 0, %s591
    %s608 = sphi 0, %s592
    %s614 = sphi 0, %s616
    %s617 = sphi 0, %s614
    %s618 = sphi 0, %s617
    %s634 = sphi 0, %s618
    %s640 = sphi 0, %s642
    %s643 = sphi 0, %s640
    %s644 = sphi 0, %s643
    %s660 = sphi 0, %s644
    %s666 = sphi 0, %s668
    %s669 = sphi 0, %s666
    %s670 = sphi 0, %s669
    %s686 = sphi 0, %s670
    %s692 = sphi 0, %s694
    %s695 = sphi 0, %s692
    %s696 = sphi 0, %s695
    %s712 = sphi 0, %s696
  $region4: #{skeleton_simnn_forward.1} parent=0 // loop_header_branch
    %35 = sbr.rel (%p33) target = $region8
  $region5: #{skeleton_simnn_forward.1} parent=0 // loop_body
    %s37 = ssub.s32 %s32, 1
    %s38 = ssub.s32 %s32, 2
    %s39 = sadd.s32 %s32, 1
    %s40 = ssub.s32 %s32, %s39
    %p41 = scmp.eq.s32.totalorder %s40, 0
    %s43 = sadd.s32 %s42, 1
    %s44 = scalar_select %p41, %s42, %s43
    %p47 = pneg %p41
    %p48 = scmp.eq.s32.totalorder %s32, 1
    %p49 = por %p47, %p48
    %p50 = scmp.ne.s32.totalorder %s42, %s45
    %p51 = scmp.eq.s32.totalorder %s32, 0
    %p52 = por %p50, %p51
    %p53 = scmp.ne.s32.totalorder %s42, %s45
    %p54 = scmp.eq.s32.totalorder %s37, 1
    %p55 = por %p53, %p54
    %p56 = scmp.ne.s32.totalorder %s45, %s46
    %p57 = scmp.eq.s32.totalorder %s37, 0
    %p58 = por %p56, %p57
    %p59 = scmp.ne.s32.totalorder %s45, %s46
    %p60 = scmp.eq.s32.totalorder %s38, 1
    %p61 = por %p59, %p60
    %p63 = scmp.ne.s32.totalorder %s46, %s62
    %p64 = scmp.eq.s32.totalorder %s38, 0
    %p65 = por %p63, %p64
    %s66 = ssub.s32 %s32, %s39
    %p67 = scmp.eq.s32.totalorder %s66, 0
    %s69 = sadd.s32 %s68, 1
    %s70 = scalar_select %p67, %s68, %s69
    %p73 = pneg %p67
    %p74 = scmp.eq.s32.totalorder %s32, 1
    %p75 = por %p73, %p74
    %p76 = scmp.ne.s32.totalorder %s68, %s71
    %p77 = scmp.eq.s32.totalorder %s32, 0
    %p78 = por %p76, %p77
    %p79 = scmp.ne.s32.totalorder %s68, %s71
    %p80 = scmp.eq.s32.totalorder %s37, 1
    %p81 = por %p79, %p80
    %p82 = scmp.ne.s32.totalorder %s71, %s72
    %p83 = scmp.eq.s32.totalorder %s37, 0
    %p84 = por %p82, %p83
    %p85 = scmp.ne.s32.totalorder %s71, %s72
    %p86 = scmp.eq.s32.totalorder %s38, 1
    %p87 = por %p85, %p86
    %p89 = scmp.ne.s32.totalorder %s72, %s88
    %p90 = scmp.eq.s32.totalorder %s38, 0
    %p91 = por %p89, %p90
    %s92 = ssub.s32 %s32, %s39
    %p93 = scmp.eq.s32.totalorder %s92, 0
    %s95 = sadd.s32 %s94, 1
    %s96 = scalar_select %p93, %s94, %s95
    %p99 = pneg %p93
    %p100 = scmp.eq.s32.totalorder %s32, 1
    %p101 = por %p99, %p100
    %p102 = scmp.ne.s32.totalorder %s94, %s97
    %p103 = scmp.eq.s32.totalorder %s32, 0
    %p104 = por %p102, %p103
    %p105 = scmp.ne.s32.totalorder %s94, %s97
    %p106 = scmp.eq.s32.totalorder %s37, 1
    %p107 = por %p105, %p106
    %p108 = scmp.ne.s32.totalorder %s97, %s98
    %p109 = scmp.eq.s32.totalorder %s37, 0
    %p110 = por %p108, %p109
    %p111 = scmp.ne.s32.totalorder %s97, %s98
    %p112 = scmp.eq.s32.totalorder %s38, 1
    %p113 = por %p111, %p112
    %p115 = scmp.ne.s32.totalorder %s98, %s114
    %p116 = scmp.eq.s32.totalorder %s38, 0
    %p117 = por %p115, %p116
    %s118 = ssub.s32 %s32, %s39
    %p119 = scmp.eq.s32.totalorder %s118, 0
    %s121 = sadd.s32 %s120, 1
    %s122 = scalar_select %p119, %s120, %s121
    %p125 = pneg %p119
    %p126 = scmp.eq.s32.totalorder %s32, 1
    %p127 = por %p125, %p126
    %p128 = scmp.ne.s32.totalorder %s120, %s123
    %p129 = scmp.eq.s32.totalorder %s32, 0
    %p130 = por %p128, %p129
    %p131 = scmp.ne.s32.totalorder %s120, %s123
    %p132 = scmp.eq.s32.totalorder %s37, 1
    %p133 = por %p131, %p132
    %p134 = scmp.ne.s32.totalorder %s123, %s124
    %p135 = scmp.eq.s32.totalorder %s37, 0
    %p136 = por %p134, %p135
    %p137 = scmp.ne.s32.totalorder %s123, %s124
    %p138 = scmp.eq.s32.totalorder %s38, 1
    %p139 = por %p137, %p138
    %p141 = scmp.ne.s32.totalorder %s124, %s140
    %p142 = scmp.eq.s32.totalorder %s38, 0
    %p143 = por %p141, %p142
    %s144 = ssub.s32 %s32, %s39
    %p145 = scmp.eq.s32.totalorder %s144, 0
    %s147 = sadd.s32 %s146, 1
    %s148 = scalar_select %p145, %s146, %s147
    %p151 = pneg %p145
    %p152 = scmp.eq.s32.totalorder %s32, 1
    %p153 = por %p151, %p152
    %p154 = scmp.ne.s32.totalorder %s146, %s149
    %p155 = scmp.eq.s32.totalorder %s32, 0
    %p156 = por %p154, %p155
    %p157 = scmp.ne.s32.totalorder %s146, %s149
    %p158 = scmp.eq.s32.totalorder %s37, 1
    %p159 = por %p157, %p158
    %p160 = scmp.ne.s32.totalorder %s149, %s150
    %p161 = scmp.eq.s32.totalorder %s37, 0
    %p162 = por %p160, %p161
    %p163 = scmp.ne.s32.totalorder %s149, %s150
    %p164 = scmp.eq.s32.totalorder %s38, 1
    %p165 = por %p163, %p164
    %p167 = scmp.ne.s32.totalorder %s150, %s166
    %p168 = scmp.eq.s32.totalorder %s38, 0
    %p169 = por %p167, %p168
    %s170 = ssub.s32 %s32, %s39
    %p171 = scmp.eq.s32.totalorder %s170, 0
    %s173 = sadd.s32 %s172, 1
    %s174 = scalar_select %p171, %s172, %s173
    %p177 = pneg %p171
    %p178 = scmp.eq.s32.totalorder %s32, 1
    %p179 = por %p177, %p178
    %p180 = scmp.ne.s32.totalorder %s172, %s175
    %p181 = scmp.eq.s32.totalorder %s32, 0
    %p182 = por %p180, %p181
    %p183 = scmp.ne.s32.totalorder %s172, %s175
    %p184 = scmp.eq.s32.totalorder %s37, 1
    %p185 = por %p183, %p184
    %p186 = scmp.ne.s32.totalorder %s175, %s176
    %p187 = scmp.eq.s32.totalorder %s37, 0
    %p188 = por %p186, %p187
    %p189 = scmp.ne.s32.totalorder %s175, %s176
    %p190 = scmp.eq.s32.totalorder %s38, 1
    %p191 = por %p189, %p190
    %p193 = scmp.ne.s32.totalorder %s176, %s192
    %p194 = scmp.eq.s32.totalorder %s38, 0
    %p195 = por %p193, %p194
    %s196 = ssub.s32 %s32, %s39
    %p197 = scmp.eq.s32.totalorder %s196, 0
    %s199 = sadd.s32 %s198, 1
    %s200 = scalar_select %p197, %s198, %s199
    %p203 = pneg %p197
    %p204 = scmp.eq.s32.totalorder %s32, 1
    %p205 = por %p203, %p204
    %p206 = scmp.ne.s32.totalorder %s198, %s201
    %p207 = scmp.eq.s32.totalorder %s32, 0
    %p208 = por %p206, %p207
    %p209 = scmp.ne.s32.totalorder %s198, %s201
    %p210 = scmp.eq.s32.totalorder %s37, 1
    %p211 = por %p209, %p210
    %p212 = scmp.ne.s32.totalorder %s201, %s202
    %p213 = scmp.eq.s32.totalorder %s37, 0
    %p214 = por %p212, %p213
    %p215 = scmp.ne.s32.totalorder %s201, %s202
    %p216 = scmp.eq.s32.totalorder %s38, 1
    %p217 = por %p215, %p216
    %p219 = scmp.ne.s32.totalorder %s202, %s218
    %p220 = scmp.eq.s32.totalorder %s38, 0
    %p221 = por %p219, %p220
    %s222 = ssub.s32 %s32, %s39
    %p223 = scmp.eq.s32.totalorder %s222, 0
    %s225 = sadd.s32 %s224, 1
    %s226 = scalar_select %p223, %s224, %s225
    %p229 = pneg %p223
    %p230 = scmp.eq.s32.totalorder %s32, 1
    %p231 = por %p229, %p230
    %p232 = scmp.ne.s32.totalorder %s224, %s227
    %p233 = scmp.eq.s32.totalorder %s32, 0
    %p234 = por %p232, %p233
    %p235 = scmp.ne.s32.totalorder %s224, %s227
    %p236 = scmp.eq.s32.totalorder %s37, 1
    %p237 = por %p235, %p236
    %p238 = scmp.ne.s32.totalorder %s227, %s228
    %p239 = scmp.eq.s32.totalorder %s37, 0
    %p240 = por %p238, %p239
    %p241 = scmp.ne.s32.totalorder %s227, %s228
    %p242 = scmp.eq.s32.totalorder %s38, 1
    %p243 = por %p241, %p242
    %p245 = scmp.ne.s32.totalorder %s228, %s244
    %p246 = scmp.eq.s32.totalorder %s38, 0
    %p247 = por %p245, %p246
    %s248 = ssub.s32 %s32, %s39
    %p249 = scmp.eq.s32.totalorder %s248, 0
    %s251 = sadd.s32 %s250, 1
    %s252 = scalar_select %p249, %s250, %s251
    %p255 = pneg %p249
    %p256 = scmp.eq.s32.totalorder %s32, 1
    %p257 = por %p255, %p256
    %p258 = scmp.ne.s32.totalorder %s250, %s253
    %p259 = scmp.eq.s32.totalorder %s32, 0
    %p260 = por %p258, %p259
    %p261 = scmp.ne.s32.totalorder %s250, %s253
    %p262 = scmp.eq.s32.totalorder %s37, 1
    %p263 = por %p261, %p262
    %p264 = scmp.ne.s32.totalorder %s253, %s254
    %p265 = scmp.eq.s32.totalorder %s37, 0
    %p266 = por %p264, %p265
    %p267 = scmp.ne.s32.totalorder %s253, %s254
    %p268 = scmp.eq.s32.totalorder %s38, 1
    %p269 = por %p267, %p268
    %p271 = scmp.ne.s32.totalorder %s254, %s270
    %p272 = scmp.eq.s32.totalorder %s38, 0
    %p273 = por %p271, %p272
    %s274 = ssub.s32 %s32, %s39
    %p275 = scmp.eq.s32.totalorder %s274, 0
    %s277 = sadd.s32 %s276, 1
    %s278 = scalar_select %p275, %s276, %s277
    %p281 = pneg %p275
    %p282 = scmp.eq.s32.totalorder %s32, 1
    %p283 = por %p281, %p282
    %p284 = scmp.ne.s32.totalorder %s276, %s279
    %p285 = scmp.eq.s32.totalorder %s32, 0
    %p286 = por %p284, %p285
    %p287 = scmp.ne.s32.totalorder %s276, %s279
    %p288 = scmp.eq.s32.totalorder %s37, 1
    %p289 = por %p287, %p288
    %p290 = scmp.ne.s32.totalorder %s279, %s280
    %p291 = scmp.eq.s32.totalorder %s37, 0
    %p292 = por %p290, %p291
    %p293 = scmp.ne.s32.totalorder %s279, %s280
    %p294 = scmp.eq.s32.totalorder %s38, 1
    %p295 = por %p293, %p294
    %p297 = scmp.ne.s32.totalorder %s280, %s296
    %p298 = scmp.eq.s32.totalorder %s38, 0
    %p299 = por %p297, %p298
    %s300 = ssub.s32 %s32, %s39
    %p301 = scmp.eq.s32.totalorder %s300, 0
    %s303 = sadd.s32 %s302, 1
    %s304 = scalar_select %p301, %s302, %s303
    %p307 = pneg %p301
    %p308 = scmp.eq.s32.totalorder %s32, 1
    %p309 = por %p307, %p308
    %p310 = scmp.ne.s32.totalorder %s302, %s305
    %p311 = scmp.eq.s32.totalorder %s32, 0
    %p312 = por %p310, %p311
    %p313 = scmp.ne.s32.totalorder %s302, %s305
    %p314 = scmp.eq.s32.totalorder %s37, 1
    %p315 = por %p313, %p314
    %p316 = scmp.ne.s32.totalorder %s305, %s306
    %p317 = scmp.eq.s32.totalorder %s37, 0
    %p318 = por %p316, %p317
    %p319 = scmp.ne.s32.totalorder %s305, %s306
    %p320 = scmp.eq.s32.totalorder %s38, 1
    %p321 = por %p319, %p320
    %p323 = scmp.ne.s32.totalorder %s306, %s322
    %p324 = scmp.eq.s32.totalorder %s38, 0
    %p325 = por %p323, %p324
    %s326 = ssub.s32 %s32, %s39
    %p327 = scmp.eq.s32.totalorder %s326, 0
    %s329 = sadd.s32 %s328, 1
    %s330 = scalar_select %p327, %s328, %s329
    %p333 = pneg %p327
    %p334 = scmp.eq.s32.totalorder %s32, 1
    %p335 = por %p333, %p334
    %p336 = scmp.ne.s32.totalorder %s328, %s331
    %p337 = scmp.eq.s32.totalorder %s32, 0
    %p338 = por %p336, %p337
    %p339 = scmp.ne.s32.totalorder %s328, %s331
    %p340 = scmp.eq.s32.totalorder %s37, 1
    %p341 = por %p339, %p340
    %p342 = scmp.ne.s32.totalorder %s331, %s332
    %p343 = scmp.eq.s32.totalorder %s37, 0
    %p344 = por %p342, %p343
    %p345 = scmp.ne.s32.totalorder %s331, %s332
    %p346 = scmp.eq.s32.totalorder %s38, 1
    %p347 = por %p345, %p346
    %p349 = scmp.ne.s32.totalorder %s332, %s348
    %p350 = scmp.eq.s32.totalorder %s38, 0
    %p351 = por %p349, %p350
    %s352 = ssub.s32 %s32, %s39
    %p353 = scmp.eq.s32.totalorder %s352, 0
    %s355 = sadd.s32 %s354, 1
    %s356 = scalar_select %p353, %s354, %s355
    %p359 = pneg %p353
    %p360 = scmp.eq.s32.totalorder %s32, 1
    %p361 = por %p359, %p360
    %p362 = scmp.ne.s32.totalorder %s354, %s357
    %p363 = scmp.eq.s32.totalorder %s32, 0
    %p364 = por %p362, %p363
    %p365 = scmp.ne.s32.totalorder %s354, %s357
    %p366 = scmp.eq.s32.totalorder %s37, 1
    %p367 = por %p365, %p366
    %p368 = scmp.ne.s32.totalorder %s357, %s358
    %p369 = scmp.eq.s32.totalorder %s37, 0
    %p370 = por %p368, %p369
    %p371 = scmp.ne.s32.totalorder %s357, %s358
    %p372 = scmp.eq.s32.totalorder %s38, 1
    %p373 = por %p371, %p372
    %p375 = scmp.ne.s32.totalorder %s358, %s374
    %p376 = scmp.eq.s32.totalorder %s38, 0
    %p377 = por %p375, %p376
    %s378 = ssub.s32 %s32, %s39
    %p379 = scmp.eq.s32.totalorder %s378, 0
    %s381 = sadd.s32 %s380, 1
    %s382 = scalar_select %p379, %s380, %s381
    %p385 = pneg %p379
    %p386 = scmp.eq.s32.totalorder %s32, 1
    %p387 = por %p385, %p386
    %p388 = scmp.ne.s32.totalorder %s380, %s383
    %p389 = scmp.eq.s32.totalorder %s32, 0
    %p390 = por %p388, %p389
    %p391 = scmp.ne.s32.totalorder %s380, %s383
    %p392 = scmp.eq.s32.totalorder %s37, 1
    %p393 = por %p391, %p392
    %p394 = scmp.ne.s32.totalorder %s383, %s384
    %p395 = scmp.eq.s32.totalorder %s37, 0
    %p396 = por %p394, %p395
    %p397 = scmp.ne.s32.totalorder %s383, %s384
    %p398 = scmp.eq.s32.totalorder %s38, 1
    %p399 = por %p397, %p398
    %p401 = scmp.ne.s32.totalorder %s384, %s400
    %p402 = scmp.eq.s32.totalorder %s38, 0
    %p403 = por %p401, %p402
    %s404 = ssub.s32 %s32, %s39
    %p405 = scmp.eq.s32.totalorder %s404, 0
    %s407 = sadd.s32 %s406, 1
    %s408 = scalar_select %p405, %s406, %s407
    %p411 = pneg %p405
    %p412 = scmp.eq.s32.totalorder %s32, 1
    %p413 = por %p411, %p412
    %p414 = scmp.ne.s32.totalorder %s406, %s409
    %p415 = scmp.eq.s32.totalorder %s32, 0
    %p416 = por %p414, %p415
    %p417 = scmp.ne.s32.totalorder %s406, %s409
    %p418 = scmp.eq.s32.totalorder %s37, 1
    %p419 = por %p417, %p418
    %p420 = scmp.ne.s32.totalorder %s409, %s410
    %p421 = scmp.eq.s32.totalorder %s37, 0
    %p422 = por %p420, %p421
    %p423 = scmp.ne.s32.totalorder %s409, %s410
    %p424 = scmp.eq.s32.totalorder %s38, 1
    %p425 = por %p423, %p424
    %p427 = scmp.ne.s32.totalorder %s410, %s426
    %p428 = scmp.eq.s32.totalorder %s38, 0
    %p429 = por %p427, %p428
    %s430 = ssub.s32 %s32, %s39
    %p431 = scmp.eq.s32.totalorder %s430, 0
    %s433 = sadd.s32 %s432, 1
    %s434 = scalar_select %p431, %s432, %s433
    %p437 = pneg %p431
    %p438 = scmp.eq.s32.totalorder %s32, 1
    %p439 = por %p437, %p438
    %p440 = scmp.ne.s32.totalorder %s432, %s435
    %p441 = scmp.eq.s32.totalorder %s32, 0
    %p442 = por %p440, %p441
    %p443 = scmp.ne.s32.totalorder %s432, %s435
    %p444 = scmp.eq.s32.totalorder %s37, 1
    %p445 = por %p443, %p444
    %p446 = scmp.ne.s32.totalorder %s435, %s436
    %p447 = scmp.eq.s32.totalorder %s37, 0
    %p448 = por %p446, %p447
    %p449 = scmp.ne.s32.totalorder %s435, %s436
    %p450 = scmp.eq.s32.totalorder %s38, 1
    %p451 = por %p449, %p450
    %p453 = scmp.ne.s32.totalorder %s436, %s452
    %p454 = scmp.eq.s32.totalorder %s38, 0
    %p455 = por %p453, %p454
    %s456 = ssub.s32 %s32, %s39
    %p457 = scmp.eq.s32.totalorder %s456, 0
    %s459 = sadd.s32 %s458, 1
    %s460 = scalar_select %p457, %s458, %s459
    %p463 = pneg %p457
    %p464 = scmp.eq.s32.totalorder %s32, 1
    %p465 = por %p463, %p464
    %p466 = scmp.ne.s32.totalorder %s458, %s461
    %p467 = scmp.eq.s32.totalorder %s32, 0
    %p468 = por %p466, %p467
    %p469 = scmp.ne.s32.totalorder %s458, %s461
    %p470 = scmp.eq.s32.totalorder %s37, 1
    %p471 = por %p469, %p470
    %p472 = scmp.ne.s32.totalorder %s461, %s462
    %p473 = scmp.eq.s32.totalorder %s37, 0
    %p474 = por %p472, %p473
    %p475 = scmp.ne.s32.totalorder %s461, %s462
    %p476 = scmp.eq.s32.totalorder %s38, 1
    %p477 = por %p475, %p476
    %p479 = scmp.ne.s32.totalorder %s462, %s478
    %p480 = scmp.eq.s32.totalorder %s38, 0
    %p481 = por %p479, %p480
    %s482 = ssub.s32 %s32, %s39
    %p483 = scmp.eq.s32.totalorder %s482, 0
    %s485 = sadd.s32 %s484, 1
    %s486 = scalar_select %p483, %s484, %s485
    %p489 = pneg %p483
    %p490 = scmp.eq.s32.totalorder %s32, 1
    %p491 = por %p489, %p490
    %p492 = scmp.ne.s32.totalorder %s484, %s487
    %p493 = scmp.eq.s32.totalorder %s32, 0
    %p494 = por %p492, %p493
    %p495 = scmp.ne.s32.totalorder %s484, %s487
    %p496 = scmp.eq.s32.totalorder %s37, 1
    %p497 = por %p495, %p496
    %p498 = scmp.ne.s32.totalorder %s487, %s488
    %p499 = scmp.eq.s32.totalorder %s37, 0
    %p500 = por %p498, %p499
    %p501 = scmp.ne.s32.totalorder %s487, %s488
    %p502 = scmp.eq.s32.totalorder %s38, 1
    %p503 = por %p501, %p502
    %p505 = scmp.ne.s32.totalorder %s488, %s504
    %p506 = scmp.eq.s32.totalorder %s38, 0
    %p507 = por %p505, %p506
    %s508 = ssub.s32 %s32, %s39
    %p509 = scmp.eq.s32.totalorder %s508, 0
    %s511 = sadd.s32 %s510, 1
    %s512 = scalar_select %p509, %s510, %s511
    %p515 = pneg %p509
    %p516 = scmp.eq.s32.totalorder %s32, 1
    %p517 = por %p515, %p516
    %p518 = scmp.ne.s32.totalorder %s510, %s513
    %p519 = scmp.eq.s32.totalorder %s32, 0
    %p520 = por %p518, %p519
    %p521 = scmp.ne.s32.totalorder %s510, %s513
    %p522 = scmp.eq.s32.totalorder %s37, 1
    %p523 = por %p521, %p522
    %p524 = scmp.ne.s32.totalorder %s513, %s514
    %p525 = scmp.eq.s32.totalorder %s37, 0
    %p526 = por %p524, %p525
    %p527 = scmp.ne.s32.totalorder %s513, %s514
    %p528 = scmp.eq.s32.totalorder %s38, 1
    %p529 = por %p527, %p528
    %p531 = scmp.ne.s32.totalorder %s514, %s530
    %p532 = scmp.eq.s32.totalorder %s38, 0
    %p533 = por %p531, %p532
    %s534 = ssub.s32 %s32, %s39
    %p535 = scmp.eq.s32.totalorder %s534, 0
    %s537 = sadd.s32 %s536, 1
    %s538 = scalar_select %p535, %s536, %s537
    %p541 = pneg %p535
    %p542 = scmp.eq.s32.totalorder %s32, 1
    %p543 = por %p541, %p542
    %p544 = scmp.ne.s32.totalorder %s536, %s539
    %p545 = scmp.eq.s32.totalorder %s32, 0
    %p546 = por %p544, %p545
    %p547 = scmp.ne.s32.totalorder %s536, %s539
    %p548 = scmp.eq.s32.totalorder %s37, 1
    %p549 = por %p547, %p548
    %p550 = scmp.ne.s32.totalorder %s539, %s540
    %p551 = scmp.eq.s32.totalorder %s37, 0
    %p552 = por %p550, %p551
    %p553 = scmp.ne.s32.totalorder %s539, %s540
    %p554 = scmp.eq.s32.totalorder %s38, 1
    %p555 = por %p553, %p554
    %p557 = scmp.ne.s32.totalorder %s540, %s556
    %p558 = scmp.eq.s32.totalorder %s38, 0
    %p559 = por %p557, %p558
    %s560 = ssub.s32 %s32, %s39
    %p561 = scmp.eq.s32.totalorder %s560, 0
    %s563 = sadd.s32 %s562, 1
    %s564 = scalar_select %p561, %s562, %s563
    %p567 = pneg %p561
    %p568 = scmp.eq.s32.totalorder %s32, 1
    %p569 = por %p567, %p568
    %p570 = scmp.ne.s32.totalorder %s562, %s565
    %p571 = scmp.eq.s32.totalorder %s32, 0
    %p572 = por %p570, %p571
    %p573 = scmp.ne.s32.totalorder %s562, %s565
    %p574 = scmp.eq.s32.totalorder %s37, 1
    %p575 = por %p573, %p574
    %p576 = scmp.ne.s32.totalorder %s565, %s566
    %p577 = scmp.eq.s32.totalorder %s37, 0
    %p578 = por %p576, %p577
    %p579 = scmp.ne.s32.totalorder %s565, %s566
    %p580 = scmp.eq.s32.totalorder %s38, 1
    %p581 = por %p579, %p580
    %p583 = scmp.ne.s32.totalorder %s566, %s582
    %p584 = scmp.eq.s32.totalorder %s38, 0
    %p585 = por %p583, %p584
    %s586 = ssub.s32 %s32, %s39
    %p587 = scmp.eq.s32.totalorder %s586, 0
    %s589 = sadd.s32 %s588, 1
    %s590 = scalar_select %p587, %s588, %s589
    %p593 = pneg %p587
    %p594 = scmp.eq.s32.totalorder %s32, 1
    %p595 = por %p593, %p594
    %p596 = scmp.ne.s32.totalorder %s588, %s591
    %p597 = scmp.eq.s32.totalorder %s32, 0
    %p598 = por %p596, %p597
    %p599 = scmp.ne.s32.totalorder %s588, %s591
    %p600 = scmp.eq.s32.totalorder %s37, 1
    %p601 = por %p599, %p600
    %p602 = scmp.ne.s32.totalorder %s591, %s592
    %p603 = scmp.eq.s32.totalorder %s37, 0
    %p604 = por %p602, %p603
    %p605 = scmp.ne.s32.totalorder %s591, %s592
    %p606 = scmp.eq.s32.totalorder %s38, 1
    %p607 = por %p605, %p606
    %p609 = scmp.ne.s32.totalorder %s592, %s608
    %p610 = scmp.eq.s32.totalorder %s38, 0
    %p611 = por %p609, %p610
    %s612 = ssub.s32 %s32, %s39
    %p613 = scmp.eq.s32.totalorder %s612, 0
    %s615 = sadd.s32 %s614, 1
    %s616 = scalar_select %p613, %s614, %s615
    %p619 = pneg %p613
    %p620 = scmp.eq.s32.totalorder %s32, 1
    %p621 = por %p619, %p620
    %p622 = scmp.ne.s32.totalorder %s614, %s617
    %p623 = scmp.eq.s32.totalorder %s32, 0
    %p624 = por %p622, %p623
    %p625 = scmp.ne.s32.totalorder %s614, %s617
    %p626 = scmp.eq.s32.totalorder %s37, 1
    %p627 = por %p625, %p626
    %p628 = scmp.ne.s32.totalorder %s617, %s618
    %p629 = scmp.eq.s32.totalorder %s37, 0
    %p630 = por %p628, %p629
    %p631 = scmp.ne.s32.totalorder %s617, %s618
    %p632 = scmp.eq.s32.totalorder %s38, 1
    %p633 = por %p631, %p632
    %p635 = scmp.ne.s32.totalorder %s618, %s634
    %p636 = scmp.eq.s32.totalorder %s38, 0
    %p637 = por %p635, %p636
    %s638 = ssub.s32 %s32, %s39
    %p639 = scmp.eq.s32.totalorder %s638, 0
    %s641 = sadd.s32 %s640, 1
    %s642 = scalar_select %p639, %s640, %s641
    %p645 = pneg %p639
    %p646 = scmp.eq.s32.totalorder %s32, 1
    %p647 = por %p645, %p646
    %p648 = scmp.ne.s32.totalorder %s640, %s643
    %p649 = scmp.eq.s32.totalorder %s32, 0
    %p650 = por %p648, %p649
    %p651 = scmp.ne.s32.totalorder %s640, %s643
    %p652 = scmp.eq.s32.totalorder %s37, 1
    %p653 = por %p651, %p652
    %p654 = scmp.ne.s32.totalorder %s643, %s644
    %p655 = scmp.eq.s32.totalorder %s37, 0
    %p656 = por %p654, %p655
    %p657 = scmp.ne.s32.totalorder %s643, %s644
    %p658 = scmp.eq.s32.totalorder %s38, 1
    %p659 = por %p657, %p658
    %p661 = scmp.ne.s32.totalorder %s644, %s660
    %p662 = scmp.eq.s32.totalorder %s38, 0
    %p663 = por %p661, %p662
    %s664 = ssub.s32 %s32, %s39
    %p665 = scmp.eq.s32.totalorder %s664, 0
    %s667 = sadd.s32 %s666, 1
    %s668 = scalar_select %p665, %s666, %s667
    %p671 = pneg %p665
    %p672 = scmp.eq.s32.totalorder %s32, 1
    %p673 = por %p671, %p672
    %p674 = scmp.ne.s32.totalorder %s666, %s669
    %p675 = scmp.eq.s32.totalorder %s32, 0
    %p676 = por %p674, %p675
    %p677 = scmp.ne.s32.totalorder %s666, %s669
    %p678 = scmp.eq.s32.totalorder %s37, 1
    %p679 = por %p677, %p678
    %p680 = scmp.ne.s32.totalorder %s669, %s670
    %p681 = scmp.eq.s32.totalorder %s37, 0
    %p682 = por %p680, %p681
    %p683 = scmp.ne.s32.totalorder %s669, %s670
    %p684 = scmp.eq.s32.totalorder %s38, 1
    %p685 = por %p683, %p684
    %p687 = scmp.ne.s32.totalorder %s670, %s686
    %p688 = scmp.eq.s32.totalorder %s38, 0
    %p689 = por %p687, %p688
    %s690 = ssub.s32 %s32, %s39
    %p691 = scmp.eq.s32.totalorder %s690, 0
    %s693 = sadd.s32 %s692, 1
    %s694 = scalar_select %p691, %s692, %s693
    %p697 = pneg %p691
    %p698 = scmp.eq.s32.totalorder %s32, 1
    %p699 = por %p697, %p698
    %p700 = scmp.ne.s32.totalorder %s692, %s695
    %p701 = scmp.eq.s32.totalorder %s32, 0
    %p702 = por %p700, %p701
    %p703 = scmp.ne.s32.totalorder %s692, %s695
    %p704 = scmp.eq.s32.totalorder %s37, 1
    %p705 = por %p703, %p704
    %p706 = scmp.ne.s32.totalorder %s695, %s696
    %p707 = scmp.eq.s32.totalorder %s37, 0
    %p708 = por %p706, %p707
    %p709 = scmp.ne.s32.totalorder %s695, %s696
    %p710 = scmp.eq.s32.totalorder %s38, 1
    %p711 = por %p709, %p710
    %p713 = scmp.ne.s32.totalorder %s696, %s712
    %p714 = scmp.eq.s32.totalorder %s38, 0
    %p715 = por %p713, %p714
    %p716 = scmp.le.s32.totalorder 1, %s32
    %p717 = scmp.lt.s32.totalorder %s32, 3
    %p718 = pnand %p716, %p717
    %p719 = pneg %p718
    // Predicated region
    $region9: #{skeleton_simnn_forward.1} parent=5 // pred_check
      _
    $region10: #{skeleton_simnn_forward.1} parent=5 // pred_check_branch
      %721 = sbr.rel (%p718) target = $region12
    $region11: #{skeleton_simnn_forward.1} parent=5 // pred_region
      %s722 = ssub.s32 %s32, 1
    $region12: #{skeleton_simnn_forward.1} parent=5 // pred_fallthru
      _
    %p723 = scmp.lt.s32.totalorder %s32, 2
    // Predicated region
    $region13: #{skeleton_simnn_forward.1} parent=5 // pred_check
      %p724 = pneg %p723
    $region14: #{skeleton_simnn_forward.1} parent=5 // pred_check_branch
      %726 = sbr.rel (%p724) target = $region16
    $region15: #{skeleton_simnn_forward.1} parent=5 // pred_region
      // Predicated region
      $region17: #{skeleton_simnn_forward.1} parent=15 // pred_check
        %p727 = pneg %p52
      $region18: #{skeleton_simnn_forward.1} parent=15 // pred_check_branch
        %729 = sbr.rel (%p727) target = $region20
      $region19: #{skeleton_simnn_forward.1} parent=15 // pred_region
        %s730 = smul.u32 2, %s32
        %p731 = scmp.lt.s32.totalorder %s730, 3
        %s732 = scalar_select %p731, %s730, 3
        %s733 = smul.addr %s732, 8
        %s734 = smul.addr %s733, 4
        %s735 = scalar_lea.vmem %s0, %s734
        %s736 = smul.u32 2, %s32
      $region20: #{skeleton_simnn_forward.1} parent=15 // pred_fallthru
        _
      // Predicated region
      $region21: #{skeleton_simnn_forward.1} parent=15 // pred_check
        %p737 = pneg %p78
      $region22: #{skeleton_simnn_forward.1} parent=15 // pred_check_branch
        %739 = sbr.rel (%p737) target = $region24
      $region23: #{skeleton_simnn_forward.1} parent=15 // pred_region
        %p740 = scmp.lt.s32.totalorder %s32, 1
        %s741 = scalar_select %p740, %s32, 1
        %s742 = smul.addr %s741, 8
        %s743 = smul.addr %s742, 8
        %s744 = scalar_lea.vmem %s1, %s743
      $region24: #{skeleton_simnn_forward.1} parent=15 // pred_fallthru
        _
      // Predicated region
      $region25: #{skeleton_simnn_forward.1} parent=15 // pred_check
        %p745 = pneg %p104
      $region26: #{skeleton_simnn_forward.1} parent=15 // pred_check_branch
        %747 = sbr.rel (%p745) target = $region28
      $region27: #{skeleton_simnn_forward.1} parent=15 // pred_region
        %p748 = scmp.lt.s32.totalorder %s32, 1
        %s749 = scalar_select %p748, %s32, 1
        %s750 = smul.addr %s749, 8
        %s751 = smul.addr %s750, 8
        %s752 = scalar_lea.vmem %s2, %s751
      $region28: #{skeleton_simnn_forward.1} parent=15 // pred_fallthru
        _
      // Predicated region
      $region29: #{skeleton_simnn_forward.1} parent=15 // pred_check
        %p753 = pneg %p130
      $region30: #{skeleton_simnn_forward.1} parent=15 // pred_check_branch
        %755 = sbr.rel (%p753) target = $region32
      $region31: #{skeleton_simnn_forward.1} parent=15 // pred_region
        %p756 = scmp.lt.s32.totalorder %s32, 1
        %s757 = scalar_select %p756, %s32, 1
        %s758 = smul.addr %s757, 16
        %s759 = smul.addr %s758, 8
        %s760 = scalar_lea.vmem %s3, %s759
      $region32: #{skeleton_simnn_forward.1} parent=15 // pred_fallthru
        _
      // Predicated region
      $region33: #{skeleton_simnn_forward.1} parent=15 // pred_check
        %p761 = pneg %p156
      $region34: #{skeleton_simnn_forward.1} parent=15 // pred_check_branch
        %763 = sbr.rel (%p761) target = $region36
      $region35: #{skeleton_simnn_forward.1} parent=15 // pred_region
        %p764 = scmp.lt.s32.totalorder %s32, 1
        %s765 = scalar_select %p764, %s32, 1
        %s766 = smul.addr %s765, 2
        %s767 = scalar_lea.vmem %s4, %s766
      $region36: #{skeleton_simnn_forward.1} parent=15 // pred_fallthru
        _
      // Predicated region
      $region37: #{skeleton_simnn_forward.1} parent=15 // pred_check
        %p768 = pneg %p182
      $region38: #{skeleton_simnn_forward.1} parent=15 // pred_check_branch
        %770 = sbr.rel (%p768) target = $region40
      $region39: #{skeleton_simnn_forward.1} parent=15 // pred_region
        %p771 = scmp.lt.s32.totalorder %s32, 1
        %s772 = scalar_select %p771, %s32, 1
        %s773 = smul.addr %s772, 64
        %s774 = smul.addr %s773, 8
        %s775 = scalar_lea.vmem %s5, %s774
      $region40: #{skeleton_simnn_forward.1} parent=15 // pred_fallthru
        _
      // Predicated region
      $region41: #{skeleton_simnn_forward.1} parent=15 // pred_check
        %p776 = pneg %p208
      $region42: #{skeleton_simnn_forward.1} parent=15 // pred_check_branch
        %778 = sbr.rel (%p776) target = $region44
      $region43: #{skeleton_simnn_forward.1} parent=15 // pred_region
        %p779 = scmp.lt.s32.totalorder %s32, 1
        %s780 = scalar_select %p779, %s32, 1
        %s781 = smul.addr %s780, 2
        %s782 = scalar_lea.vmem %s6, %s781
      $region44: #{skeleton_simnn_forward.1} parent=15 // pred_fallthru
        _
      // Predicated region
      $region45: #{skeleton_simnn_forward.1} parent=15 // pred_check
        %p783 = pneg %p234
      $region46: #{skeleton_simnn_forward.1} parent=15 // pred_check_branch
        %785 = sbr.rel (%p783) target = $region48
      $region47: #{skeleton_simnn_forward.1} parent=15 // pred_region
        %p786 = scmp.lt.s32.totalorder %s32, 1
        %s787 = scalar_select %p786, %s32, 1
        %s788 = smul.addr %s787, 2
        %s789 = scalar_lea.vmem %s7, %s788
      $region48: #{skeleton_simnn_forward.1} parent=15 // pred_fallthru
        _
      // Predicated region
      $region49: #{skeleton_simnn_forward.1} parent=15 // pred_check
        %p790 = pneg %p260
      $region50: #{skeleton_simnn_forward.1} parent=15 // pred_check_branch
        %792 = sbr.rel (%p790) target = $region52
      $region51: #{skeleton_simnn_forward.1} parent=15 // pred_region
        %p793 = scmp.lt.s32.totalorder %s32, 1
        %s794 = scalar_select %p793, %s32, 1
        %s795 = smul.addr %s794, 2
        %s796 = scalar_lea.vmem %s8, %s795
      $region52: #{skeleton_simnn_forward.1} parent=15 // pred_fallthru
        _
      // Predicated region
      $region53: #{skeleton_simnn_forward.1} parent=15 // pred_check
        %p797 = pneg %p286
      $region54: #{skeleton_simnn_forward.1} parent=15 // pred_check_branch
        %799 = sbr.rel (%p797) target = $region56
      $region55: #{skeleton_simnn_forward.1} parent=15 // pred_region
        %p800 = scmp.lt.s32.totalorder %s32, 1
        %s801 = scalar_select %p800, %s32, 1
        %s802 = smul.addr %s801, 64
        %s803 = smul.addr %s802, 8
        %s804 = scalar_lea.vmem %s9, %s803
      $region56: #{skeleton_simnn_forward.1} parent=15 // pred_fallthru
        _
      // Predicated region
      $region57: #{skeleton_simnn_forward.1} parent=15 // pred_check
        %p805 = pneg %p312
      $region58: #{skeleton_simnn_forward.1} parent=15 // pred_check_branch
        %807 = sbr.rel (%p805) target = $region60
      $region59: #{skeleton_simnn_forward.1} parent=15 // pred_region
        %p808 = scmp.lt.s32.totalorder %s32, 1
        %s809 = scalar_select %p808, %s32, 1
        %s810 = smul.addr %s809, 2
        %s811 = scalar_lea.vmem %s10, %s810
      $region60: #{skeleton_simnn_forward.1} parent=15 // pred_fallthru
        _
      // Predicated region
      $region61: #{skeleton_simnn_forward.1} parent=15 // pred_check
        %p812 = pneg %p338
      $region62: #{skeleton_simnn_forward.1} parent=15 // pred_check_branch
        %814 = sbr.rel (%p812) target = $region64
      $region63: #{skeleton_simnn_forward.1} parent=15 // pred_region
        %p815 = scmp.lt.s32.totalorder %s32, 1
        %s816 = scalar_select %p815, %s32, 1
        %s817 = smul.addr %s816, 2
        %s818 = scalar_lea.vmem %s11, %s817
      $region64: #{skeleton_simnn_forward.1} parent=15 // pred_fallthru
        _
      // Predicated region
      $region65: #{skeleton_simnn_forward.1} parent=15 // pred_check
        %p819 = pneg %p364
      $region66: #{skeleton_simnn_forward.1} parent=15 // pred_check_branch
        %821 = sbr.rel (%p819) target = $region68
      $region67: #{skeleton_simnn_forward.1} parent=15 // pred_region
        %p822 = scmp.lt.s32.totalorder %s32, 1
        %s823 = scalar_select %p822, %s32, 1
        %s824 = smul.addr %s823, 2
        %s825 = scalar_lea.vmem %s12, %s824
      $region68: #{skeleton_simnn_forward.1} parent=15 // pred_fallthru
        _
      // Predicated region
      $region69: #{skeleton_simnn_forward.1} parent=15 // pred_check
        %p826 = pneg %p390
      $region70: #{skeleton_simnn_forward.1} parent=15 // pred_check_branch
        %828 = sbr.rel (%p826) target = $region72
      $region71: #{skeleton_simnn_forward.1} parent=15 // pred_region
        %p829 = scmp.lt.s32.totalorder %s32, 1
        %s830 = scalar_select %p829, %s32, 1
        %s831 = smul.addr %s830, 32
        %s832 = smul.addr %s831, 8
        %s833 = scalar_lea.vmem %s13, %s832
      $region72: #{skeleton_simnn_forward.1} parent=15 // pred_fallthru
        _
      // Predicated region
      $region73: #{skeleton_simnn_forward.1} parent=15 // pred_check
        %p834 = pneg %p416
      $region74: #{skeleton_simnn_forward.1} parent=15 // pred_check_branch
        %836 = sbr.rel (%p834) target = $region76
      $region75: #{skeleton_simnn_forward.1} parent=15 // pred_region
        %p837 = scmp.lt.s32.totalorder %s32, 1
        %s838 = scalar_select %p837, %s32, 1
        %s839 = scalar_lea.vmem %s14, %s838
      $region76: #{skeleton_simnn_forward.1} parent=15 // pred_fallthru
        _
      // Predicated region
      $region77: #{skeleton_simnn_forward.1} parent=15 // pred_check
        %p840 = pneg %p442
      $region78: #{skeleton_simnn_forward.1} parent=15 // pred_check_branch
        %842 = sbr.rel (%p840) target = $region80
      $region79: #{skeleton_simnn_forward.1} parent=15 // pred_region
        %p843 = scmp.lt.s32.totalorder %s32, 1
        %s844 = scalar_select %p843, %s32, 1
        %s845 = scalar_lea.vmem %s15, %s844
      $region80: #{skeleton_simnn_forward.1} parent=15 // pred_fallthru
        _
      // Predicated region
      $region81: #{skeleton_simnn_forward.1} parent=15 // pred_check
        %p846 = pneg %p468
      $region82: #{skeleton_simnn_forward.1} parent=15 // pred_check_branch
        %848 = sbr.rel (%p846) target = $region84
      $region83: #{skeleton_simnn_forward.1} parent=15 // pred_region
        %p849 = scmp.lt.s32.totalorder %s32, 1
        %s850 = scalar_select %p849, %s32, 1
        %s851 = scalar_lea.vmem %s16, %s850
      $region84: #{skeleton_simnn_forward.1} parent=15 // pred_fallthru
        _
      // Predicated region
      $region85: #{skeleton_simnn_forward.1} parent=15 // pred_check
        %p852 = pneg %p494
      $region86: #{skeleton_simnn_forward.1} parent=15 // pred_check_branch
        %854 = sbr.rel (%p852) target = $region88
      $region87: #{skeleton_simnn_forward.1} parent=15 // pred_region
        %p855 = scmp.lt.s32.totalorder %s32, 1
        %s856 = scalar_select %p855, %s32, 1
        %s857 = smul.addr %s856, 16
        %s858 = smul.addr %s857, 8
        %s859 = scalar_lea.vmem %s17, %s858
      $region88: #{skeleton_simnn_forward.1} parent=15 // pred_fallthru
        _
      // Predicated region
      $region89: #{skeleton_simnn_forward.1} parent=15 // pred_check
        %p860 = pneg %p520
      $region90: #{skeleton_simnn_forward.1} parent=15 // pred_check_branch
        %862 = sbr.rel (%p860) target = $region92
      $region91: #{skeleton_simnn_forward.1} parent=15 // pred_region
        %p863 = scmp.lt.s32.totalorder %s32, 1
        %s864 = scalar_select %p863, %s32, 1
        %s865 = scalar_lea.vmem %s18, %s864
      $region92: #{skeleton_simnn_forward.1} parent=15 // pred_fallthru
        _
      // Predicated region
      $region93: #{skeleton_simnn_forward.1} parent=15 // pred_check
        %p866 = pneg %p546
      $region94: #{skeleton_simnn_forward.1} parent=15 // pred_check_branch
        %868 = sbr.rel (%p866) target = $region96
      $region95: #{skeleton_simnn_forward.1} parent=15 // pred_region
        %p869 = scmp.lt.s32.totalorder %s32, 1
        %s870 = scalar_select %p869, %s32, 1
        %s871 = scalar_lea.vmem %s19, %s870
      $region96: #{skeleton_simnn_forward.1} parent=15 // pred_fallthru
        _
      // Predicated region
      $region97: #{skeleton_simnn_forward.1} parent=15 // pred_check
        %p872 = pneg %p572
      $region98: #{skeleton_simnn_forward.1} parent=15 // pred_check_branch
        %874 = sbr.rel (%p872) target = $region100
      $region99: #{skeleton_simnn_forward.1} parent=15 // pred_region
        %p875 = scmp.lt.s32.totalorder %s32, 1
        %s876 = scalar_select %p875, %s32, 1
        %s877 = scalar_lea.vmem %s20, %s876
      $region100: #{skeleton_simnn_forward.1} parent=15 // pred_fallthru
        _
      // Predicated region
      $region101: #{skeleton_simnn_forward.1} parent=15 // pred_check
        %p878 = pneg %p598
      $region102: #{skeleton_simnn_forward.1} parent=15 // pred_check_branch
        %880 = sbr.rel (%p878) target = $region104
      $region103: #{skeleton_simnn_forward.1} parent=15 // pred_region
        %p881 = scmp.lt.s32.totalorder %s32, 1
        %s882 = scalar_select %p881, %s32, 1
        %s883 = smul.addr %s882, 16
        %s884 = smul.addr %s883, 8
        %s885 = scalar_lea.vmem %s21, %s884
      $region104: #{skeleton_simnn_forward.1} parent=15 // pred_fallthru
        _
      // Predicated region
      $region105: #{skeleton_simnn_forward.1} parent=15 // pred_check
        %p886 = pneg %p624
      $region106: #{skeleton_simnn_forward.1} parent=15 // pred_check_branch
        %888 = sbr.rel (%p886) target = $region108
      $region107: #{skeleton_simnn_forward.1} parent=15 // pred_region
        %p889 = scmp.lt.s32.totalorder %s32, 1
        %s890 = scalar_select %p889, %s32, 1
        %s891 = scalar_lea.vmem %s22, %s890
      $region108: #{skeleton_simnn_forward.1} parent=15 // pred_fallthru
        _
    $region16: #{skeleton_simnn_forward.1} parent=5 // pred_fallthru
      _
    %p892 = scmp.le.s32.totalorder 1, %s32
    %p893 = scmp.lt.s32.totalorder %s32, 3
    %p894 = pnand %p892, %p893
    %p895 = pneg %p894
    // Predicated region
    $region109: #{skeleton_simnn_forward.1} parent=5 // pred_check
      _
    $region110: #{skeleton_simnn_forward.1} parent=5 // pred_check_branch
      %897 = sbr.rel (%p894) target = $region112
    $region111: #{skeleton_simnn_forward.1} parent=5 // pred_region
      %s898 = ssub.s32 %s32, 1
      %s899 = smul.u32 2, %s37
      %p900 = scmp.lt.s32.totalorder %s899, 3
      %s901 = scalar_select %p900, %s899, 3
      %s902 = smul.addr %s901, 8
      %s903 = smul.addr %s902, 4
      %s904 = scalar_lea.vmem %s0, %s903
      %p905 = pneg %p58
      %p906 = pneg %p55
      %p907 = scmp.lt.s32.totalorder %s37, 1
      %s908 = scalar_select %p907, %s37, 1
      %s909 = smul.addr %s908, 8
      %s910 = smul.addr %s909, 8
      %s911 = scalar_lea.vmem %s1, %s910
      %p912 = pneg %p84
      %p913 = pneg %p81
      %p914 = scmp.lt.s32.totalorder %s37, 1
      %s915 = scalar_select %p914, %s37, 1
      %s916 = smul.addr %s915, 8
      %s917 = smul.addr %s916, 8
      %s918 = scalar_lea.vmem %s2, %s917
      %p919 = pneg %p110
      %p920 = pneg %p107
      %p921 = scmp.lt.s32.totalorder %s37, 1
      %s922 = scalar_select %p921, %s37, 1
      %s923 = smul.addr %s922, 16
      %s924 = smul.addr %s923, 8
      %s925 = scalar_lea.vmem %s3, %s924
      %p926 = pneg %p136
      %p927 = pneg %p133
      %p928 = scmp.lt.s32.totalorder %s37, 1
      %s929 = scalar_select %p928, %s37, 1
      %s930 = smul.addr %s929, 2
      %s931 = scalar_lea.vmem %s4, %s930
      %p932 = pneg %p162
      %p933 = pneg %p159
      %p934 = scmp.lt.s32.totalorder %s37, 1
      %s935 = scalar_select %p934, %s37, 1
      %s936 = smul.addr %s935, 64
      %s937 = smul.addr %s936, 8
      %s938 = scalar_lea.vmem %s5, %s937
      %p939 = pneg %p188
      %p940 = pneg %p185
      %p941 = scmp.lt.s32.totalorder %s37, 1
      %s942 = scalar_select %p941, %s37, 1
      %s943 = smul.addr %s942, 2
      %s944 = scalar_lea.vmem %s6, %s943
      %p945 = pneg %p214
      %p946 = pneg %p211
      %p947 = scmp.lt.s32.totalorder %s37, 1
      %s948 = scalar_select %p947, %s37, 1
      %s949 = smul.addr %s948, 2
      %s950 = scalar_lea.vmem %s7, %s949
      %p951 = pneg %p240
      %p952 = pneg %p237
      %p953 = scmp.lt.s32.totalorder %s37, 1
      %s954 = scalar_select %p953, %s37, 1
      %s955 = smul.addr %s954, 2
      %s956 = scalar_lea.vmem %s8, %s955
      %p957 = pneg %p266
      %p958 = pneg %p263
      %p959 = scmp.lt.s32.totalorder %s37, 1
      %s960 = scalar_select %p959, %s37, 1
      %s961 = smul.addr %s960, 64
      %s962 = smul.addr %s961, 8
      %s963 = scalar_lea.vmem %s9, %s962
      %p964 = pneg %p292
      %p965 = pneg %p289
      %p966 = scmp.lt.s32.totalorder %s37, 1
      %s967 = scalar_select %p966, %s37, 1
      %s968 = smul.addr %s967, 2
      %s969 = scalar_lea.vmem %s10, %s968
      %p970 = pneg %p318
      %p971 = pneg %p315
      %p972 = scmp.lt.s32.totalorder %s37, 1
      %s973 = scalar_select %p972, %s37, 1
      %s974 = smul.addr %s973, 2
      %s975 = scalar_lea.vmem %s11, %s974
      %p976 = pneg %p344
      %p977 = pneg %p341
      %p978 = scmp.lt.s32.totalorder %s37, 1
      %s979 = scalar_select %p978, %s37, 1
      %s980 = smul.addr %s979, 2
      %s981 = scalar_lea.vmem %s12, %s980
      %p982 = pneg %p370
      %p983 = pneg %p367
      %p984 = scmp.lt.s32.totalorder %s37, 1
      %s985 = scalar_select %p984, %s37, 1
      %s986 = smul.addr %s985, 32
      %s987 = smul.addr %s986, 8
      %s988 = scalar_lea.vmem %s13, %s987
      %p989 = pneg %p396
      %p990 = pneg %p393
      %p991 = scmp.lt.s32.totalorder %s37, 1
      %s992 = scalar_select %p991, %s37, 1
      %s993 = scalar_lea.vmem %s14, %s992
      %p994 = pneg %p422
      %p995 = pneg %p419
      %p996 = scmp.lt.s32.totalorder %s37, 1
      %s997 = scalar_select %p996, %s37, 1
      %s998 = scalar_lea.vmem %s15, %s997
      %p999 = pneg %p448
      %p1000 = pneg %p445
      %p1001 = scmp.lt.s32.totalorder %s37, 1
      %s1002 = scalar_select %p1001, %s37, 1
      %s1003 = scalar_lea.vmem %s16, %s1002
      %p1004 = pneg %p474
      %p1005 = pneg %p471
      %p1006 = scmp.lt.s32.totalorder %s37, 1
      %s1007 = scalar_select %p1006, %s37, 1
      %s1008 = smul.addr %s1007, 16
      %s1009 = smul.addr %s1008, 8
      %s1010 = scalar_lea.vmem %s17, %s1009
      %p1011 = pneg %p500
      %p1012 = pneg %p497
      %p1013 = scmp.lt.s32.totalorder %s37, 1
      %s1014 = scalar_select %p1013, %s37, 1
      %s1015 = scalar_lea.vmem %s18, %s1014
      %p1016 = pneg %p526
      %p1017 = pneg %p523
      %p1018 = scmp.lt.s32.totalorder %s37, 1
      %s1019 = scalar_select %p1018, %s37, 1
      %s1020 = scalar_lea.vmem %s19, %s1019
      %p1021 = pneg %p552
      %p1022 = pneg %p549
      %p1023 = scmp.lt.s32.totalorder %s37, 1
      %s1024 = scalar_select %p1023, %s37, 1
      %s1025 = scalar_lea.vmem %s20, %s1024
      %p1026 = pneg %p578
      %p1027 = pneg %p575
      %p1028 = scmp.lt.s32.totalorder %s37, 1
      %s1029 = scalar_select %p1028, %s37, 1
      %s1030 = smul.addr %s1029, 16
      %s1031 = smul.addr %s1030, 8
      %s1032 = scalar_lea.vmem %s21, %s1031
      %p1033 = pneg %p604
      %p1034 = pneg %p601
      %p1035 = scmp.lt.s32.totalorder %s37, 1
      %s1036 = scalar_select %p1035, %s37, 1
      %s1037 = scalar_lea.vmem %s22, %s1036
      %p1038 = pneg %p630
      %p1039 = pneg %p627
      %p1040 = pneg %p656
      %p1041 = pneg %p653
      %s1042 = smul.u32 2, %s37
      %p1043 = scmp.lt.s32.totalorder %s1042, 3
      %s1044 = scalar_select %p1043, %s1042, 3
      %s1045 = smul.addr %s1044, 8
      %s1046 = scalar_lea.vmem %s23, %s1045
      %p1047 = pneg %p682
      %p1048 = pneg %p679
      %s1049 = smul.u32 2, %s37
      %p1050 = scmp.lt.s32.totalorder %s1049, 3
      %s1051 = scalar_select %p1050, %s1049, 3
      %s1052 = smul.addr %s1051, 8
      %s1053 = scalar_lea.vmem %s24, %s1052
      %p1054 = pneg %p708
      %p1055 = pneg %p705
      %s1056 = smul.u32 2, %s37
      %p1057 = scmp.lt.s32.totalorder %s1056, 3
      %s1058 = scalar_select %p1057, %s1056, 3
      %s1059 = smul.addr %s1058, 8
      %s1060 = scalar_lea.vmem %s25, %s1059
      %s1061 = smul.u32 2, %s37
      %p1062 = scmp.lt.s32.totalorder %s1061, 3
      %s1063 = scalar_select %p1062, %s1061, 3
      %s1064 = smul.addr %s1063, 8
      %s1065 = smul.addr %s1064, 4
      %s1066 = scalar_lea.vmem %s0, %s1065
      %s1067 = smul.u32 2, %s37
      %p1068 = scmp.lt.s32.totalorder %s37, 1
      %s1069 = scalar_select %p1068, %s37, 1
      %s1070 = smul.addr %s1069, 8
      %s1071 = smul.addr %s1070, 8
      %s1072 = scalar_lea.vmem %s1, %s1071
      %p1073 = scmp.lt.s32.totalorder %s37, 1
      %s1074 = scalar_select %p1073, %s37, 1
      %s1075 = smul.addr %s1074, 8
      %s1076 = smul.addr %s1075, 8
      %s1077 = scalar_lea.vmem %s2, %s1076
      %p1078 = scmp.lt.s32.totalorder %s37, 1
      %s1079 = scalar_select %p1078, %s37, 1
      %s1080 = smul.addr %s1079, 16
      %s1081 = smul.addr %s1080, 8
      %s1082 = scalar_lea.vmem %s3, %s1081
      %p1083 = scmp.lt.s32.totalorder %s37, 1
      %s1084 = scalar_select %p1083, %s37, 1
      %s1085 = smul.addr %s1084, 2
      %s1086 = scalar_lea.vmem %s4, %s1085
      %p1087 = scmp.lt.s32.totalorder %s37, 1
      %s1088 = scalar_select %p1087, %s37, 1
      %s1089 = smul.addr %s1088, 64
      %s1090 = smul.addr %s1089, 8
      %s1091 = scalar_lea.vmem %s5, %s1090
      %p1092 = scmp.lt.s32.totalorder %s37, 1
      %s1093 = scalar_select %p1092, %s37, 1
      %s1094 = smul.addr %s1093, 2
      %s1095 = scalar_lea.vmem %s6, %s1094
      %p1096 = scmp.lt.s32.totalorder %s37, 1
      %s1097 = scalar_select %p1096, %s37, 1
      %s1098 = smul.addr %s1097, 2
      %s1099 = scalar_lea.vmem %s7, %s1098
      %p1100 = scmp.lt.s32.totalorder %s37, 1
      %s1101 = scalar_select %p1100, %s37, 1
      %s1102 = smul.addr %s1101, 2
      %s1103 = scalar_lea.vmem %s8, %s1102
      %p1104 = scmp.lt.s32.totalorder %s37, 1
      %s1105 = scalar_select %p1104, %s37, 1
      %s1106 = smul.addr %s1105, 64
      %s1107 = smul.addr %s1106, 8
      %s1108 = scalar_lea.vmem %s9, %s1107
      %p1109 = scmp.lt.s32.totalorder %s37, 1
      %s1110 = scalar_select %p1109, %s37, 1
      %s1111 = smul.addr %s1110, 2
      %s1112 = scalar_lea.vmem %s10, %s1111
      %p1113 = scmp.lt.s32.totalorder %s37, 1
      %s1114 = scalar_select %p1113, %s37, 1
      %s1115 = smul.addr %s1114, 2
      %s1116 = scalar_lea.vmem %s11, %s1115
      %p1117 = scmp.lt.s32.totalorder %s37, 1
      %s1118 = scalar_select %p1117, %s37, 1
      %s1119 = smul.addr %s1118, 2
      %s1120 = scalar_lea.vmem %s12, %s1119
      %p1121 = scmp.lt.s32.totalorder %s37, 1
      %s1122 = scalar_select %p1121, %s37, 1
      %s1123 = smul.addr %s1122, 32
      %s1124 = smul.addr %s1123, 8
      %s1125 = scalar_lea.vmem %s13, %s1124
      %p1126 = scmp.lt.s32.totalorder %s37, 1
      %s1127 = scalar_select %p1126, %s37, 1
      %s1128 = scalar_lea.vmem %s14, %s1127
      %p1129 = scmp.lt.s32.totalorder %s37, 1
      %s1130 = scalar_select %p1129, %s37, 1
      %s1131 = scalar_lea.vmem %s15, %s1130
      %p1132 = scmp.lt.s32.totalorder %s37, 1
      %s1133 = scalar_select %p1132, %s37, 1
      %s1134 = scalar_lea.vmem %s16, %s1133
      %p1135 = scmp.lt.s32.totalorder %s37, 1
      %s1136 = scalar_select %p1135, %s37, 1
      %s1137 = smul.addr %s1136, 16
      %s1138 = smul.addr %s1137, 8
      %s1139 = scalar_lea.vmem %s17, %s1138
      %p1140 = scmp.lt.s32.totalorder %s37, 1
      %s1141 = scalar_select %p1140, %s37, 1
      %s1142 = scalar_lea.vmem %s18, %s1141
      %p1143 = scmp.lt.s32.totalorder %s37, 1
      %s1144 = scalar_select %p1143, %s37, 1
      %s1145 = scalar_lea.vmem %s19, %s1144
      %p1146 = scmp.lt.s32.totalorder %s37, 1
      %s1147 = scalar_select %p1146, %s37, 1
      %s1148 = scalar_lea.vmem %s20, %s1147
      %p1149 = scmp.lt.s32.totalorder %s37, 1
      %s1150 = scalar_select %p1149, %s37, 1
      %s1151 = smul.addr %s1150, 16
      %s1152 = smul.addr %s1151, 8
      %s1153 = scalar_lea.vmem %s21, %s1152
      %p1154 = scmp.lt.s32.totalorder %s37, 1
      %s1155 = scalar_select %p1154, %s37, 1
      %s1156 = scalar_lea.vmem %s22, %s1155
      %s1157 = smul.u32 2, %s37
      %p1158 = scmp.lt.s32.totalorder %s1157, 3
      %s1159 = scalar_select %p1158, %s1157, 3
      %s1160 = smul.addr %s1159, 8
      %s1161 = scalar_lea.vmem %s23, %s1160
      %s1162 = smul.u32 2, %s37
      %s1163 = smul.u32 2, %s37
      %p1164 = scmp.lt.s32.totalorder %s1163, 3
      %s1165 = scalar_select %p1164, %s1163, 3
      %s1166 = smul.addr %s1165, 8
      %s1167 = scalar_lea.vmem %s24, %s1166
      %s1168 = smul.u32 2, %s37
      %s1169 = smul.u32 2, %s37
      %p1170 = scmp.lt.s32.totalorder %s1169, 3
      %s1171 = scalar_select %p1170, %s1169, 3
      %s1172 = smul.addr %s1171, 8
      %s1173 = scalar_lea.vmem %s25, %s1172
      %s1174 = smul.u32 2, %s37
      %v1175 = vld [vmem:[%s1066] sm:$0x7]
      %v1176 = vld [vmem:[%s1066 + $0x4] sm:$0x7]
      %v1177 = vld [vmem:[%s1066 + $0x8] sm:$0x7]
      %v1178 = vld [vmem:[%s1066 + $0xc] sm:$0x7]
      %v1179 = vld [vmem:[%s1066 + $0x10] sm:$0x7]
      %v1180 = vld [vmem:[%s1066 + $0x14] sm:$0x7]
      %v1181 = vld [vmem:[%s1066 + $0x18] sm:$0x7]
      %v1182 = vld [vmem:[%s1066 + $0x1c] sm:$0x7]
      %v1183 = vld [vmem:[%s1066 + $0x20] sm:$0x7]
      %v1184 = vld [vmem:[%s1066 + $0x24] sm:$0x7]
      %v1185 = vld [vmem:[%s1066 + $0x28] sm:$0x7]
      %v1186 = vld [vmem:[%s1066 + $0x2c] sm:$0x7]
      %v1187 = vld [vmem:[%s1066 + $0x30] sm:$0x7]
      %v1188 = vld [vmem:[%s1066 + $0x34] sm:$0x7]
      %v1189 = vld [vmem:[%s1066 + $0x38] sm:$0x7]
      %v1190 = vld [vmem:[%s1066 + $0x3c] sm:$0x7]
      %v1191 = vld [vmem:[%s1072] sm:$0xff]
      %v1192 = vld [vmem:[%s1072 + $0x8] sm:$0xff]
      %v1193 = vld [vmem:[%s1072 + $0x10] sm:$0xff]
      %v1194 = vld [vmem:[%s1072 + $0x18] sm:$0xff]
      %v1195 = vld [vmem:[%s1072 + $0x20] sm:$0xff]
      %v1196 = vld [vmem:[%s1072 + $0x28] sm:$0xff]
      %v1197 = vld [vmem:[%s1072 + $0x30] sm:$0xff]
      %v1198 = vld [vmem:[%s1072 + $0x38] sm:$0xff]
      %v1199 = vld [vmem:[%s1077] sm:$0xff]
      %v1200 = vld [vmem:[%s1077 + $0x8] sm:$0xff]
      %v1201 = vld [vmem:[%s1077 + $0x10] sm:$0xff]
      %v1202 = vld [vmem:[%s1077 + $0x18] sm:$0xff]
      %v1203 = vld [vmem:[%s1077 + $0x20] sm:$0xff]
      %v1204 = vld [vmem:[%s1077 + $0x28] sm:$0xff]
      %v1205 = vld [vmem:[%s1077 + $0x30] sm:$0xff]
      %v1206 = vld [vmem:[%s1077 + $0x38] sm:$0xff]
      %v1207 = vlaneseq
      %v1208 = vshrl.u32 %v1207, 7
      %v1209 = vsub.s32 0, %v1208
      %v1210 = vrot.slane %v1175, %v1209
      %v1211 = vlaneseq
      %v1212 = vshrl.u32 %v1211, 7
      %v1213 = vsub.s32 0, %v1212
      %v1214 = vrot.slane %v1176, %v1213
      %v1215 = vlaneseq
      %v1216 = vshrl.u32 %v1215, 7
      %v1217 = vsub.s32 0, %v1216
      %v1218 = vrot.slane %v1177, %v1217
      %v1219 = vlaneseq
      %v1220 = vshrl.u32 %v1219, 7
      %v1221 = vsub.s32 0, %v1220
      %v1222 = vrot.slane %v1178, %v1221
      %v1223 = vlaneseq
      %v1224 = vshrl.u32 %v1223, 7
      %v1225 = vsub.s32 0, %v1224
      %v1226 = vrot.slane %v1179, %v1225
      %v1227 = vlaneseq
      %v1228 = vshrl.u32 %v1227, 7
      %v1229 = vsub.s32 0, %v1228
      %v1230 = vrot.slane %v1180, %v1229
      %v1231 = vlaneseq
      %v1232 = vshrl.u32 %v1231, 7
      %v1233 = vsub.s32 0, %v1232
      %v1234 = vrot.slane %v1181, %v1233
      %v1235 = vlaneseq
      %v1236 = vshrl.u32 %v1235, 7
      %v1237 = vsub.s32 0, %v1236
      %v1238 = vrot.slane %v1182, %v1237
      %v1239 = vlaneseq
      %v1240 = vshrl.u32 %v1239, 7
      %v1241 = vsub.s32 0, %v1240
      %v1242 = vrot.slane %v1183, %v1241
      %v1243 = vlaneseq
      %v1244 = vshrl.u32 %v1243, 7
      %v1245 = vsub.s32 0, %v1244
      %v1246 = vrot.slane %v1184, %v1245
      %v1247 = vlaneseq
      %v1248 = vshrl.u32 %v1247, 7
      %v1249 = vsub.s32 0, %v1248
      %v1250 = vrot.slane %v1185, %v1249
      %v1251 = vlaneseq
      %v1252 = vshrl.u32 %v1251, 7
      %v1253 = vsub.s32 0, %v1252
      %v1254 = vrot.slane %v1186, %v1253
      %v1255 = vlaneseq
      %v1256 = vshrl.u32 %v1255, 7
      %v1257 = vsub.s32 0, %v1256
      %v1258 = vrot.slane %v1187, %v1257
      %v1259 = vlaneseq
      %v1260 = vshrl.u32 %v1259, 7
      %v1261 = vsub.s32 0, %v1260
      %v1262 = vrot.slane %v1188, %v1261
      %v1263 = vlaneseq
      %v1264 = vshrl.u32 %v1263, 7
      %v1265 = vsub.s32 0, %v1264
      %v1266 = vrot.slane %v1189, %v1265
      %v1267 = vlaneseq
      %v1268 = vshrl.u32 %v1267, 7
      %v1269 = vsub.s32 0, %v1268
      %v1270 = vrot.slane %v1190, %v1269
      %1272 = vset.pattern.permute.xlu0 0
      %1273 = vperm.xlu0 %1272, %v1191
      %v1274 = vpop.permute.xlu0 %1273
      %1277 = vset.pattern.permute.xlu0 0
      %1278 = vperm.xlu0 %1277, %v1192
      %v1279 = vpop.permute.xlu0 %1278
      %1282 = vset.pattern.permute.xlu0 0
      %1283 = vperm.xlu0 %1282, %v1193
      %v1284 = vpop.permute.xlu0 %1283
      %1287 = vset.pattern.permute.xlu0 0
      %1288 = vperm.xlu0 %1287, %v1194
      %v1289 = vpop.permute.xlu0 %1288
      %1292 = vset.pattern.permute.xlu0 0
      %1293 = vperm.xlu0 %1292, %v1195
      %v1294 = vpop.permute.xlu0 %1293
      %1297 = vset.pattern.permute.xlu0 0
      %1298 = vperm.xlu0 %1297, %v1196
      %v1299 = vpop.permute.xlu0 %1298
      %1302 = vset.pattern.permute.xlu0 0
      %1303 = vperm.xlu0 %1302, %v1197
      %v1304 = vpop.permute.xlu0 %1303
      %1307 = vset.pattern.permute.xlu0 0
      %1308 = vperm.xlu0 %1307, %v1198
      %v1309 = vpop.permute.xlu0 %1308
      %v1311 = vmul.f32 %v1210, %v1274
      %v1312 = vmul.f32 %v1210, %v1279
      %v1313 = vmul.f32 %v1210, %v1284
      %v1314 = vmul.f32 %v1210, %v1289
      %v1315 = vmul.f32 %v1210, %v1294
      %v1316 = vmul.f32 %v1210, %v1299
      %v1317 = vmul.f32 %v1210, %v1304
      %v1318 = vmul.f32 %v1210, %v1309
      %v1319 = vmul.f32 %v1214, %v1274
      %v1320 = vmul.f32 %v1214, %v1279
      %v1321 = vmul.f32 %v1214, %v1284
      %v1322 = vmul.f32 %v1214, %v1289
      %v1323 = vmul.f32 %v1214, %v1294
      %v1324 = vmul.f32 %v1214, %v1299
      %v1325 = vmul.f32 %v1214, %v1304
      %v1326 = vmul.f32 %v1214, %v1309
      %v1327 = vmul.f32 %v1218, %v1274
      %v1328 = vmul.f32 %v1218, %v1279
      %v1329 = vmul.f32 %v1218, %v1284
      %v1330 = vmul.f32 %v1218, %v1289
      %v1331 = vmul.f32 %v1218, %v1294
      %v1332 = vmul.f32 %v1218, %v1299
      %v1333 = vmul.f32 %v1218, %v1304
      %v1334 = vmul.f32 %v1218, %v1309
      %v1335 = vmul.f32 %v1222, %v1274
      %v1336 = vmul.f32 %v1222, %v1279
      %v1337 = vmul.f32 %v1222, %v1284
      %v1338 = vmul.f32 %v1222, %v1289
      %v1339 = vmul.f32 %v1222, %v1294
      %v1340 = vmul.f32 %v1222, %v1299
      %v1341 = vmul.f32 %v1222, %v1304
      %v1342 = vmul.f32 %v1222, %v1309
      %v1343 = vmul.f32 %v1226, %v1274
      %v1344 = vmul.f32 %v1226, %v1279
      %v1345 = vmul.f32 %v1226, %v1284
      %v1346 = vmul.f32 %v1226, %v1289
      %v1347 = vmul.f32 %v1226, %v1294
      %v1348 = vmul.f32 %v1226, %v1299
      %v1349 = vmul.f32 %v1226, %v1304
      %v1350 = vmul.f32 %v1226, %v1309
      %v1351 = vmul.f32 %v1230, %v1274
      %v1352 = vmul.f32 %v1230, %v1279
      %v1353 = vmul.f32 %v1230, %v1284
      %v1354 = vmul.f32 %v1230, %v1289
      %v1355 = vmul.f32 %v1230, %v1294
      %v1356 = vmul.f32 %v1230, %v1299
      %v1357 = vmul.f32 %v1230, %v1304
      %v1358 = vmul.f32 %v1230, %v1309
      %v1359 = vmul.f32 %v1234, %v1274
      %v1360 = vmul.f32 %v1234, %v1279
      %v1361 = vmul.f32 %v1234, %v1284
      %v1362 = vmul.f32 %v1234, %v1289
      %v1363 = vmul.f32 %v1234, %v1294
      %v1364 = vmul.f32 %v1234, %v1299
      %v1365 = vmul.f32 %v1234, %v1304
      %v1366 = vmul.f32 %v1234, %v1309
      %v1367 = vmul.f32 %v1238, %v1274
      %v1368 = vmul.f32 %v1238, %v1279
      %v1369 = vmul.f32 %v1238, %v1284
      %v1370 = vmul.f32 %v1238, %v1289
      %v1371 = vmul.f32 %v1238, %v1294
      %v1372 = vmul.f32 %v1238, %v1299
      %v1373 = vmul.f32 %v1238, %v1304
      %v1374 = vmul.f32 %v1238, %v1309
      %v1375 = vmul.f32 %v1242, %v1274
      %v1376 = vmul.f32 %v1242, %v1279
      %v1377 = vmul.f32 %v1242, %v1284
      %v1378 = vmul.f32 %v1242, %v1289
      %v1379 = vmul.f32 %v1242, %v1294
      %v1380 = vmul.f32 %v1242, %v1299
      %v1381 = vmul.f32 %v1242, %v1304
      %v1382 = vmul.f32 %v1242, %v1309
      %v1383 = vmul.f32 %v1246, %v1274
      %v1384 = vmul.f32 %v1246, %v1279
      %v1385 = vmul.f32 %v1246, %v1284
      %v1386 = vmul.f32 %v1246, %v1289
      %v1387 = vmul.f32 %v1246, %v1294
      %v1388 = vmul.f32 %v1246, %v1299
      %v1389 = vmul.f32 %v1246, %v1304
      %v1390 = vmul.f32 %v1246, %v1309
      %v1391 = vmul.f32 %v1250, %v1274
      %v1392 = vmul.f32 %v1250, %v1279
      %v1393 = vmul.f32 %v1250, %v1284
      %v1394 = vmul.f32 %v1250, %v1289
      %v1395 = vmul.f32 %v1250, %v1294
      %v1396 = vmul.f32 %v1250, %v1299
      %v1397 = vmul.f32 %v1250, %v1304
      %v1398 = vmul.f32 %v1250, %v1309
      %v1399 = vmul.f32 %v1254, %v1274
      %v1400 = vmul.f32 %v1254, %v1279
      %v1401 = vmul.f32 %v1254, %v1284
      %v1402 = vmul.f32 %v1254, %v1289
      %v1403 = vmul.f32 %v1254, %v1294
      %v1404 = vmul.f32 %v1254, %v1299
      %v1405 = vmul.f32 %v1254, %v1304
      %v1406 = vmul.f32 %v1254, %v1309
      %v1407 = vmul.f32 %v1258, %v1274
      %v1408 = vmul.f32 %v1258, %v1279
      %v1409 = vmul.f32 %v1258, %v1284
      %v1410 = vmul.f32 %v1258, %v1289
      %v1411 = vmul.f32 %v1258, %v1294
      %v1412 = vmul.f32 %v1258, %v1299
      %v1413 = vmul.f32 %v1258, %v1304
      %v1414 = vmul.f32 %v1258, %v1309
      %v1415 = vmul.f32 %v1262, %v1274
      %v1416 = vmul.f32 %v1262, %v1279
      %v1417 = vmul.f32 %v1262, %v1284
      %v1418 = vmul.f32 %v1262, %v1289
      %v1419 = vmul.f32 %v1262, %v1294
      %v1420 = vmul.f32 %v1262, %v1299
      %v1421 = vmul.f32 %v1262, %v1304
      %v1422 = vmul.f32 %v1262, %v1309
      %v1423 = vmul.f32 %v1266, %v1274
      %v1424 = vmul.f32 %v1266, %v1279
      %v1425 = vmul.f32 %v1266, %v1284
      %v1426 = vmul.f32 %v1266, %v1289
      %v1427 = vmul.f32 %v1266, %v1294
      %v1428 = vmul.f32 %v1266, %v1299
      %v1429 = vmul.f32 %v1266, %v1304
      %v1430 = vmul.f32 %v1266, %v1309
      %v1431 = vmul.f32 %v1270, %v1274
      %v1432 = vmul.f32 %v1270, %v1279
      %v1433 = vmul.f32 %v1270, %v1284
      %v1434 = vmul.f32 %v1270, %v1289
      %v1435 = vmul.f32 %v1270, %v1294
      %v1436 = vmul.f32 %v1270, %v1299
      %v1437 = vmul.f32 %v1270, %v1304
      %v1438 = vmul.f32 %v1270, %v1309
      %1440 = vset.pattern.permute.xlu0 0
      %1441 = vperm.xlu0 %1440, %v1199
      %v1442 = vpop.permute.xlu0 %1441
      %1445 = vset.pattern.permute.xlu0 0
      %1446 = vperm.xlu0 %1445, %v1200
      %v1447 = vpop.permute.xlu0 %1446
      %1450 = vset.pattern.permute.xlu0 0
      %1451 = vperm.xlu0 %1450, %v1201
      %v1452 = vpop.permute.xlu0 %1451
      %1455 = vset.pattern.permute.xlu0 0
      %1456 = vperm.xlu0 %1455, %v1202
      %v1457 = vpop.permute.xlu0 %1456
      %1460 = vset.pattern.permute.xlu0 0
      %1461 = vperm.xlu0 %1460, %v1203
      %v1462 = vpop.permute.xlu0 %1461
      %1465 = vset.pattern.permute.xlu0 0
      %1466 = vperm.xlu0 %1465, %v1204
      %v1467 = vpop.permute.xlu0 %1466
      %1470 = vset.pattern.permute.xlu0 0
      %1471 = vperm.xlu0 %1470, %v1205
      %v1472 = vpop.permute.xlu0 %1471
      %1475 = vset.pattern.permute.xlu0 0
      %1476 = vperm.xlu0 %1475, %v1206
      %v1477 = vpop.permute.xlu0 %1476
      %v1479 = vadd.f32 %v1442, %v1311
      %v1480 = vadd.f32 %v1447, %v1312
      %v1481 = vadd.f32 %v1452, %v1313
      %v1482 = vadd.f32 %v1457, %v1314
      %v1483 = vadd.f32 %v1462, %v1315
      %v1484 = vadd.f32 %v1467, %v1316
      %v1485 = vadd.f32 %v1472, %v1317
      %v1486 = vadd.f32 %v1477, %v1318
      %v1487 = vadd.f32 %v1442, %v1319
      %v1488 = vadd.f32 %v1447, %v1320
      %v1489 = vadd.f32 %v1452, %v1321
      %v1490 = vadd.f32 %v1457, %v1322
      %v1491 = vadd.f32 %v1462, %v1323
      %v1492 = vadd.f32 %v1467, %v1324
      %v1493 = vadd.f32 %v1472, %v1325
      %v1494 = vadd.f32 %v1477, %v1326
      %v1495 = vadd.f32 %v1442, %v1327
      %v1496 = vadd.f32 %v1447, %v1328
      %v1497 = vadd.f32 %v1452, %v1329
      %v1498 = vadd.f32 %v1457, %v1330
      %v1499 = vadd.f32 %v1462, %v1331
      %v1500 = vadd.f32 %v1467, %v1332
      %v1501 = vadd.f32 %v1472, %v1333
      %v1502 = vadd.f32 %v1477, %v1334
      %v1503 = vadd.f32 %v1442, %v1335
      %v1504 = vadd.f32 %v1447, %v1336
      %v1505 = vadd.f32 %v1452, %v1337
      %v1506 = vadd.f32 %v1457, %v1338
      %v1507 = vadd.f32 %v1462, %v1339
      %v1508 = vadd.f32 %v1467, %v1340
      %v1509 = vadd.f32 %v1472, %v1341
      %v1510 = vadd.f32 %v1477, %v1342
      %v1511 = vadd.f32 %v1442, %v1343
      %v1512 = vadd.f32 %v1447, %v1344
      %v1513 = vadd.f32 %v1452, %v1345
      %v1514 = vadd.f32 %v1457, %v1346
      %v1515 = vadd.f32 %v1462, %v1347
      %v1516 = vadd.f32 %v1467, %v1348
      %v1517 = vadd.f32 %v1472, %v1349
      %v1518 = vadd.f32 %v1477, %v1350
      %v1519 = vadd.f32 %v1442, %v1351
      %v1520 = vadd.f32 %v1447, %v1352
      %v1521 = vadd.f32 %v1452, %v1353
      %v1522 = vadd.f32 %v1457, %v1354
      %v1523 = vadd.f32 %v1462, %v1355
      %v1524 = vadd.f32 %v1467, %v1356
      %v1525 = vadd.f32 %v1472, %v1357
      %v1526 = vadd.f32 %v1477, %v1358
      %v1527 = vadd.f32 %v1442, %v1359
      %v1528 = vadd.f32 %v1447, %v1360
      %v1529 = vadd.f32 %v1452, %v1361
      %v1530 = vadd.f32 %v1457, %v1362
      %v1531 = vadd.f32 %v1462, %v1363
      %v1532 = vadd.f32 %v1467, %v1364
      %v1533 = vadd.f32 %v1472, %v1365
      %v1534 = vadd.f32 %v1477, %v1366
      %v1535 = vadd.f32 %v1442, %v1367
      %v1536 = vadd.f32 %v1447, %v1368
      %v1537 = vadd.f32 %v1452, %v1369
      %v1538 = vadd.f32 %v1457, %v1370
      %v1539 = vadd.f32 %v1462, %v1371
      %v1540 = vadd.f32 %v1467, %v1372
      %v1541 = vadd.f32 %v1472, %v1373
      %v1542 = vadd.f32 %v1477, %v1374
      %v1543 = vadd.f32 %v1442, %v1375
      %v1544 = vadd.f32 %v1447, %v1376
      %v1545 = vadd.f32 %v1452, %v1377
      %v1546 = vadd.f32 %v1457, %v1378
      %v1547 = vadd.f32 %v1462, %v1379
      %v1548 = vadd.f32 %v1467, %v1380
      %v1549 = vadd.f32 %v1472, %v1381
      %v1550 = vadd.f32 %v1477, %v1382
      %v1551 = vadd.f32 %v1442, %v1383
      %v1552 = vadd.f32 %v1447, %v1384
      %v1553 = vadd.f32 %v1452, %v1385
      %v1554 = vadd.f32 %v1457, %v1386
      %v1555 = vadd.f32 %v1462, %v1387
      %v1556 = vadd.f32 %v1467, %v1388
      %v1557 = vadd.f32 %v1472, %v1389
      %v1558 = vadd.f32 %v1477, %v1390
      %v1559 = vadd.f32 %v1442, %v1391
      %v1560 = vadd.f32 %v1447, %v1392
      %v1561 = vadd.f32 %v1452, %v1393
      %v1562 = vadd.f32 %v1457, %v1394
      %v1563 = vadd.f32 %v1462, %v1395
      %v1564 = vadd.f32 %v1467, %v1396
      %v1565 = vadd.f32 %v1472, %v1397
      %v1566 = vadd.f32 %v1477, %v1398
      %v1567 = vadd.f32 %v1442, %v1399
      %v1568 = vadd.f32 %v1447, %v1400
      %v1569 = vadd.f32 %v1452, %v1401
      %v1570 = vadd.f32 %v1457, %v1402
      %v1571 = vadd.f32 %v1462, %v1403
      %v1572 = vadd.f32 %v1467, %v1404
      %v1573 = vadd.f32 %v1472, %v1405
      %v1574 = vadd.f32 %v1477, %v1406
      %v1575 = vadd.f32 %v1442, %v1407
      %v1576 = vadd.f32 %v1447, %v1408
      %v1577 = vadd.f32 %v1452, %v1409
      %v1578 = vadd.f32 %v1457, %v1410
      %v1579 = vadd.f32 %v1462, %v1411
      %v1580 = vadd.f32 %v1467, %v1412
      %v1581 = vadd.f32 %v1472, %v1413
      %v1582 = vadd.f32 %v1477, %v1414
      %v1583 = vadd.f32 %v1442, %v1415
      %v1584 = vadd.f32 %v1447, %v1416
      %v1585 = vadd.f32 %v1452, %v1417
      %v1586 = vadd.f32 %v1457, %v1418
      %v1587 = vadd.f32 %v1462, %v1419
      %v1588 = vadd.f32 %v1467, %v1420
      %v1589 = vadd.f32 %v1472, %v1421
      %v1590 = vadd.f32 %v1477, %v1422
      %v1591 = vadd.f32 %v1442, %v1423
      %v1592 = vadd.f32 %v1447, %v1424
      %v1593 = vadd.f32 %v1452, %v1425
      %v1594 = vadd.f32 %v1457, %v1426
      %v1595 = vadd.f32 %v1462, %v1427
      %v1596 = vadd.f32 %v1467, %v1428
      %v1597 = vadd.f32 %v1472, %v1429
      %v1598 = vadd.f32 %v1477, %v1430
      %v1599 = vadd.f32 %v1442, %v1431
      %v1600 = vadd.f32 %v1447, %v1432
      %v1601 = vadd.f32 %v1452, %v1433
      %v1602 = vadd.f32 %v1457, %v1434
      %v1603 = vadd.f32 %v1462, %v1435
      %v1604 = vadd.f32 %v1467, %v1436
      %v1605 = vadd.f32 %v1472, %v1437
      %v1606 = vadd.f32 %v1477, %v1438
      %v1607 = vlaneseq
      %v1608 = vshrl.u32 %v1607, 7
      %v1609 = vsub.s32 1, %v1608
      %v1610 = vrot.slane %v1175, %v1609
      %v1611 = vlaneseq
      %v1612 = vshrl.u32 %v1611, 7
      %v1613 = vsub.s32 1, %v1612
      %v1614 = vrot.slane %v1176, %v1613
      %v1615 = vlaneseq
      %v1616 = vshrl.u32 %v1615, 7
      %v1617 = vsub.s32 1, %v1616
      %v1618 = vrot.slane %v1177, %v1617
      %v1619 = vlaneseq
      %v1620 = vshrl.u32 %v1619, 7
      %v1621 = vsub.s32 1, %v1620
      %v1622 = vrot.slane %v1178, %v1621
      %v1623 = vlaneseq
      %v1624 = vshrl.u32 %v1623, 7
      %v1625 = vsub.s32 1, %v1624
      %v1626 = vrot.slane %v1179, %v1625
      %v1627 = vlaneseq
      %v1628 = vshrl.u32 %v1627, 7
      %v1629 = vsub.s32 1, %v1628
      %v1630 = vrot.slane %v1180, %v1629
      %v1631 = vlaneseq
      %v1632 = vshrl.u32 %v1631, 7
      %v1633 = vsub.s32 1, %v1632
      %v1634 = vrot.slane %v1181, %v1633
      %v1635 = vlaneseq
      %v1636 = vshrl.u32 %v1635, 7
      %v1637 = vsub.s32 1, %v1636
      %v1638 = vrot.slane %v1182, %v1637
      %v1639 = vlaneseq
      %v1640 = vshrl.u32 %v1639, 7
      %v1641 = vsub.s32 1, %v1640
      %v1642 = vrot.slane %v1183, %v1641
      %v1643 = vlaneseq
      %v1644 = vshrl.u32 %v1643, 7
      %v1645 = vsub.s32 1, %v1644
      %v1646 = vrot.slane %v1184, %v1645
      %v1647 = vlaneseq
      %v1648 = vshrl.u32 %v1647, 7
      %v1649 = vsub.s32 1, %v1648
      %v1650 = vrot.slane %v1185, %v1649
      %v1651 = vlaneseq
      %v1652 = vshrl.u32 %v1651, 7
      %v1653 = vsub.s32 1, %v1652
      %v1654 = vrot.slane %v1186, %v1653
      %v1655 = vlaneseq
      %v1656 = vshrl.u32 %v1655, 7
      %v1657 = vsub.s32 1, %v1656
      %v1658 = vrot.slane %v1187, %v1657
      %v1659 = vlaneseq
      %v1660 = vshrl.u32 %v1659, 7
      %v1661 = vsub.s32 1, %v1660
      %v1662 = vrot.slane %v1188, %v1661
      %v1663 = vlaneseq
      %v1664 = vshrl.u32 %v1663, 7
      %v1665 = vsub.s32 1, %v1664
      %v1666 = vrot.slane %v1189, %v1665
      %v1667 = vlaneseq
      %v1668 = vshrl.u32 %v1667, 7
      %v1669 = vsub.s32 1, %v1668
      %v1670 = vrot.slane %v1190, %v1669
      %1671 = vset.pattern.permute.xlu0 1
      %1672 = vperm.xlu0 %1671, %v1191
      %v1673 = vpop.permute.xlu0 %1672
      %1675 = vset.pattern.permute.xlu0 1
      %1676 = vperm.xlu0 %1675, %v1192
      %v1677 = vpop.permute.xlu0 %1676
      %1679 = vset.pattern.permute.xlu0 1
      %1680 = vperm.xlu0 %1679, %v1193
      %v1681 = vpop.permute.xlu0 %1680
      %1683 = vset.pattern.permute.xlu0 1
      %1684 = vperm.xlu0 %1683, %v1194
      %v1685 = vpop.permute.xlu0 %1684
      %1687 = vset.pattern.permute.xlu0 1
      %1688 = vperm.xlu0 %1687, %v1195
      %v1689 = vpop.permute.xlu0 %1688
      %1691 = vset.pattern.permute.xlu0 1
      %1692 = vperm.xlu0 %1691, %v1196
      %v1693 = vpop.permute.xlu0 %1692
      %1695 = vset.pattern.permute.xlu0 1
      %1696 = vperm.xlu0 %1695, %v1197
      %v1697 = vpop.permute.xlu0 %1696
      %1699 = vset.pattern.permute.xlu0 1
      %1700 = vperm.xlu0 %1699, %v1198
      %v1701 = vpop.permute.xlu0 %1700
      %v1703 = vmul.f32 %v1610, %v1673
      %v1704 = vmul.f32 %v1610, %v1677
      %v1705 = vmul.f32 %v1610, %v1681
      %v1706 = vmul.f32 %v1610, %v1685
      %v1707 = vmul.f32 %v1610, %v1689
      %v1708 = vmul.f32 %v1610, %v1693
      %v1709 = vmul.f32 %v1610, %v1697
      %v1710 = vmul.f32 %v1610, %v1701
      %v1711 = vmul.f32 %v1614, %v1673
      %v1712 = vmul.f32 %v1614, %v1677
      %v1713 = vmul.f32 %v1614, %v1681
      %v1714 = vmul.f32 %v1614, %v1685
      %v1715 = vmul.f32 %v1614, %v1689
      %v1716 = vmul.f32 %v1614, %v1693
      %v1717 = vmul.f32 %v1614, %v1697
      %v1718 = vmul.f32 %v1614, %v1701
      %v1719 = vmul.f32 %v1618, %v1673
      %v1720 = vmul.f32 %v1618, %v1677
      %v1721 = vmul.f32 %v1618, %v1681
      %v1722 = vmul.f32 %v1618, %v1685
      %v1723 = vmul.f32 %v1618, %v1689
      %v1724 = vmul.f32 %v1618, %v1693
      %v1725 = vmul.f32 %v1618, %v1697
      %v1726 = vmul.f32 %v1618, %v1701
      %v1727 = vmul.f32 %v1622, %v1673
      %v1728 = vmul.f32 %v1622, %v1677
      %v1729 = vmul.f32 %v1622, %v1681
      %v1730 = vmul.f32 %v1622, %v1685
      %v1731 = vmul.f32 %v1622, %v1689
      %v1732 = vmul.f32 %v1622, %v1693
      %v1733 = vmul.f32 %v1622, %v1697
      %v1734 = vmul.f32 %v1622, %v1701
      %v1735 = vmul.f32 %v1626, %v1673
      %v1736 = vmul.f32 %v1626, %v1677
      %v1737 = vmul.f32 %v1626, %v1681
      %v1738 = vmul.f32 %v1626, %v1685
      %v1739 = vmul.f32 %v1626, %v1689
      %v1740 = vmul.f32 %v1626, %v1693
      %v1741 = vmul.f32 %v1626, %v1697
      %v1742 = vmul.f32 %v1626, %v1701
      %v1743 = vmul.f32 %v1630, %v1673
      %v1744 = vmul.f32 %v1630, %v1677
      %v1745 = vmul.f32 %v1630, %v1681
      %v1746 = vmul.f32 %v1630, %v1685
      %v1747 = vmul.f32 %v1630, %v1689
      %v1748 = vmul.f32 %v1630, %v1693
      %v1749 = vmul.f32 %v1630, %v1697
      %v1750 = vmul.f32 %v1630, %v1701
      %v1751 = vmul.f32 %v1634, %v1673
      %v1752 = vmul.f32 %v1634, %v1677
      %v1753 = vmul.f32 %v1634, %v1681
      %v1754 = vmul.f32 %v1634, %v1685
      %v1755 = vmul.f32 %v1634, %v1689
      %v1756 = vmul.f32 %v1634, %v1693
      %v1757 = vmul.f32 %v1634, %v1697
      %v1758 = vmul.f32 %v1634, %v1701
      %v1759 = vmul.f32 %v1638, %v1673
      %v1760 = vmul.f32 %v1638, %v1677
      %v1761 = vmul.f32 %v1638, %v1681
      %v1762 = vmul.f32 %v1638, %v1685
      %v1763 = vmul.f32 %v1638, %v1689
      %v1764 = vmul.f32 %v1638, %v1693
      %v1765 = vmul.f32 %v1638, %v1697
      %v1766 = vmul.f32 %v1638, %v1701
      %v1767 = vmul.f32 %v1642, %v1673
      %v1768 = vmul.f32 %v1642, %v1677
      %v1769 = vmul.f32 %v1642, %v1681
      %v1770 = vmul.f32 %v1642, %v1685
      %v1771 = vmul.f32 %v1642, %v1689
      %v1772 = vmul.f32 %v1642, %v1693
      %v1773 = vmul.f32 %v1642, %v1697
      %v1774 = vmul.f32 %v1642, %v1701
      %v1775 = vmul.f32 %v1646, %v1673
      %v1776 = vmul.f32 %v1646, %v1677
      %v1777 = vmul.f32 %v1646, %v1681
      %v1778 = vmul.f32 %v1646, %v1685
      %v1779 = vmul.f32 %v1646, %v1689
      %v1780 = vmul.f32 %v1646, %v1693
      %v1781 = vmul.f32 %v1646, %v1697
      %v1782 = vmul.f32 %v1646, %v1701
      %v1783 = vmul.f32 %v1650, %v1673
      %v1784 = vmul.f32 %v1650, %v1677
      %v1785 = vmul.f32 %v1650, %v1681
      %v1786 = vmul.f32 %v1650, %v1685
      %v1787 = vmul.f32 %v1650, %v1689
      %v1788 = vmul.f32 %v1650, %v1693
      %v1789 = vmul.f32 %v1650, %v1697
      %v1790 = vmul.f32 %v1650, %v1701
      %v1791 = vmul.f32 %v1654, %v1673
      %v1792 = vmul.f32 %v1654, %v1677
      %v1793 = vmul.f32 %v1654, %v1681
      %v1794 = vmul.f32 %v1654, %v1685
      %v1795 = vmul.f32 %v1654, %v1689
      %v1796 = vmul.f32 %v1654, %v1693
      %v1797 = vmul.f32 %v1654, %v1697
      %v1798 = vmul.f32 %v1654, %v1701
      %v1799 = vmul.f32 %v1658, %v1673
      %v1800 = vmul.f32 %v1658, %v1677
      %v1801 = vmul.f32 %v1658, %v1681
      %v1802 = vmul.f32 %v1658, %v1685
      %v1803 = vmul.f32 %v1658, %v1689
      %v1804 = vmul.f32 %v1658, %v1693
      %v1805 = vmul.f32 %v1658, %v1697
      %v1806 = vmul.f32 %v1658, %v1701
      %v1807 = vmul.f32 %v1662, %v1673
      %v1808 = vmul.f32 %v1662, %v1677
      %v1809 = vmul.f32 %v1662, %v1681
      %v1810 = vmul.f32 %v1662, %v1685
      %v1811 = vmul.f32 %v1662, %v1689
      %v1812 = vmul.f32 %v1662, %v1693
      %v1813 = vmul.f32 %v1662, %v1697
      %v1814 = vmul.f32 %v1662, %v1701
      %v1815 = vmul.f32 %v1666, %v1673
      %v1816 = vmul.f32 %v1666, %v1677
      %v1817 = vmul.f32 %v1666, %v1681
      %v1818 = vmul.f32 %v1666, %v1685
      %v1819 = vmul.f32 %v1666, %v1689
      %v1820 = vmul.f32 %v1666, %v1693
      %v1821 = vmul.f32 %v1666, %v1697
      %v1822 = vmul.f32 %v1666, %v1701
      %v1823 = vmul.f32 %v1670, %v1673
      %v1824 = vmul.f32 %v1670, %v1677
      %v1825 = vmul.f32 %v1670, %v1681
      %v1826 = vmul.f32 %v1670, %v1685
      %v1827 = vmul.f32 %v1670, %v1689
      %v1828 = vmul.f32 %v1670, %v1693
      %v1829 = vmul.f32 %v1670, %v1697
      %v1830 = vmul.f32 %v1670, %v1701
      %v1831 = vadd.f32 %v1479, %v1703
      %v1832 = vadd.f32 %v1480, %v1704
      %v1833 = vadd.f32 %v1481, %v1705
      %v1834 = vadd.f32 %v1482, %v1706
      %v1835 = vadd.f32 %v1483, %v1707
      %v1836 = vadd.f32 %v1484, %v1708
      %v1837 = vadd.f32 %v1485, %v1709
      %v1838 = vadd.f32 %v1486, %v1710
      %v1839 = vadd.f32 %v1487, %v1711
      %v1840 = vadd.f32 %v1488, %v1712
      %v1841 = vadd.f32 %v1489, %v1713
      %v1842 = vadd.f32 %v1490, %v1714
      %v1843 = vadd.f32 %v1491, %v1715
      %v1844 = vadd.f32 %v1492, %v1716
      %v1845 = vadd.f32 %v1493, %v1717
      %v1846 = vadd.f32 %v1494, %v1718
      %v1847 = vadd.f32 %v1495, %v1719
      %v1848 = vadd.f32 %v1496, %v1720
      %v1849 = vadd.f32 %v1497, %v1721
      %v1850 = vadd.f32 %v1498, %v1722
      %v1851 = vadd.f32 %v1499, %v1723
      %v1852 = vadd.f32 %v1500, %v1724
      %v1853 = vadd.f32 %v1501, %v1725
      %v1854 = vadd.f32 %v1502, %v1726
      %v1855 = vadd.f32 %v1503, %v1727
      %v1856 = vadd.f32 %v1504, %v1728
      %v1857 = vadd.f32 %v1505, %v1729
      %v1858 = vadd.f32 %v1506, %v1730
      %v1859 = vadd.f32 %v1507, %v1731
      %v1860 = vadd.f32 %v1508, %v1732
      %v1861 = vadd.f32 %v1509, %v1733
      %v1862 = vadd.f32 %v1510, %v1734
      %v1863 = vadd.f32 %v1511, %v1735
      %v1864 = vadd.f32 %v1512, %v1736
      %v1865 = vadd.f32 %v1513, %v1737
      %v1866 = vadd.f32 %v1514, %v1738
      %v1867 = vadd.f32 %v1515, %v1739
      %v1868 = vadd.f32 %v1516, %v1740
      %v1869 = vadd.f32 %v1517, %v1741
      %v1870 = vadd.f32 %v1518, %v1742
      %v1871 = vadd.f32 %v1519, %v1743
      %v1872 = vadd.f32 %v1520, %v1744
      %v1873 = vadd.f32 %v1521, %v1745
      %v1874 = vadd.f32 %v1522, %v1746
      %v1875 = vadd.f32 %v1523, %v1747
      %v1876 = vadd.f32 %v1524, %v1748
      %v1877 = vadd.f32 %v1525, %v1749
      %v1878 = vadd.f32 %v1526, %v1750
      %v1879 = vadd.f32 %v1527, %v1751
      %v1880 = vadd.f32 %v1528, %v1752
      %v1881 = vadd.f32 %v1529, %v1753
      %v1882 = vadd.f32 %v1530, %v1754
      %v1883 = vadd.f32 %v1531, %v1755
      %v1884 = vadd.f32 %v1532, %v1756
      %v1885 = vadd.f32 %v1533, %v1757
      %v1886 = vadd.f32 %v1534, %v1758
      %v1887 = vadd.f32 %v1535, %v1759
      %v1888 = vadd.f32 %v1536, %v1760
      %v1889 = vadd.f32 %v1537, %v1761
      %v1890 = vadd.f32 %v1538, %v1762
      %v1891 = vadd.f32 %v1539, %v1763
      %v1892 = vadd.f32 %v1540, %v1764
      %v1893 = vadd.f32 %v1541, %v1765
      %v1894 = vadd.f32 %v1542, %v1766
      %v1895 = vadd.f32 %v1543, %v1767
      %v1896 = vadd.f32 %v1544, %v1768
      %v1897 = vadd.f32 %v1545, %v1769
      %v1898 = vadd.f32 %v1546, %v1770
      %v1899 = vadd.f32 %v1547, %v1771
      %v1900 = vadd.f32 %v1548, %v1772
      %v1901 = vadd.f32 %v1549, %v1773
      %v1902 = vadd.f32 %v1550, %v1774
      %v1903 = vadd.f32 %v1551, %v1775
      %v1904 = vadd.f32 %v1552, %v1776
      %v1905 = vadd.f32 %v1553, %v1777
      %v1906 = vadd.f32 %v1554, %v1778
      %v1907 = vadd.f32 %v1555, %v1779
      %v1908 = vadd.f32 %v1556, %v1780
      %v1909 = vadd.f32 %v1557, %v1781
      %v1910 = vadd.f32 %v1558, %v1782
      %v1911 = vadd.f32 %v1559, %v1783
      %v1912 = vadd.f32 %v1560, %v1784
      %v1913 = vadd.f32 %v1561, %v1785
      %v1914 = vadd.f32 %v1562, %v1786
      %v1915 = vadd.f32 %v1563, %v1787
      %v1916 = vadd.f32 %v1564, %v1788
      %v1917 = vadd.f32 %v1565, %v1789
      %v1918 = vadd.f32 %v1566, %v1790
      %v1919 = vadd.f32 %v1567, %v1791
      %v1920 = vadd.f32 %v1568, %v1792
      %v1921 = vadd.f32 %v1569, %v1793
      %v1922 = vadd.f32 %v1570, %v1794
      %v1923 = vadd.f32 %v1571, %v1795
      %v1924 = vadd.f32 %v1572, %v1796
      %v1925 = vadd.f32 %v1573, %v1797
      %v1926 = vadd.f32 %v1574, %v1798
      %v1927 = vadd.f32 %v1575, %v1799
      %v1928 = vadd.f32 %v1576, %v1800
      %v1929 = vadd.f32 %v1577, %v1801
      %v1930 = vadd.f32 %v1578, %v1802
      %v1931 = vadd.f32 %v1579, %v1803
      %v1932 = vadd.f32 %v1580, %v1804
      %v1933 = vadd.f32 %v1581, %v1805
      %v1934 = vadd.f32 %v1582, %v1806
      %v1935 = vadd.f32 %v1583, %v1807
      %v1936 = vadd.f32 %v1584, %v1808
      %v1937 = vadd.f32 %v1585, %v1809
      %v1938 = vadd.f32 %v1586, %v1810
      %v1939 = vadd.f32 %v1587, %v1811
      %v1940 = vadd.f32 %v1588, %v1812
      %v1941 = vadd.f32 %v1589, %v1813
      %v1942 = vadd.f32 %v1590, %v1814
      %v1943 = vadd.f32 %v1591, %v1815
      %v1944 = vadd.f32 %v1592, %v1816
      %v1945 = vadd.f32 %v1593, %v1817
      %v1946 = vadd.f32 %v1594, %v1818
      %v1947 = vadd.f32 %v1595, %v1819
      %v1948 = vadd.f32 %v1596, %v1820
      %v1949 = vadd.f32 %v1597, %v1821
      %v1950 = vadd.f32 %v1598, %v1822
      %v1951 = vadd.f32 %v1599, %v1823
      %v1952 = vadd.f32 %v1600, %v1824
      %v1953 = vadd.f32 %v1601, %v1825
      %v1954 = vadd.f32 %v1602, %v1826
      %v1955 = vadd.f32 %v1603, %v1827
      %v1956 = vadd.f32 %v1604, %v1828
      %v1957 = vadd.f32 %v1605, %v1829
      %v1958 = vadd.f32 %v1606, %v1830
      %v1959 = vlaneseq
      %v1960 = vshrl.u32 %v1959, 7
      %v1961 = vsub.s32 2, %v1960
      %v1962 = vrot.slane %v1175, %v1961
      %v1963 = vlaneseq
      %v1964 = vshrl.u32 %v1963, 7
      %v1965 = vsub.s32 2, %v1964
      %v1966 = vrot.slane %v1176, %v1965
      %v1967 = vlaneseq
      %v1968 = vshrl.u32 %v1967, 7
      %v1969 = vsub.s32 2, %v1968
      %v1970 = vrot.slane %v1177, %v1969
      %v1971 = vlaneseq
      %v1972 = vshrl.u32 %v1971, 7
      %v1973 = vsub.s32 2, %v1972
      %v1974 = vrot.slane %v1178, %v1973
      %v1975 = vlaneseq
      %v1976 = vshrl.u32 %v1975, 7
      %v1977 = vsub.s32 2, %v1976
      %v1978 = vrot.slane %v1179, %v1977
      %v1979 = vlaneseq
      %v1980 = vshrl.u32 %v1979, 7
      %v1981 = vsub.s32 2, %v1980
      %v1982 = vrot.slane %v1180, %v1981
      %v1983 = vlaneseq
      %v1984 = vshrl.u32 %v1983, 7
      %v1985 = vsub.s32 2, %v1984
      %v1986 = vrot.slane %v1181, %v1985
      %v1987 = vlaneseq
      %v1988 = vshrl.u32 %v1987, 7
      %v1989 = vsub.s32 2, %v1988
      %v1990 = vrot.slane %v1182, %v1989
      %v1991 = vlaneseq
      %v1992 = vshrl.u32 %v1991, 7
      %v1993 = vsub.s32 2, %v1992
      %v1994 = vrot.slane %v1183, %v1993
      %v1995 = vlaneseq
      %v1996 = vshrl.u32 %v1995, 7
      %v1997 = vsub.s32 2, %v1996
      %v1998 = vrot.slane %v1184, %v1997
      %v1999 = vlaneseq
      %v2000 = vshrl.u32 %v1999, 7
      %v2001 = vsub.s32 2, %v2000
      %v2002 = vrot.slane %v1185, %v2001
      %v2003 = vlaneseq
      %v2004 = vshrl.u32 %v2003, 7
      %v2005 = vsub.s32 2, %v2004
      %v2006 = vrot.slane %v1186, %v2005
      %v2007 = vlaneseq
      %v2008 = vshrl.u32 %v2007, 7
      %v2009 = vsub.s32 2, %v2008
      %v2010 = vrot.slane %v1187, %v2009
      %v2011 = vlaneseq
      %v2012 = vshrl.u32 %v2011, 7
      %v2013 = vsub.s32 2, %v2012
      %v2014 = vrot.slane %v1188, %v2013
      %v2015 = vlaneseq
      %v2016 = vshrl.u32 %v2015, 7
      %v2017 = vsub.s32 2, %v2016
      %v2018 = vrot.slane %v1189, %v2017
      %v2019 = vlaneseq
      %v2020 = vshrl.u32 %v2019, 7
      %v2021 = vsub.s32 2, %v2020
      %v2022 = vrot.slane %v1190, %v2021
      %2023 = vset.pattern.permute.xlu0 2
      %2024 = vperm.xlu0 %2023, %v1191
      %v2025 = vpop.permute.xlu0 %2024
      %2027 = vset.pattern.permute.xlu0 2
      %2028 = vperm.xlu0 %2027, %v1192
      %v2029 = vpop.permute.xlu0 %2028
      %2031 = vset.pattern.permute.xlu0 2
      %2032 = vperm.xlu0 %2031, %v1193
      %v2033 = vpop.permute.xlu0 %2032
      %2035 = vset.pattern.permute.xlu0 2
      %2036 = vperm.xlu0 %2035, %v1194
      %v2037 = vpop.permute.xlu0 %2036
      %2039 = vset.pattern.permute.xlu0 2
      %2040 = vperm.xlu0 %2039, %v1195
      %v2041 = vpop.permute.xlu0 %2040
      %2043 = vset.pattern.permute.xlu0 2
      %2044 = vperm.xlu0 %2043, %v1196
      %v2045 = vpop.permute.xlu0 %2044
      %2047 = vset.pattern.permute.xlu0 2
      %2048 = vperm.xlu0 %2047, %v1197
      %v2049 = vpop.permute.xlu0 %2048
      %2051 = vset.pattern.permute.xlu0 2
      %2052 = vperm.xlu0 %2051, %v1198
      %v2053 = vpop.permute.xlu0 %2052
      %v2055 = vmul.f32 %v1962, %v2025
      %v2056 = vmul.f32 %v1962, %v2029
      %v2057 = vmul.f32 %v1962, %v2033
      %v2058 = vmul.f32 %v1962, %v2037
      %v2059 = vmul.f32 %v1962, %v2041
      %v2060 = vmul.f32 %v1962, %v2045
      %v2061 = vmul.f32 %v1962, %v2049
      %v2062 = vmul.f32 %v1962, %v2053
      %v2063 = vmul.f32 %v1966, %v2025
      %v2064 = vmul.f32 %v1966, %v2029
      %v2065 = vmul.f32 %v1966, %v2033
      %v2066 = vmul.f32 %v1966, %v2037
      %v2067 = vmul.f32 %v1966, %v2041
      %v2068 = vmul.f32 %v1966, %v2045
      %v2069 = vmul.f32 %v1966, %v2049
      %v2070 = vmul.f32 %v1966, %v2053
      %v2071 = vmul.f32 %v1970, %v2025
      %v2072 = vmul.f32 %v1970, %v2029
      %v2073 = vmul.f32 %v1970, %v2033
      %v2074 = vmul.f32 %v1970, %v2037
      %v2075 = vmul.f32 %v1970, %v2041
      %v2076 = vmul.f32 %v1970, %v2045
      %v2077 = vmul.f32 %v1970, %v2049
      %v2078 = vmul.f32 %v1970, %v2053
      %v2079 = vmul.f32 %v1974, %v2025
      %v2080 = vmul.f32 %v1974, %v2029
      %v2081 = vmul.f32 %v1974, %v2033
      %v2082 = vmul.f32 %v1974, %v2037
      %v2083 = vmul.f32 %v1974, %v2041
      %v2084 = vmul.f32 %v1974, %v2045
      %v2085 = vmul.f32 %v1974, %v2049
      %v2086 = vmul.f32 %v1974, %v2053
      %v2087 = vmul.f32 %v1978, %v2025
      %v2088 = vmul.f32 %v1978, %v2029
      %v2089 = vmul.f32 %v1978, %v2033
      %v2090 = vmul.f32 %v1978, %v2037
      %v2091 = vmul.f32 %v1978, %v2041
      %v2092 = vmul.f32 %v1978, %v2045
      %v2093 = vmul.f32 %v1978, %v2049
      %v2094 = vmul.f32 %v1978, %v2053
      %v2095 = vmul.f32 %v1982, %v2025
      %v2096 = vmul.f32 %v1982, %v2029
      %v2097 = vmul.f32 %v1982, %v2033
      %v2098 = vmul.f32 %v1982, %v2037
      %v2099 = vmul.f32 %v1982, %v2041
      %v2100 = vmul.f32 %v1982, %v2045
      %v2101 = vmul.f32 %v1982, %v2049
      %v2102 = vmul.f32 %v1982, %v2053
      %v2103 = vmul.f32 %v1986, %v2025
      %v2104 = vmul.f32 %v1986, %v2029
      %v2105 = vmul.f32 %v1986, %v2033
      %v2106 = vmul.f32 %v1986, %v2037
      %v2107 = vmul.f32 %v1986, %v2041
      %v2108 = vmul.f32 %v1986, %v2045
      %v2109 = vmul.f32 %v1986, %v2049
      %v2110 = vmul.f32 %v1986, %v2053
      %v2111 = vmul.f32 %v1990, %v2025
      %v2112 = vmul.f32 %v1990, %v2029
      %v2113 = vmul.f32 %v1990, %v2033
      %v2114 = vmul.f32 %v1990, %v2037
      %v2115 = vmul.f32 %v1990, %v2041
      %v2116 = vmul.f32 %v1990, %v2045
      %v2117 = vmul.f32 %v1990, %v2049
      %v2118 = vmul.f32 %v1990, %v2053
      %v2119 = vmul.f32 %v1994, %v2025
      %v2120 = vmul.f32 %v1994, %v2029
      %v2121 = vmul.f32 %v1994, %v2033
      %v2122 = vmul.f32 %v1994, %v2037
      %v2123 = vmul.f32 %v1994, %v2041
      %v2124 = vmul.f32 %v1994, %v2045
      %v2125 = vmul.f32 %v1994, %v2049
      %v2126 = vmul.f32 %v1994, %v2053
      %v2127 = vmul.f32 %v1998, %v2025
      %v2128 = vmul.f32 %v1998, %v2029
      %v2129 = vmul.f32 %v1998, %v2033
      %v2130 = vmul.f32 %v1998, %v2037
      %v2131 = vmul.f32 %v1998, %v2041
      %v2132 = vmul.f32 %v1998, %v2045
      %v2133 = vmul.f32 %v1998, %v2049
      %v2134 = vmul.f32 %v1998, %v2053
      %v2135 = vmul.f32 %v2002, %v2025
      %v2136 = vmul.f32 %v2002, %v2029
      %v2137 = vmul.f32 %v2002, %v2033
      %v2138 = vmul.f32 %v2002, %v2037
      %v2139 = vmul.f32 %v2002, %v2041
      %v2140 = vmul.f32 %v2002, %v2045
      %v2141 = vmul.f32 %v2002, %v2049
      %v2142 = vmul.f32 %v2002, %v2053
      %v2143 = vmul.f32 %v2006, %v2025
      %v2144 = vmul.f32 %v2006, %v2029
      %v2145 = vmul.f32 %v2006, %v2033
      %v2146 = vmul.f32 %v2006, %v2037
      %v2147 = vmul.f32 %v2006, %v2041
      %v2148 = vmul.f32 %v2006, %v2045
      %v2149 = vmul.f32 %v2006, %v2049
      %v2150 = vmul.f32 %v2006, %v2053
      %v2151 = vmul.f32 %v2010, %v2025
      %v2152 = vmul.f32 %v2010, %v2029
      %v2153 = vmul.f32 %v2010, %v2033
      %v2154 = vmul.f32 %v2010, %v2037
      %v2155 = vmul.f32 %v2010, %v2041
      %v2156 = vmul.f32 %v2010, %v2045
      %v2157 = vmul.f32 %v2010, %v2049
      %v2158 = vmul.f32 %v2010, %v2053
      %v2159 = vmul.f32 %v2014, %v2025
      %v2160 = vmul.f32 %v2014, %v2029
      %v2161 = vmul.f32 %v2014, %v2033
      %v2162 = vmul.f32 %v2014, %v2037
      %v2163 = vmul.f32 %v2014, %v2041
      %v2164 = vmul.f32 %v2014, %v2045
      %v2165 = vmul.f32 %v2014, %v2049
      %v2166 = vmul.f32 %v2014, %v2053
      %v2167 = vmul.f32 %v2018, %v2025
      %v2168 = vmul.f32 %v2018, %v2029
      %v2169 = vmul.f32 %v2018, %v2033
      %v2170 = vmul.f32 %v2018, %v2037
      %v2171 = vmul.f32 %v2018, %v2041
      %v2172 = vmul.f32 %v2018, %v2045
      %v2173 = vmul.f32 %v2018, %v2049
      %v2174 = vmul.f32 %v2018, %v2053
      %v2175 = vmul.f32 %v2022, %v2025
      %v2176 = vmul.f32 %v2022, %v2029
      %v2177 = vmul.f32 %v2022, %v2033
      %v2178 = vmul.f32 %v2022, %v2037
      %v2179 = vmul.f32 %v2022, %v2041
      %v2180 = vmul.f32 %v2022, %v2045
      %v2181 = vmul.f32 %v2022, %v2049
      %v2182 = vmul.f32 %v2022, %v2053
      %v2183 = vadd.f32 %v1831, %v2055
      %v2184 = vadd.f32 %v1832, %v2056
      %v2185 = vadd.f32 %v1833, %v2057
      %v2186 = vadd.f32 %v1834, %v2058
      %v2187 = vadd.f32 %v1835, %v2059
      %v2188 = vadd.f32 %v1836, %v2060
      %v2189 = vadd.f32 %v1837, %v2061
      %v2190 = vadd.f32 %v1838, %v2062
      %v2191 = vadd.f32 %v1839, %v2063
      %v2192 = vadd.f32 %v1840, %v2064
      %v2193 = vadd.f32 %v1841, %v2065
      %v2194 = vadd.f32 %v1842, %v2066
      %v2195 = vadd.f32 %v1843, %v2067
      %v2196 = vadd.f32 %v1844, %v2068
      %v2197 = vadd.f32 %v1845, %v2069
      %v2198 = vadd.f32 %v1846, %v2070
      %v2199 = vadd.f32 %v1847, %v2071
      %v2200 = vadd.f32 %v1848, %v2072
      %v2201 = vadd.f32 %v1849, %v2073
      %v2202 = vadd.f32 %v1850, %v2074
      %v2203 = vadd.f32 %v1851, %v2075
      %v2204 = vadd.f32 %v1852, %v2076
      %v2205 = vadd.f32 %v1853, %v2077
      %v2206 = vadd.f32 %v1854, %v2078
      %v2207 = vadd.f32 %v1855, %v2079
      %v2208 = vadd.f32 %v1856, %v2080
      %v2209 = vadd.f32 %v1857, %v2081
      %v2210 = vadd.f32 %v1858, %v2082
      %v2211 = vadd.f32 %v1859, %v2083
      %v2212 = vadd.f32 %v1860, %v2084
      %v2213 = vadd.f32 %v1861, %v2085
      %v2214 = vadd.f32 %v1862, %v2086
      %v2215 = vadd.f32 %v1863, %v2087
      %v2216 = vadd.f32 %v1864, %v2088
      %v2217 = vadd.f32 %v1865, %v2089
      %v2218 = vadd.f32 %v1866, %v2090
      %v2219 = vadd.f32 %v1867, %v2091
      %v2220 = vadd.f32 %v1868, %v2092
      %v2221 = vadd.f32 %v1869, %v2093
      %v2222 = vadd.f32 %v1870, %v2094
      %v2223 = vadd.f32 %v1871, %v2095
      %v2224 = vadd.f32 %v1872, %v2096
      %v2225 = vadd.f32 %v1873, %v2097
      %v2226 = vadd.f32 %v1874, %v2098
      %v2227 = vadd.f32 %v1875, %v2099
      %v2228 = vadd.f32 %v1876, %v2100
      %v2229 = vadd.f32 %v1877, %v2101
      %v2230 = vadd.f32 %v1878, %v2102
      %v2231 = vadd.f32 %v1879, %v2103
      %v2232 = vadd.f32 %v1880, %v2104
      %v2233 = vadd.f32 %v1881, %v2105
      %v2234 = vadd.f32 %v1882, %v2106
      %v2235 = vadd.f32 %v1883, %v2107
      %v2236 = vadd.f32 %v1884, %v2108
      %v2237 = vadd.f32 %v1885, %v2109
      %v2238 = vadd.f32 %v1886, %v2110
      %v2239 = vadd.f32 %v1887, %v2111
      %v2240 = vadd.f32 %v1888, %v2112
      %v2241 = vadd.f32 %v1889, %v2113
      %v2242 = vadd.f32 %v1890, %v2114
      %v2243 = vadd.f32 %v1891, %v2115
      %v2244 = vadd.f32 %v1892, %v2116
      %v2245 = vadd.f32 %v1893, %v2117
      %v2246 = vadd.f32 %v1894, %v2118
      %v2247 = vadd.f32 %v1895, %v2119
      %v2248 = vadd.f32 %v1896, %v2120
      %v2249 = vadd.f32 %v1897, %v2121
      %v2250 = vadd.f32 %v1898, %v2122
      %v2251 = vadd.f32 %v1899, %v2123
      %v2252 = vadd.f32 %v1900, %v2124
      %v2253 = vadd.f32 %v1901, %v2125
      %v2254 = vadd.f32 %v1902, %v2126
      %v2255 = vadd.f32 %v1903, %v2127
      %v2256 = vadd.f32 %v1904, %v2128
      %v2257 = vadd.f32 %v1905, %v2129
      %v2258 = vadd.f32 %v1906, %v2130
      %v2259 = vadd.f32 %v1907, %v2131
      %v2260 = vadd.f32 %v1908, %v2132
      %v2261 = vadd.f32 %v1909, %v2133
      %v2262 = vadd.f32 %v1910, %v2134
      %v2263 = vadd.f32 %v1911, %v2135
      %v2264 = vadd.f32 %v1912, %v2136
      %v2265 = vadd.f32 %v1913, %v2137
      %v2266 = vadd.f32 %v1914, %v2138
      %v2267 = vadd.f32 %v1915, %v2139
      %v2268 = vadd.f32 %v1916, %v2140
      %v2269 = vadd.f32 %v1917, %v2141
      %v2270 = vadd.f32 %v1918, %v2142
      %v2271 = vadd.f32 %v1919, %v2143
      %v2272 = vadd.f32 %v1920, %v2144
      %v2273 = vadd.f32 %v1921, %v2145
      %v2274 = vadd.f32 %v1922, %v2146
      %v2275 = vadd.f32 %v1923, %v2147
      %v2276 = vadd.f32 %v1924, %v2148
      %v2277 = vadd.f32 %v1925, %v2149
      %v2278 = vadd.f32 %v1926, %v2150
      %v2279 = vadd.f32 %v1927, %v2151
      %v2280 = vadd.f32 %v1928, %v2152
      %v2281 = vadd.f32 %v1929, %v2153
      %v2282 = vadd.f32 %v1930, %v2154
      %v2283 = vadd.f32 %v1931, %v2155
      %v2284 = vadd.f32 %v1932, %v2156
      %v2285 = vadd.f32 %v1933, %v2157
      %v2286 = vadd.f32 %v1934, %v2158
      %v2287 = vadd.f32 %v1935, %v2159
      %v2288 = vadd.f32 %v1936, %v2160
      %v2289 = vadd.f32 %v1937, %v2161
      %v2290 = vadd.f32 %v1938, %v2162
      %v2291 = vadd.f32 %v1939, %v2163
      %v2292 = vadd.f32 %v1940, %v2164
      %v2293 = vadd.f32 %v1941, %v2165
      %v2294 = vadd.f32 %v1942, %v2166
      %v2295 = vadd.f32 %v1943, %v2167
      %v2296 = vadd.f32 %v1944, %v2168
      %v2297 = vadd.f32 %v1945, %v2169
      %v2298 = vadd.f32 %v1946, %v2170
      %v2299 = vadd.f32 %v1947, %v2171
      %v2300 = vadd.f32 %v1948, %v2172
      %v2301 = vadd.f32 %v1949, %v2173
      %v2302 = vadd.f32 %v1950, %v2174
      %v2303 = vadd.f32 %v1951, %v2175
      %v2304 = vadd.f32 %v1952, %v2176
      %v2305 = vadd.f32 %v1953, %v2177
      %v2306 = vadd.f32 %v1954, %v2178
      %v2307 = vadd.f32 %v1955, %v2179
      %v2308 = vadd.f32 %v1956, %v2180
      %v2309 = vadd.f32 %v1957, %v2181
      %v2310 = vadd.f32 %v1958, %v2182
      %v2311 = vmax.f32 %v2183, 0.0
      %v2312 = vmax.f32 %v2184, 0.0
      %v2313 = vmax.f32 %v2185, 0.0
      %v2314 = vmax.f32 %v2186, 0.0
      %v2315 = vmax.f32 %v2187, 0.0
      %v2316 = vmax.f32 %v2188, 0.0
      %v2317 = vmax.f32 %v2189, 0.0
      %v2318 = vmax.f32 %v2190, 0.0
      %v2319 = vmax.f32 %v2191, 0.0
      %v2320 = vmax.f32 %v2192, 0.0
      %v2321 = vmax.f32 %v2193, 0.0
      %v2322 = vmax.f32 %v2194, 0.0
      %v2323 = vmax.f32 %v2195, 0.0
      %v2324 = vmax.f32 %v2196, 0.0
      %v2325 = vmax.f32 %v2197, 0.0
      %v2326 = vmax.f32 %v2198, 0.0
      %v2327 = vmax.f32 %v2199, 0.0
      %v2328 = vmax.f32 %v2200, 0.0
      %v2329 = vmax.f32 %v2201, 0.0
      %v2330 = vmax.f32 %v2202, 0.0
      %v2331 = vmax.f32 %v2203, 0.0
      %v2332 = vmax.f32 %v2204, 0.0
      %v2333 = vmax.f32 %v2205, 0.0
      %v2334 = vmax.f32 %v2206, 0.0
      %v2335 = vmax.f32 %v2207, 0.0
      %v2336 = vmax.f32 %v2208, 0.0
      %v2337 = vmax.f32 %v2209, 0.0
      %v2338 = vmax.f32 %v2210, 0.0
      %v2339 = vmax.f32 %v2211, 0.0
      %v2340 = vmax.f32 %v2212, 0.0
      %v2341 = vmax.f32 %v2213, 0.0
      %v2342 = vmax.f32 %v2214, 0.0
      %v2343 = vmax.f32 %v2215, 0.0
      %v2344 = vmax.f32 %v2216, 0.0
      %v2345 = vmax.f32 %v2217, 0.0
      %v2346 = vmax.f32 %v2218, 0.0
      %v2347 = vmax.f32 %v2219, 0.0
      %v2348 = vmax.f32 %v2220, 0.0
      %v2349 = vmax.f32 %v2221, 0.0
      %v2350 = vmax.f32 %v2222, 0.0
      %v2351 = vmax.f32 %v2223, 0.0
      %v2352 = vmax.f32 %v2224, 0.0
      %v2353 = vmax.f32 %v2225, 0.0
      %v2354 = vmax.f32 %v2226, 0.0
      %v2355 = vmax.f32 %v2227, 0.0
      %v2356 = vmax.f32 %v2228, 0.0
      %v2357 = vmax.f32 %v2229, 0.0
      %v2358 = vmax.f32 %v2230, 0.0
      %v2359 = vmax.f32 %v2231, 0.0
      %v2360 = vmax.f32 %v2232, 0.0
      %v2361 = vmax.f32 %v2233, 0.0
      %v2362 = vmax.f32 %v2234, 0.0
      %v2363 = vmax.f32 %v2235, 0.0
      %v2364 = vmax.f32 %v2236, 0.0
      %v2365 = vmax.f32 %v2237, 0.0
      %v2366 = vmax.f32 %v2238, 0.0
      %v2367 = vmax.f32 %v2239, 0.0
      %v2368 = vmax.f32 %v2240, 0.0
      %v2369 = vmax.f32 %v2241, 0.0
      %v2370 = vmax.f32 %v2242, 0.0
      %v2371 = vmax.f32 %v2243, 0.0
      %v2372 = vmax.f32 %v2244, 0.0
      %v2373 = vmax.f32 %v2245, 0.0
      %v2374 = vmax.f32 %v2246, 0.0
      %v2375 = vmax.f32 %v2247, 0.0
      %v2376 = vmax.f32 %v2248, 0.0
      %v2377 = vmax.f32 %v2249, 0.0
      %v2378 = vmax.f32 %v2250, 0.0
      %v2379 = vmax.f32 %v2251, 0.0
      %v2380 = vmax.f32 %v2252, 0.0
      %v2381 = vmax.f32 %v2253, 0.0
      %v2382 = vmax.f32 %v2254, 0.0
      %v2383 = vmax.f32 %v2255, 0.0
      %v2384 = vmax.f32 %v2256, 0.0
      %v2385 = vmax.f32 %v2257, 0.0
      %v2386 = vmax.f32 %v2258, 0.0
      %v2387 = vmax.f32 %v2259, 0.0
      %v2388 = vmax.f32 %v2260, 0.0
      %v2389 = vmax.f32 %v2261, 0.0
      %v2390 = vmax.f32 %v2262, 0.0
      %v2391 = vmax.f32 %v2263, 0.0
      %v2392 = vmax.f32 %v2264, 0.0
      %v2393 = vmax.f32 %v2265, 0.0
      %v2394 = vmax.f32 %v2266, 0.0
      %v2395 = vmax.f32 %v2267, 0.0
      %v2396 = vmax.f32 %v2268, 0.0
      %v2397 = vmax.f32 %v2269, 0.0
      %v2398 = vmax.f32 %v2270, 0.0
      %v2399 = vmax.f32 %v2271, 0.0
      %v2400 = vmax.f32 %v2272, 0.0
      %v2401 = vmax.f32 %v2273, 0.0
      %v2402 = vmax.f32 %v2274, 0.0
      %v2403 = vmax.f32 %v2275, 0.0
      %v2404 = vmax.f32 %v2276, 0.0
      %v2405 = vmax.f32 %v2277, 0.0
      %v2406 = vmax.f32 %v2278, 0.0
      %v2407 = vmax.f32 %v2279, 0.0
      %v2408 = vmax.f32 %v2280, 0.0
      %v2409 = vmax.f32 %v2281, 0.0
      %v2410 = vmax.f32 %v2282, 0.0
      %v2411 = vmax.f32 %v2283, 0.0
      %v2412 = vmax.f32 %v2284, 0.0
      %v2413 = vmax.f32 %v2285, 0.0
      %v2414 = vmax.f32 %v2286, 0.0
      %v2415 = vmax.f32 %v2287, 0.0
      %v2416 = vmax.f32 %v2288, 0.0
      %v2417 = vmax.f32 %v2289, 0.0
      %v2418 = vmax.f32 %v2290, 0.0
      %v2419 = vmax.f32 %v2291, 0.0
      %v2420 = vmax.f32 %v2292, 0.0
      %v2421 = vmax.f32 %v2293, 0.0
      %v2422 = vmax.f32 %v2294, 0.0
      %v2423 = vmax.f32 %v2295, 0.0
      %v2424 = vmax.f32 %v2296, 0.0
      %v2425 = vmax.f32 %v2297, 0.0
      %v2426 = vmax.f32 %v2298, 0.0
      %v2427 = vmax.f32 %v2299, 0.0
      %v2428 = vmax.f32 %v2300, 0.0
      %v2429 = vmax.f32 %v2301, 0.0
      %v2430 = vmax.f32 %v2302, 0.0
      %v2431 = vmax.f32 %v2303, 0.0
      %v2432 = vmax.f32 %v2304, 0.0
      %v2433 = vmax.f32 %v2305, 0.0
      %v2434 = vmax.f32 %v2306, 0.0
      %v2435 = vmax.f32 %v2307, 0.0
      %v2436 = vmax.f32 %v2308, 0.0
      %v2437 = vmax.f32 %v2309, 0.0
      %v2438 = vmax.f32 %v2310, 0.0
      %2439 = vadd.xlane.f32.xlu0 %v2311
      %v2440 = vpop.xlane.xlu0 %2439
      %2441 = vadd.xlane.f32.xlu0 %v2312
      %v2442 = vpop.xlane.xlu0 %2441
      %2443 = vadd.xlane.f32.xlu0 %v2313
      %v2444 = vpop.xlane.xlu0 %2443
      %2445 = vadd.xlane.f32.xlu0 %v2314
      %v2446 = vpop.xlane.xlu0 %2445
      %2447 = vadd.xlane.f32.xlu0 %v2315
      %v2448 = vpop.xlane.xlu0 %2447
      %2449 = vadd.xlane.f32.xlu0 %v2316
      %v2450 = vpop.xlane.xlu0 %2449
      %2451 = vadd.xlane.f32.xlu0 %v2317
      %v2452 = vpop.xlane.xlu0 %2451
      %2453 = vadd.xlane.f32.xlu0 %v2318
      %v2454 = vpop.xlane.xlu0 %2453
      %2455 = vadd.xlane.f32.xlu0 %v2319
      %v2456 = vpop.xlane.xlu0 %2455
      %2457 = vadd.xlane.f32.xlu0 %v2320
      %v2458 = vpop.xlane.xlu0 %2457
      %2459 = vadd.xlane.f32.xlu0 %v2321
      %v2460 = vpop.xlane.xlu0 %2459
      %2461 = vadd.xlane.f32.xlu0 %v2322
      %v2462 = vpop.xlane.xlu0 %2461
      %2463 = vadd.xlane.f32.xlu0 %v2323
      %v2464 = vpop.xlane.xlu0 %2463
      %2465 = vadd.xlane.f32.xlu0 %v2324
      %v2466 = vpop.xlane.xlu0 %2465
      %2467 = vadd.xlane.f32.xlu0 %v2325
      %v2468 = vpop.xlane.xlu0 %2467
      %2469 = vadd.xlane.f32.xlu0 %v2326
      %v2470 = vpop.xlane.xlu0 %2469
      %2471 = vadd.xlane.f32.xlu0 %v2327
      %v2472 = vpop.xlane.xlu0 %2471
      %2473 = vadd.xlane.f32.xlu0 %v2328
      %v2474 = vpop.xlane.xlu0 %2473
      %2475 = vadd.xlane.f32.xlu0 %v2329
      %v2476 = vpop.xlane.xlu0 %2475
      %2477 = vadd.xlane.f32.xlu0 %v2330
      %v2478 = vpop.xlane.xlu0 %2477
      %2479 = vadd.xlane.f32.xlu0 %v2331
      %v2480 = vpop.xlane.xlu0 %2479
      %2481 = vadd.xlane.f32.xlu0 %v2332
      %v2482 = vpop.xlane.xlu0 %2481
      %2483 = vadd.xlane.f32.xlu0 %v2333
      %v2484 = vpop.xlane.xlu0 %2483
      %2485 = vadd.xlane.f32.xlu0 %v2334
      %v2486 = vpop.xlane.xlu0 %2485
      %2487 = vadd.xlane.f32.xlu0 %v2335
      %v2488 = vpop.xlane.xlu0 %2487
      %2489 = vadd.xlane.f32.xlu0 %v2336
      %v2490 = vpop.xlane.xlu0 %2489
      %2491 = vadd.xlane.f32.xlu0 %v2337
      %v2492 = vpop.xlane.xlu0 %2491
      %2493 = vadd.xlane.f32.xlu0 %v2338
      %v2494 = vpop.xlane.xlu0 %2493
      %2495 = vadd.xlane.f32.xlu0 %v2339
      %v2496 = vpop.xlane.xlu0 %2495
      %2497 = vadd.xlane.f32.xlu0 %v2340
      %v2498 = vpop.xlane.xlu0 %2497
      %2499 = vadd.xlane.f32.xlu0 %v2341
      %v2500 = vpop.xlane.xlu0 %2499
      %2501 = vadd.xlane.f32.xlu0 %v2342
      %v2502 = vpop.xlane.xlu0 %2501
      %2503 = vadd.xlane.f32.xlu0 %v2343
      %v2504 = vpop.xlane.xlu0 %2503
      %2505 = vadd.xlane.f32.xlu0 %v2344
      %v2506 = vpop.xlane.xlu0 %2505
      %2507 = vadd.xlane.f32.xlu0 %v2345
      %v2508 = vpop.xlane.xlu0 %2507
      %2509 = vadd.xlane.f32.xlu0 %v2346
      %v2510 = vpop.xlane.xlu0 %2509
      %2511 = vadd.xlane.f32.xlu0 %v2347
      %v2512 = vpop.xlane.xlu0 %2511
      %2513 = vadd.xlane.f32.xlu0 %v2348
      %v2514 = vpop.xlane.xlu0 %2513
      %2515 = vadd.xlane.f32.xlu0 %v2349
      %v2516 = vpop.xlane.xlu0 %2515
      %2517 = vadd.xlane.f32.xlu0 %v2350
      %v2518 = vpop.xlane.xlu0 %2517
      %2519 = vadd.xlane.f32.xlu0 %v2351
      %v2520 = vpop.xlane.xlu0 %2519
      %2521 = vadd.xlane.f32.xlu0 %v2352
      %v2522 = vpop.xlane.xlu0 %2521
      %2523 = vadd.xlane.f32.xlu0 %v2353
      %v2524 = vpop.xlane.xlu0 %2523
      %2525 = vadd.xlane.f32.xlu0 %v2354
      %v2526 = vpop.xlane.xlu0 %2525
      %2527 = vadd.xlane.f32.xlu0 %v2355
      %v2528 = vpop.xlane.xlu0 %2527
      %2529 = vadd.xlane.f32.xlu0 %v2356
      %v2530 = vpop.xlane.xlu0 %2529
      %2531 = vadd.xlane.f32.xlu0 %v2357
      %v2532 = vpop.xlane.xlu0 %2531
      %2533 = vadd.xlane.f32.xlu0 %v2358
      %v2534 = vpop.xlane.xlu0 %2533
      %2535 = vadd.xlane.f32.xlu0 %v2359
      %v2536 = vpop.xlane.xlu0 %2535
      %2537 = vadd.xlane.f32.xlu0 %v2360
      %v2538 = vpop.xlane.xlu0 %2537
      %2539 = vadd.xlane.f32.xlu0 %v2361
      %v2540 = vpop.xlane.xlu0 %2539
      %2541 = vadd.xlane.f32.xlu0 %v2362
      %v2542 = vpop.xlane.xlu0 %2541
      %2543 = vadd.xlane.f32.xlu0 %v2363
      %v2544 = vpop.xlane.xlu0 %2543
      %2545 = vadd.xlane.f32.xlu0 %v2364
      %v2546 = vpop.xlane.xlu0 %2545
      %2547 = vadd.xlane.f32.xlu0 %v2365
      %v2548 = vpop.xlane.xlu0 %2547
      %2549 = vadd.xlane.f32.xlu0 %v2366
      %v2550 = vpop.xlane.xlu0 %2549
      %2551 = vadd.xlane.f32.xlu0 %v2367
      %v2552 = vpop.xlane.xlu0 %2551
      %2553 = vadd.xlane.f32.xlu0 %v2368
      %v2554 = vpop.xlane.xlu0 %2553
      %2555 = vadd.xlane.f32.xlu0 %v2369
      %v2556 = vpop.xlane.xlu0 %2555
      %2557 = vadd.xlane.f32.xlu0 %v2370
      %v2558 = vpop.xlane.xlu0 %2557
      %2559 = vadd.xlane.f32.xlu0 %v2371
      %v2560 = vpop.xlane.xlu0 %2559
      %2561 = vadd.xlane.f32.xlu0 %v2372
      %v2562 = vpop.xlane.xlu0 %2561
      %2563 = vadd.xlane.f32.xlu0 %v2373
      %v2564 = vpop.xlane.xlu0 %2563
      %2565 = vadd.xlane.f32.xlu0 %v2374
      %v2566 = vpop.xlane.xlu0 %2565
      %2567 = vadd.xlane.f32.xlu0 %v2375
      %v2568 = vpop.xlane.xlu0 %2567
      %2569 = vadd.xlane.f32.xlu0 %v2376
      %v2570 = vpop.xlane.xlu0 %2569
      %2571 = vadd.xlane.f32.xlu0 %v2377
      %v2572 = vpop.xlane.xlu0 %2571
      %2573 = vadd.xlane.f32.xlu0 %v2378
      %v2574 = vpop.xlane.xlu0 %2573
      %2575 = vadd.xlane.f32.xlu0 %v2379
      %v2576 = vpop.xlane.xlu0 %2575
      %2577 = vadd.xlane.f32.xlu0 %v2380
      %v2578 = vpop.xlane.xlu0 %2577
      %2579 = vadd.xlane.f32.xlu0 %v2381
      %v2580 = vpop.xlane.xlu0 %2579
      %2581 = vadd.xlane.f32.xlu0 %v2382
      %v2582 = vpop.xlane.xlu0 %2581
      %2583 = vadd.xlane.f32.xlu0 %v2383
      %v2584 = vpop.xlane.xlu0 %2583
      %2585 = vadd.xlane.f32.xlu0 %v2384
      %v2586 = vpop.xlane.xlu0 %2585
      %2587 = vadd.xlane.f32.xlu0 %v2385
      %v2588 = vpop.xlane.xlu0 %2587
      %2589 = vadd.xlane.f32.xlu0 %v2386
      %v2590 = vpop.xlane.xlu0 %2589
      %2591 = vadd.xlane.f32.xlu0 %v2387
      %v2592 = vpop.xlane.xlu0 %2591
      %2593 = vadd.xlane.f32.xlu0 %v2388
      %v2594 = vpop.xlane.xlu0 %2593
      %2595 = vadd.xlane.f32.xlu0 %v2389
      %v2596 = vpop.xlane.xlu0 %2595
      %2597 = vadd.xlane.f32.xlu0 %v2390
      %v2598 = vpop.xlane.xlu0 %2597
      %2599 = vadd.xlane.f32.xlu0 %v2391
      %v2600 = vpop.xlane.xlu0 %2599
      %2601 = vadd.xlane.f32.xlu0 %v2392
      %v2602 = vpop.xlane.xlu0 %2601
      %2603 = vadd.xlane.f32.xlu0 %v2393
      %v2604 = vpop.xlane.xlu0 %2603
      %2605 = vadd.xlane.f32.xlu0 %v2394
      %v2606 = vpop.xlane.xlu0 %2605
      %2607 = vadd.xlane.f32.xlu0 %v2395
      %v2608 = vpop.xlane.xlu0 %2607
      %2609 = vadd.xlane.f32.xlu0 %v2396
      %v2610 = vpop.xlane.xlu0 %2609
      %2611 = vadd.xlane.f32.xlu0 %v2397
      %v2612 = vpop.xlane.xlu0 %2611
      %2613 = vadd.xlane.f32.xlu0 %v2398
      %v2614 = vpop.xlane.xlu0 %2613
      %2615 = vadd.xlane.f32.xlu0 %v2399
      %v2616 = vpop.xlane.xlu0 %2615
      %2617 = vadd.xlane.f32.xlu0 %v2400
      %v2618 = vpop.xlane.xlu0 %2617
      %2619 = vadd.xlane.f32.xlu0 %v2401
      %v2620 = vpop.xlane.xlu0 %2619
      %2621 = vadd.xlane.f32.xlu0 %v2402
      %v2622 = vpop.xlane.xlu0 %2621
      %2623 = vadd.xlane.f32.xlu0 %v2403
      %v2624 = vpop.xlane.xlu0 %2623
      %2625 = vadd.xlane.f32.xlu0 %v2404
      %v2626 = vpop.xlane.xlu0 %2625
      %2627 = vadd.xlane.f32.xlu0 %v2405
      %v2628 = vpop.xlane.xlu0 %2627
      %2629 = vadd.xlane.f32.xlu0 %v2406
      %v2630 = vpop.xlane.xlu0 %2629
      %2631 = vadd.xlane.f32.xlu0 %v2407
      %v2632 = vpop.xlane.xlu0 %2631
      %2633 = vadd.xlane.f32.xlu0 %v2408
      %v2634 = vpop.xlane.xlu0 %2633
      %2635 = vadd.xlane.f32.xlu0 %v2409
      %v2636 = vpop.xlane.xlu0 %2635
      %2637 = vadd.xlane.f32.xlu0 %v2410
      %v2638 = vpop.xlane.xlu0 %2637
      %2639 = vadd.xlane.f32.xlu0 %v2411
      %v2640 = vpop.xlane.xlu0 %2639
      %2641 = vadd.xlane.f32.xlu0 %v2412
      %v2642 = vpop.xlane.xlu0 %2641
      %2643 = vadd.xlane.f32.xlu0 %v2413
      %v2644 = vpop.xlane.xlu0 %2643
      %2645 = vadd.xlane.f32.xlu0 %v2414
      %v2646 = vpop.xlane.xlu0 %2645
      %2647 = vadd.xlane.f32.xlu0 %v2415
      %v2648 = vpop.xlane.xlu0 %2647
      %2649 = vadd.xlane.f32.xlu0 %v2416
      %v2650 = vpop.xlane.xlu0 %2649
      %2651 = vadd.xlane.f32.xlu0 %v2417
      %v2652 = vpop.xlane.xlu0 %2651
      %2653 = vadd.xlane.f32.xlu0 %v2418
      %v2654 = vpop.xlane.xlu0 %2653
      %2655 = vadd.xlane.f32.xlu0 %v2419
      %v2656 = vpop.xlane.xlu0 %2655
      %2657 = vadd.xlane.f32.xlu0 %v2420
      %v2658 = vpop.xlane.xlu0 %2657
      %2659 = vadd.xlane.f32.xlu0 %v2421
      %v2660 = vpop.xlane.xlu0 %2659
      %2661 = vadd.xlane.f32.xlu0 %v2422
      %v2662 = vpop.xlane.xlu0 %2661
      %2663 = vadd.xlane.f32.xlu0 %v2423
      %v2664 = vpop.xlane.xlu0 %2663
      %2665 = vadd.xlane.f32.xlu0 %v2424
      %v2666 = vpop.xlane.xlu0 %2665
      %2667 = vadd.xlane.f32.xlu0 %v2425
      %v2668 = vpop.xlane.xlu0 %2667
      %2669 = vadd.xlane.f32.xlu0 %v2426
      %v2670 = vpop.xlane.xlu0 %2669
      %2671 = vadd.xlane.f32.xlu0 %v2427
      %v2672 = vpop.xlane.xlu0 %2671
      %2673 = vadd.xlane.f32.xlu0 %v2428
      %v2674 = vpop.xlane.xlu0 %2673
      %2675 = vadd.xlane.f32.xlu0 %v2429
      %v2676 = vpop.xlane.xlu0 %2675
      %2677 = vadd.xlane.f32.xlu0 %v2430
      %v2678 = vpop.xlane.xlu0 %2677
      %2679 = vadd.xlane.f32.xlu0 %v2431
      %v2680 = vpop.xlane.xlu0 %2679
      %2681 = vadd.xlane.f32.xlu0 %v2432
      %v2682 = vpop.xlane.xlu0 %2681
      %2683 = vadd.xlane.f32.xlu0 %v2433
      %v2684 = vpop.xlane.xlu0 %2683
      %2685 = vadd.xlane.f32.xlu0 %v2434
      %v2686 = vpop.xlane.xlu0 %2685
      %2687 = vadd.xlane.f32.xlu0 %v2435
      %v2688 = vpop.xlane.xlu0 %2687
      %2689 = vadd.xlane.f32.xlu0 %v2436
      %v2690 = vpop.xlane.xlu0 %2689
      %2691 = vadd.xlane.f32.xlu0 %v2437
      %v2692 = vpop.xlane.xlu0 %2691
      %2693 = vadd.xlane.f32.xlu0 %v2438
      %v2694 = vpop.xlane.xlu0 %2693
      %v2695 = vrcp.pop 128.0
      %v2696 = vmul.f32 %v2440, %v2695
      %v2697 = vmul.f32 %v2442, %v2695
      %v2698 = vmul.f32 %v2444, %v2695
      %v2699 = vmul.f32 %v2446, %v2695
      %v2700 = vmul.f32 %v2448, %v2695
      %v2701 = vmul.f32 %v2450, %v2695
      %v2702 = vmul.f32 %v2452, %v2695
      %v2703 = vmul.f32 %v2454, %v2695
      %v2704 = vmul.f32 %v2456, %v2695
      %v2705 = vmul.f32 %v2458, %v2695
      %v2706 = vmul.f32 %v2460, %v2695
      %v2707 = vmul.f32 %v2462, %v2695
      %v2708 = vmul.f32 %v2464, %v2695
      %v2709 = vmul.f32 %v2466, %v2695
      %v2710 = vmul.f32 %v2468, %v2695
      %v2711 = vmul.f32 %v2470, %v2695
      %v2712 = vmul.f32 %v2472, %v2695
      %v2713 = vmul.f32 %v2474, %v2695
      %v2714 = vmul.f32 %v2476, %v2695
      %v2715 = vmul.f32 %v2478, %v2695
      %v2716 = vmul.f32 %v2480, %v2695
      %v2717 = vmul.f32 %v2482, %v2695
      %v2718 = vmul.f32 %v2484, %v2695
      %v2719 = vmul.f32 %v2486, %v2695
      %v2720 = vmul.f32 %v2488, %v2695
      %v2721 = vmul.f32 %v2490, %v2695
      %v2722 = vmul.f32 %v2492, %v2695
      %v2723 = vmul.f32 %v2494, %v2695
      %v2724 = vmul.f32 %v2496, %v2695
      %v2725 = vmul.f32 %v2498, %v2695
      %v2726 = vmul.f32 %v2500, %v2695
      %v2727 = vmul.f32 %v2502, %v2695
      %v2728 = vmul.f32 %v2504, %v2695
      %v2729 = vmul.f32 %v2506, %v2695
      %v2730 = vmul.f32 %v2508, %v2695
      %v2731 = vmul.f32 %v2510, %v2695
      %v2732 = vmul.f32 %v2512, %v2695
      %v2733 = vmul.f32 %v2514, %v2695
      %v2734 = vmul.f32 %v2516, %v2695
      %v2735 = vmul.f32 %v2518, %v2695
      %v2736 = vmul.f32 %v2520, %v2695
      %v2737 = vmul.f32 %v2522, %v2695
      %v2738 = vmul.f32 %v2524, %v2695
      %v2739 = vmul.f32 %v2526, %v2695
      %v2740 = vmul.f32 %v2528, %v2695
      %v2741 = vmul.f32 %v2530, %v2695
      %v2742 = vmul.f32 %v2532, %v2695
      %v2743 = vmul.f32 %v2534, %v2695
      %v2744 = vmul.f32 %v2536, %v2695
      %v2745 = vmul.f32 %v2538, %v2695
      %v2746 = vmul.f32 %v2540, %v2695
      %v2747 = vmul.f32 %v2542, %v2695
      %v2748 = vmul.f32 %v2544, %v2695
      %v2749 = vmul.f32 %v2546, %v2695
      %v2750 = vmul.f32 %v2548, %v2695
      %v2751 = vmul.f32 %v2550, %v2695
      %v2752 = vmul.f32 %v2552, %v2695
      %v2753 = vmul.f32 %v2554, %v2695
      %v2754 = vmul.f32 %v2556, %v2695
      %v2755 = vmul.f32 %v2558, %v2695
      %v2756 = vmul.f32 %v2560, %v2695
      %v2757 = vmul.f32 %v2562, %v2695
      %v2758 = vmul.f32 %v2564, %v2695
      %v2759 = vmul.f32 %v2566, %v2695
      %v2760 = vmul.f32 %v2568, %v2695
      %v2761 = vmul.f32 %v2570, %v2695
      %v2762 = vmul.f32 %v2572, %v2695
      %v2763 = vmul.f32 %v2574, %v2695
      %v2764 = vmul.f32 %v2576, %v2695
      %v2765 = vmul.f32 %v2578, %v2695
      %v2766 = vmul.f32 %v2580, %v2695
      %v2767 = vmul.f32 %v2582, %v2695
      %v2768 = vmul.f32 %v2584, %v2695
      %v2769 = vmul.f32 %v2586, %v2695
      %v2770 = vmul.f32 %v2588, %v2695
      %v2771 = vmul.f32 %v2590, %v2695
      %v2772 = vmul.f32 %v2592, %v2695
      %v2773 = vmul.f32 %v2594, %v2695
      %v2774 = vmul.f32 %v2596, %v2695
      %v2775 = vmul.f32 %v2598, %v2695
      %v2776 = vmul.f32 %v2600, %v2695
      %v2777 = vmul.f32 %v2602, %v2695
      %v2778 = vmul.f32 %v2604, %v2695
      %v2779 = vmul.f32 %v2606, %v2695
      %v2780 = vmul.f32 %v2608, %v2695
      %v2781 = vmul.f32 %v2610, %v2695
      %v2782 = vmul.f32 %v2612, %v2695
      %v2783 = vmul.f32 %v2614, %v2695
      %v2784 = vmul.f32 %v2616, %v2695
      %v2785 = vmul.f32 %v2618, %v2695
      %v2786 = vmul.f32 %v2620, %v2695
      %v2787 = vmul.f32 %v2622, %v2695
      %v2788 = vmul.f32 %v2624, %v2695
      %v2789 = vmul.f32 %v2626, %v2695
      %v2790 = vmul.f32 %v2628, %v2695
      %v2791 = vmul.f32 %v2630, %v2695
      %v2792 = vmul.f32 %v2632, %v2695
      %v2793 = vmul.f32 %v2634, %v2695
      %v2794 = vmul.f32 %v2636, %v2695
      %v2795 = vmul.f32 %v2638, %v2695
      %v2796 = vmul.f32 %v2640, %v2695
      %v2797 = vmul.f32 %v2642, %v2695
      %v2798 = vmul.f32 %v2644, %v2695
      %v2799 = vmul.f32 %v2646, %v2695
      %v2800 = vmul.f32 %v2648, %v2695
      %v2801 = vmul.f32 %v2650, %v2695
      %v2802 = vmul.f32 %v2652, %v2695
      %v2803 = vmul.f32 %v2654, %v2695
      %v2804 = vmul.f32 %v2656, %v2695
      %v2805 = vmul.f32 %v2658, %v2695
      %v2806 = vmul.f32 %v2660, %v2695
      %v2807 = vmul.f32 %v2662, %v2695
      %v2808 = vmul.f32 %v2664, %v2695
      %v2809 = vmul.f32 %v2666, %v2695
      %v2810 = vmul.f32 %v2668, %v2695
      %v2811 = vmul.f32 %v2670, %v2695
      %v2812 = vmul.f32 %v2672, %v2695
      %v2813 = vmul.f32 %v2674, %v2695
      %v2814 = vmul.f32 %v2676, %v2695
      %v2815 = vmul.f32 %v2678, %v2695
      %v2816 = vmul.f32 %v2680, %v2695
      %v2817 = vmul.f32 %v2682, %v2695
      %v2818 = vmul.f32 %v2684, %v2695
      %v2819 = vmul.f32 %v2686, %v2695
      %v2820 = vmul.f32 %v2688, %v2695
      %v2821 = vmul.f32 %v2690, %v2695
      %v2822 = vmul.f32 %v2692, %v2695
      %v2823 = vmul.f32 %v2694, %v2695
      %v2824 = vld [vmem:[%s1082] sm:$0xff]
      %v2825 = vld [vmem:[%s1082 + $0x8] sm:$0xff]
      %v2826 = vld [vmem:[%s1082 + $0x10] sm:$0xff]
      %v2827 = vld [vmem:[%s1082 + $0x18] sm:$0xff]
      %v2828 = vld [vmem:[%s1082 + $0x20] sm:$0xff]
      %v2829 = vld [vmem:[%s1082 + $0x28] sm:$0xff]
      %v2830 = vld [vmem:[%s1082 + $0x30] sm:$0xff]
      %v2831 = vld [vmem:[%s1082 + $0x38] sm:$0xff]
      %v2832 = vld [vmem:[%s1082 + $0x40] sm:$0xff]
      %v2833 = vld [vmem:[%s1082 + $0x48] sm:$0xff]
      %v2834 = vld [vmem:[%s1082 + $0x50] sm:$0xff]
      %v2835 = vld [vmem:[%s1082 + $0x58] sm:$0xff]
      %v2836 = vld [vmem:[%s1082 + $0x60] sm:$0xff]
      %v2837 = vld [vmem:[%s1082 + $0x68] sm:$0xff]
      %v2838 = vld [vmem:[%s1082 + $0x70] sm:$0xff]
      %v2839 = vld [vmem:[%s1082 + $0x78] sm:$0xff]
      %v2840 = vld [vmem:[%s1086] sm:$0x3]
      %v2842 = vlaneseq
      %v2843 = vshrl.u32 %v2842, 7
      %v2844 = vsub.s32 0, %v2843
      %v2845 = vrot.slane %v2840, %v2844
      %v2846 = vlaneseq
      %v2847 = vshrl.u32 %v2846, 7
      %v2848 = vsub.s32 1, %v2847
      %v2849 = vrot.slane %v2840, %v2848
      %v2980 = vlaneseq
      %v2981 = vand.u32 %v2980, 127
      %v2982 = vlaneseq
      %v2983 = vshrl.u32 %v2982, 7
      %v2984 = vsub.s32 %v2981, %v2983
      %v2985 = vrot.slane %v2696, %v2984
      %v2986 = vadd.s32 %v2981, 4294967288
      %v2987 = vlaneseq
      %v2988 = vshrl.u32 %v2987, 7
      %v2989 = vsub.s32 %v2986, %v2988
      %v2990 = vrot.slane %v2697, %v2989
      %vm2991 = vcmask 130112
      %v2992 = vsel %vm2991, %v2990, %v2985
      %v2993 = vadd.s32 %v2981, 4294967280
      %v2994 = vlaneseq
      %v2995 = vshrl.u32 %v2994, 7
      %v2996 = vsub.s32 %v2993, %v2995
      %v2997 = vrot.slane %v2698, %v2996
      %vm2998 = vcmask 195712
      %v2999 = vsel %vm2998, %v2997, %v2992
      %v3000 = vadd.s32 %v2981, 4294967272
      %v3001 = vlaneseq
      %v3002 = vshrl.u32 %v3001, 7
      %v3003 = vsub.s32 %v3000, %v3002
      %v3004 = vrot.slane %v2699, %v3003
      %vm3005 = vcmask 261312
      %v3006 = vsel %vm3005, %v3004, %v2999
      %v3007 = vadd.s32 %v2981, 4294967264
      %v3008 = vlaneseq
      %v3009 = vshrl.u32 %v3008, 7
      %v3010 = vsub.s32 %v3007, %v3009
      %v3011 = vrot.slane %v2700, %v3010
      %vm3012 = vcmask 326912
      %v3013 = vsel %vm3012, %v3011, %v3006
      %v3014 = vadd.s32 %v2981, 4294967256
      %v3015 = vlaneseq
      %v3016 = vshrl.u32 %v3015, 7
      %v3017 = vsub.s32 %v3014, %v3016
      %v3018 = vrot.slane %v2701, %v3017
      %vm3019 = vcmask 392512
      %v3020 = vsel %vm3019, %v3018, %v3013
      %v3021 = vadd.s32 %v2981, 4294967248
      %v3022 = vlaneseq
      %v3023 = vshrl.u32 %v3022, 7
      %v3024 = vsub.s32 %v3021, %v3023
      %v3025 = vrot.slane %v2702, %v3024
      %vm3026 = vcmask 458112
      %v3027 = vsel %vm3026, %v3025, %v3020
      %v3028 = vadd.s32 %v2981, 4294967240
      %v3029 = vlaneseq
      %v3030 = vshrl.u32 %v3029, 7
      %v3031 = vsub.s32 %v3028, %v3030
      %v3032 = vrot.slane %v2703, %v3031
      %vm3033 = vcmask 523712
      %v3034 = vsel %vm3033, %v3032, %v3027
      %v3035 = vlaneseq
      %v3036 = vshrl.u32 %v3035, 7
      %v3037 = vsub.s32 %v2981, %v3036
      %v3038 = vrot.slane %v2704, %v3037
      %v3039 = vlaneseq
      %v3040 = vshrl.u32 %v3039, 7
      %v3041 = vsub.s32 %v2986, %v3040
      %v3042 = vrot.slane %v2705, %v3041
      %v3043 = vsel %vm2991, %v3042, %v3038
      %v3044 = vlaneseq
      %v3045 = vshrl.u32 %v3044, 7
      %v3046 = vsub.s32 %v2993, %v3045
      %v3047 = vrot.slane %v2706, %v3046
      %v3048 = vsel %vm2998, %v3047, %v3043
      %v3049 = vlaneseq
      %v3050 = vshrl.u32 %v3049, 7
      %v3051 = vsub.s32 %v3000, %v3050
      %v3052 = vrot.slane %v2707, %v3051
      %v3053 = vsel %vm3005, %v3052, %v3048
      %v3054 = vlaneseq
      %v3055 = vshrl.u32 %v3054, 7
      %v3056 = vsub.s32 %v3007, %v3055
      %v3057 = vrot.slane %v2708, %v3056
      %v3058 = vsel %vm3012, %v3057, %v3053
      %v3059 = vlaneseq
      %v3060 = vshrl.u32 %v3059, 7
      %v3061 = vsub.s32 %v3014, %v3060
      %v3062 = vrot.slane %v2709, %v3061
      %v3063 = vsel %vm3019, %v3062, %v3058
      %v3064 = vlaneseq
      %v3065 = vshrl.u32 %v3064, 7
      %v3066 = vsub.s32 %v3021, %v3065
      %v3067 = vrot.slane %v2710, %v3066
      %v3068 = vsel %vm3026, %v3067, %v3063
      %v3069 = vlaneseq
      %v3070 = vshrl.u32 %v3069, 7
      %v3071 = vsub.s32 %v3028, %v3070
      %v3072 = vrot.slane %v2711, %v3071
      %v3073 = vsel %vm3033, %v3072, %v3068
      %v3074 = vlaneseq
      %v3075 = vshrl.u32 %v3074, 7
      %v3076 = vsub.s32 %v2981, %v3075
      %v3077 = vrot.slane %v2712, %v3076
      %v3078 = vlaneseq
      %v3079 = vshrl.u32 %v3078, 7
      %v3080 = vsub.s32 %v2986, %v3079
      %v3081 = vrot.slane %v2713, %v3080
      %v3082 = vsel %vm2991, %v3081, %v3077
      %v3083 = vlaneseq
      %v3084 = vshrl.u32 %v3083, 7
      %v3085 = vsub.s32 %v2993, %v3084
      %v3086 = vrot.slane %v2714, %v3085
      %v3087 = vsel %vm2998, %v3086, %v3082
      %v3088 = vlaneseq
      %v3089 = vshrl.u32 %v3088, 7
      %v3090 = vsub.s32 %v3000, %v3089
      %v3091 = vrot.slane %v2715, %v3090
      %v3092 = vsel %vm3005, %v3091, %v3087
      %v3093 = vlaneseq
      %v3094 = vshrl.u32 %v3093, 7
      %v3095 = vsub.s32 %v3007, %v3094
      %v3096 = vrot.slane %v2716, %v3095
      %v3097 = vsel %vm3012, %v3096, %v3092
      %v3098 = vlaneseq
      %v3099 = vshrl.u32 %v3098, 7
      %v3100 = vsub.s32 %v3014, %v3099
      %v3101 = vrot.slane %v2717, %v3100
      %v3102 = vsel %vm3019, %v3101, %v3097
      %v3103 = vlaneseq
      %v3104 = vshrl.u32 %v3103, 7
      %v3105 = vsub.s32 %v3021, %v3104
      %v3106 = vrot.slane %v2718, %v3105
      %v3107 = vsel %vm3026, %v3106, %v3102
      %v3108 = vlaneseq
      %v3109 = vshrl.u32 %v3108, 7
      %v3110 = vsub.s32 %v3028, %v3109
      %v3111 = vrot.slane %v2719, %v3110
      %v3112 = vsel %vm3033, %v3111, %v3107
      %v3113 = vlaneseq
      %v3114 = vshrl.u32 %v3113, 7
      %v3115 = vsub.s32 %v2981, %v3114
      %v3116 = vrot.slane %v2720, %v3115
      %v3117 = vlaneseq
      %v3118 = vshrl.u32 %v3117, 7
      %v3119 = vsub.s32 %v2986, %v3118
      %v3120 = vrot.slane %v2721, %v3119
      %v3121 = vsel %vm2991, %v3120, %v3116
      %v3122 = vlaneseq
      %v3123 = vshrl.u32 %v3122, 7
      %v3124 = vsub.s32 %v2993, %v3123
      %v3125 = vrot.slane %v2722, %v3124
      %v3126 = vsel %vm2998, %v3125, %v3121
      %v3127 = vlaneseq
      %v3128 = vshrl.u32 %v3127, 7
      %v3129 = vsub.s32 %v3000, %v3128
      %v3130 = vrot.slane %v2723, %v3129
      %v3131 = vsel %vm3005, %v3130, %v3126
      %v3132 = vlaneseq
      %v3133 = vshrl.u32 %v3132, 7
      %v3134 = vsub.s32 %v3007, %v3133
      %v3135 = vrot.slane %v2724, %v3134
      %v3136 = vsel %vm3012, %v3135, %v3131
      %v3137 = vlaneseq
      %v3138 = vshrl.u32 %v3137, 7
      %v3139 = vsub.s32 %v3014, %v3138
      %v3140 = vrot.slane %v2725, %v3139
      %v3141 = vsel %vm3019, %v3140, %v3136
      %v3142 = vlaneseq
      %v3143 = vshrl.u32 %v3142, 7
      %v3144 = vsub.s32 %v3021, %v3143
      %v3145 = vrot.slane %v2726, %v3144
      %v3146 = vsel %vm3026, %v3145, %v3141
      %v3147 = vlaneseq
      %v3148 = vshrl.u32 %v3147, 7
      %v3149 = vsub.s32 %v3028, %v3148
      %v3150 = vrot.slane %v2727, %v3149
      %v3151 = vsel %vm3033, %v3150, %v3146
      %v3152 = vlaneseq
      %v3153 = vshrl.u32 %v3152, 7
      %v3154 = vsub.s32 %v2981, %v3153
      %v3155 = vrot.slane %v2728, %v3154
      %v3156 = vlaneseq
      %v3157 = vshrl.u32 %v3156, 7
      %v3158 = vsub.s32 %v2986, %v3157
      %v3159 = vrot.slane %v2729, %v3158
      %v3160 = vsel %vm2991, %v3159, %v3155
      %v3161 = vlaneseq
      %v3162 = vshrl.u32 %v3161, 7
      %v3163 = vsub.s32 %v2993, %v3162
      %v3164 = vrot.slane %v2730, %v3163
      %v3165 = vsel %vm2998, %v3164, %v3160
      %v3166 = vlaneseq
      %v3167 = vshrl.u32 %v3166, 7
      %v3168 = vsub.s32 %v3000, %v3167
      %v3169 = vrot.slane %v2731, %v3168
      %v3170 = vsel %vm3005, %v3169, %v3165
      %v3171 = vlaneseq
      %v3172 = vshrl.u32 %v3171, 7
      %v3173 = vsub.s32 %v3007, %v3172
      %v3174 = vrot.slane %v2732, %v3173
      %v3175 = vsel %vm3012, %v3174, %v3170
      %v3176 = vlaneseq
      %v3177 = vshrl.u32 %v3176, 7
      %v3178 = vsub.s32 %v3014, %v3177
      %v3179 = vrot.slane %v2733, %v3178
      %v3180 = vsel %vm3019, %v3179, %v3175
      %v3181 = vlaneseq
      %v3182 = vshrl.u32 %v3181, 7
      %v3183 = vsub.s32 %v3021, %v3182
      %v3184 = vrot.slane %v2734, %v3183
      %v3185 = vsel %vm3026, %v3184, %v3180
      %v3186 = vlaneseq
      %v3187 = vshrl.u32 %v3186, 7
      %v3188 = vsub.s32 %v3028, %v3187
      %v3189 = vrot.slane %v2735, %v3188
      %v3190 = vsel %vm3033, %v3189, %v3185
      %v3191 = vlaneseq
      %v3192 = vshrl.u32 %v3191, 7
      %v3193 = vsub.s32 %v2981, %v3192
      %v3194 = vrot.slane %v2736, %v3193
      %v3195 = vlaneseq
      %v3196 = vshrl.u32 %v3195, 7
      %v3197 = vsub.s32 %v2986, %v3196
      %v3198 = vrot.slane %v2737, %v3197
      %v3199 = vsel %vm2991, %v3198, %v3194
      %v3200 = vlaneseq
      %v3201 = vshrl.u32 %v3200, 7
      %v3202 = vsub.s32 %v2993, %v3201
      %v3203 = vrot.slane %v2738, %v3202
      %v3204 = vsel %vm2998, %v3203, %v3199
      %v3205 = vlaneseq
      %v3206 = vshrl.u32 %v3205, 7
      %v3207 = vsub.s32 %v3000, %v3206
      %v3208 = vrot.slane %v2739, %v3207
      %v3209 = vsel %vm3005, %v3208, %v3204
      %v3210 = vlaneseq
      %v3211 = vshrl.u32 %v3210, 7
      %v3212 = vsub.s32 %v3007, %v3211
      %v3213 = vrot.slane %v2740, %v3212
      %v3214 = vsel %vm3012, %v3213, %v3209
      %v3215 = vlaneseq
      %v3216 = vshrl.u32 %v3215, 7
      %v3217 = vsub.s32 %v3014, %v3216
      %v3218 = vrot.slane %v2741, %v3217
      %v3219 = vsel %vm3019, %v3218, %v3214
      %v3220 = vlaneseq
      %v3221 = vshrl.u32 %v3220, 7
      %v3222 = vsub.s32 %v3021, %v3221
      %v3223 = vrot.slane %v2742, %v3222
      %v3224 = vsel %vm3026, %v3223, %v3219
      %v3225 = vlaneseq
      %v3226 = vshrl.u32 %v3225, 7
      %v3227 = vsub.s32 %v3028, %v3226
      %v3228 = vrot.slane %v2743, %v3227
      %v3229 = vsel %vm3033, %v3228, %v3224
      %v3230 = vlaneseq
      %v3231 = vshrl.u32 %v3230, 7
      %v3232 = vsub.s32 %v2981, %v3231
      %v3233 = vrot.slane %v2744, %v3232
      %v3234 = vlaneseq
      %v3235 = vshrl.u32 %v3234, 7
      %v3236 = vsub.s32 %v2986, %v3235
      %v3237 = vrot.slane %v2745, %v3236
      %v3238 = vsel %vm2991, %v3237, %v3233
      %v3239 = vlaneseq
      %v3240 = vshrl.u32 %v3239, 7
      %v3241 = vsub.s32 %v2993, %v3240
      %v3242 = vrot.slane %v2746, %v3241
      %v3243 = vsel %vm2998, %v3242, %v3238
      %v3244 = vlaneseq
      %v3245 = vshrl.u32 %v3244, 7
      %v3246 = vsub.s32 %v3000, %v3245
      %v3247 = vrot.slane %v2747, %v3246
      %v3248 = vsel %vm3005, %v3247, %v3243
      %v3249 = vlaneseq
      %v3250 = vshrl.u32 %v3249, 7
      %v3251 = vsub.s32 %v3007, %v3250
      %v3252 = vrot.slane %v2748, %v3251
      %v3253 = vsel %vm3012, %v3252, %v3248
      %v3254 = vlaneseq
      %v3255 = vshrl.u32 %v3254, 7
      %v3256 = vsub.s32 %v3014, %v3255
      %v3257 = vrot.slane %v2749, %v3256
      %v3258 = vsel %vm3019, %v3257, %v3253
      %v3259 = vlaneseq
      %v3260 = vshrl.u32 %v3259, 7
      %v3261 = vsub.s32 %v3021, %v3260
      %v3262 = vrot.slane %v2750, %v3261
      %v3263 = vsel %vm3026, %v3262, %v3258
      %v3264 = vlaneseq
      %v3265 = vshrl.u32 %v3264, 7
      %v3266 = vsub.s32 %v3028, %v3265
      %v3267 = vrot.slane %v2751, %v3266
      %v3268 = vsel %vm3033, %v3267, %v3263
      %v3269 = vlaneseq
      %v3270 = vshrl.u32 %v3269, 7
      %v3271 = vsub.s32 %v2981, %v3270
      %v3272 = vrot.slane %v2752, %v3271
      %v3273 = vlaneseq
      %v3274 = vshrl.u32 %v3273, 7
      %v3275 = vsub.s32 %v2986, %v3274
      %v3276 = vrot.slane %v2753, %v3275
      %v3277 = vsel %vm2991, %v3276, %v3272
      %v3278 = vlaneseq
      %v3279 = vshrl.u32 %v3278, 7
      %v3280 = vsub.s32 %v2993, %v3279
      %v3281 = vrot.slane %v2754, %v3280
      %v3282 = vsel %vm2998, %v3281, %v3277
      %v3283 = vlaneseq
      %v3284 = vshrl.u32 %v3283, 7
      %v3285 = vsub.s32 %v3000, %v3284
      %v3286 = vrot.slane %v2755, %v3285
      %v3287 = vsel %vm3005, %v3286, %v3282
      %v3288 = vlaneseq
      %v3289 = vshrl.u32 %v3288, 7
      %v3290 = vsub.s32 %v3007, %v3289
      %v3291 = vrot.slane %v2756, %v3290
      %v3292 = vsel %vm3012, %v3291, %v3287
      %v3293 = vlaneseq
      %v3294 = vshrl.u32 %v3293, 7
      %v3295 = vsub.s32 %v3014, %v3294
      %v3296 = vrot.slane %v2757, %v3295
      %v3297 = vsel %vm3019, %v3296, %v3292
      %v3298 = vlaneseq
      %v3299 = vshrl.u32 %v3298, 7
      %v3300 = vsub.s32 %v3021, %v3299
      %v3301 = vrot.slane %v2758, %v3300
      %v3302 = vsel %vm3026, %v3301, %v3297
      %v3303 = vlaneseq
      %v3304 = vshrl.u32 %v3303, 7
      %v3305 = vsub.s32 %v3028, %v3304
      %v3306 = vrot.slane %v2759, %v3305
      %v3307 = vsel %vm3033, %v3306, %v3302
      %v3308 = vlaneseq
      %v3309 = vshrl.u32 %v3308, 7
      %v3310 = vsub.s32 %v2981, %v3309
      %v3311 = vrot.slane %v2760, %v3310
      %v3312 = vlaneseq
      %v3313 = vshrl.u32 %v3312, 7
      %v3314 = vsub.s32 %v2986, %v3313
      %v3315 = vrot.slane %v2761, %v3314
      %v3316 = vsel %vm2991, %v3315, %v3311
      %v3317 = vlaneseq
      %v3318 = vshrl.u32 %v3317, 7
      %v3319 = vsub.s32 %v2993, %v3318
      %v3320 = vrot.slane %v2762, %v3319
      %v3321 = vsel %vm2998, %v3320, %v3316
      %v3322 = vlaneseq
      %v3323 = vshrl.u32 %v3322, 7
      %v3324 = vsub.s32 %v3000, %v3323
      %v3325 = vrot.slane %v2763, %v3324
      %v3326 = vsel %vm3005, %v3325, %v3321
      %v3327 = vlaneseq
      %v3328 = vshrl.u32 %v3327, 7
      %v3329 = vsub.s32 %v3007, %v3328
      %v3330 = vrot.slane %v2764, %v3329
      %v3331 = vsel %vm3012, %v3330, %v3326
      %v3332 = vlaneseq
      %v3333 = vshrl.u32 %v3332, 7
      %v3334 = vsub.s32 %v3014, %v3333
      %v3335 = vrot.slane %v2765, %v3334
      %v3336 = vsel %vm3019, %v3335, %v3331
      %v3337 = vlaneseq
      %v3338 = vshrl.u32 %v3337, 7
      %v3339 = vsub.s32 %v3021, %v3338
      %v3340 = vrot.slane %v2766, %v3339
      %v3341 = vsel %vm3026, %v3340, %v3336
      %v3342 = vlaneseq
      %v3343 = vshrl.u32 %v3342, 7
      %v3344 = vsub.s32 %v3028, %v3343
      %v3345 = vrot.slane %v2767, %v3344
      %v3346 = vsel %vm3033, %v3345, %v3341
      %v3347 = vlaneseq
      %v3348 = vshrl.u32 %v3347, 7
      %v3349 = vsub.s32 %v2981, %v3348
      %v3350 = vrot.slane %v2768, %v3349
      %v3351 = vlaneseq
      %v3352 = vshrl.u32 %v3351, 7
      %v3353 = vsub.s32 %v2986, %v3352
      %v3354 = vrot.slane %v2769, %v3353
      %v3355 = vsel %vm2991, %v3354, %v3350
      %v3356 = vlaneseq
      %v3357 = vshrl.u32 %v3356, 7
      %v3358 = vsub.s32 %v2993, %v3357
      %v3359 = vrot.slane %v2770, %v3358
      %v3360 = vsel %vm2998, %v3359, %v3355
      %v3361 = vlaneseq
      %v3362 = vshrl.u32 %v3361, 7
      %v3363 = vsub.s32 %v3000, %v3362
      %v3364 = vrot.slane %v2771, %v3363
      %v3365 = vsel %vm3005, %v3364, %v3360
      %v3366 = vlaneseq
      %v3367 = vshrl.u32 %v3366, 7
      %v3368 = vsub.s32 %v3007, %v3367
      %v3369 = vrot.slane %v2772, %v3368
      %v3370 = vsel %vm3012, %v3369, %v3365
      %v3371 = vlaneseq
      %v3372 = vshrl.u32 %v3371, 7
      %v3373 = vsub.s32 %v3014, %v3372
      %v3374 = vrot.slane %v2773, %v3373
      %v3375 = vsel %vm3019, %v3374, %v3370
      %v3376 = vlaneseq
      %v3377 = vshrl.u32 %v3376, 7
      %v3378 = vsub.s32 %v3021, %v3377
      %v3379 = vrot.slane %v2774, %v3378
      %v3380 = vsel %vm3026, %v3379, %v3375
      %v3381 = vlaneseq
      %v3382 = vshrl.u32 %v3381, 7
      %v3383 = vsub.s32 %v3028, %v3382
      %v3384 = vrot.slane %v2775, %v3383
      %v3385 = vsel %vm3033, %v3384, %v3380
      %v3386 = vlaneseq
      %v3387 = vshrl.u32 %v3386, 7
      %v3388 = vsub.s32 %v2981, %v3387
      %v3389 = vrot.slane %v2776, %v3388
      %v3390 = vlaneseq
      %v3391 = vshrl.u32 %v3390, 7
      %v3392 = vsub.s32 %v2986, %v3391
      %v3393 = vrot.slane %v2777, %v3392
      %v3394 = vsel %vm2991, %v3393, %v3389
      %v3395 = vlaneseq
      %v3396 = vshrl.u32 %v3395, 7
      %v3397 = vsub.s32 %v2993, %v3396
      %v3398 = vrot.slane %v2778, %v3397
      %v3399 = vsel %vm2998, %v3398, %v3394
      %v3400 = vlaneseq
      %v3401 = vshrl.u32 %v3400, 7
      %v3402 = vsub.s32 %v3000, %v3401
      %v3403 = vrot.slane %v2779, %v3402
      %v3404 = vsel %vm3005, %v3403, %v3399
      %v3405 = vlaneseq
      %v3406 = vshrl.u32 %v3405, 7
      %v3407 = vsub.s32 %v3007, %v3406
      %v3408 = vrot.slane %v2780, %v3407
      %v3409 = vsel %vm3012, %v3408, %v3404
      %v3410 = vlaneseq
      %v3411 = vshrl.u32 %v3410, 7
      %v3412 = vsub.s32 %v3014, %v3411
      %v3413 = vrot.slane %v2781, %v3412
      %v3414 = vsel %vm3019, %v3413, %v3409
      %v3415 = vlaneseq
      %v3416 = vshrl.u32 %v3415, 7
      %v3417 = vsub.s32 %v3021, %v3416
      %v3418 = vrot.slane %v2782, %v3417
      %v3419 = vsel %vm3026, %v3418, %v3414
      %v3420 = vlaneseq
      %v3421 = vshrl.u32 %v3420, 7
      %v3422 = vsub.s32 %v3028, %v3421
      %v3423 = vrot.slane %v2783, %v3422
      %v3424 = vsel %vm3033, %v3423, %v3419
      %v3425 = vlaneseq
      %v3426 = vshrl.u32 %v3425, 7
      %v3427 = vsub.s32 %v2981, %v3426
      %v3428 = vrot.slane %v2784, %v3427
      %v3429 = vlaneseq
      %v3430 = vshrl.u32 %v3429, 7
      %v3431 = vsub.s32 %v2986, %v3430
      %v3432 = vrot.slane %v2785, %v3431
      %v3433 = vsel %vm2991, %v3432, %v3428
      %v3434 = vlaneseq
      %v3435 = vshrl.u32 %v3434, 7
      %v3436 = vsub.s32 %v2993, %v3435
      %v3437 = vrot.slane %v2786, %v3436
      %v3438 = vsel %vm2998, %v3437, %v3433
      %v3439 = vlaneseq
      %v3440 = vshrl.u32 %v3439, 7
      %v3441 = vsub.s32 %v3000, %v3440
      %v3442 = vrot.slane %v2787, %v3441
      %v3443 = vsel %vm3005, %v3442, %v3438
      %v3444 = vlaneseq
      %v3445 = vshrl.u32 %v3444, 7
      %v3446 = vsub.s32 %v3007, %v3445
      %v3447 = vrot.slane %v2788, %v3446
      %v3448 = vsel %vm3012, %v3447, %v3443
      %v3449 = vlaneseq
      %v3450 = vshrl.u32 %v3449, 7
      %v3451 = vsub.s32 %v3014, %v3450
      %v3452 = vrot.slane %v2789, %v3451
      %v3453 = vsel %vm3019, %v3452, %v3448
      %v3454 = vlaneseq
      %v3455 = vshrl.u32 %v3454, 7
      %v3456 = vsub.s32 %v3021, %v3455
      %v3457 = vrot.slane %v2790, %v3456
      %v3458 = vsel %vm3026, %v3457, %v3453
      %v3459 = vlaneseq
      %v3460 = vshrl.u32 %v3459, 7
      %v3461 = vsub.s32 %v3028, %v3460
      %v3462 = vrot.slane %v2791, %v3461
      %v3463 = vsel %vm3033, %v3462, %v3458
      %v3464 = vlaneseq
      %v3465 = vshrl.u32 %v3464, 7
      %v3466 = vsub.s32 %v2981, %v3465
      %v3467 = vrot.slane %v2792, %v3466
      %v3468 = vlaneseq
      %v3469 = vshrl.u32 %v3468, 7
      %v3470 = vsub.s32 %v2986, %v3469
      %v3471 = vrot.slane %v2793, %v3470
      %v3472 = vsel %vm2991, %v3471, %v3467
      %v3473 = vlaneseq
      %v3474 = vshrl.u32 %v3473, 7
      %v3475 = vsub.s32 %v2993, %v3474
      %v3476 = vrot.slane %v2794, %v3475
      %v3477 = vsel %vm2998, %v3476, %v3472
      %v3478 = vlaneseq
      %v3479 = vshrl.u32 %v3478, 7
      %v3480 = vsub.s32 %v3000, %v3479
      %v3481 = vrot.slane %v2795, %v3480
      %v3482 = vsel %vm3005, %v3481, %v3477
      %v3483 = vlaneseq
      %v3484 = vshrl.u32 %v3483, 7
      %v3485 = vsub.s32 %v3007, %v3484
      %v3486 = vrot.slane %v2796, %v3485
      %v3487 = vsel %vm3012, %v3486, %v3482
      %v3488 = vlaneseq
      %v3489 = vshrl.u32 %v3488, 7
      %v3490 = vsub.s32 %v3014, %v3489
      %v3491 = vrot.slane %v2797, %v3490
      %v3492 = vsel %vm3019, %v3491, %v3487
      %v3493 = vlaneseq
      %v3494 = vshrl.u32 %v3493, 7
      %v3495 = vsub.s32 %v3021, %v3494
      %v3496 = vrot.slane %v2798, %v3495
      %v3497 = vsel %vm3026, %v3496, %v3492
      %v3498 = vlaneseq
      %v3499 = vshrl.u32 %v3498, 7
      %v3500 = vsub.s32 %v3028, %v3499
      %v3501 = vrot.slane %v2799, %v3500
      %v3502 = vsel %vm3033, %v3501, %v3497
      %v3503 = vlaneseq
      %v3504 = vshrl.u32 %v3503, 7
      %v3505 = vsub.s32 %v2981, %v3504
      %v3506 = vrot.slane %v2800, %v3505
      %v3507 = vlaneseq
      %v3508 = vshrl.u32 %v3507, 7
      %v3509 = vsub.s32 %v2986, %v3508
      %v3510 = vrot.slane %v2801, %v3509
      %v3511 = vsel %vm2991, %v3510, %v3506
      %v3512 = vlaneseq
      %v3513 = vshrl.u32 %v3512, 7
      %v3514 = vsub.s32 %v2993, %v3513
      %v3515 = vrot.slane %v2802, %v3514
      %v3516 = vsel %vm2998, %v3515, %v3511
      %v3517 = vlaneseq
      %v3518 = vshrl.u32 %v3517, 7
      %v3519 = vsub.s32 %v3000, %v3518
      %v3520 = vrot.slane %v2803, %v3519
      %v3521 = vsel %vm3005, %v3520, %v3516
      %v3522 = vlaneseq
      %v3523 = vshrl.u32 %v3522, 7
      %v3524 = vsub.s32 %v3007, %v3523
      %v3525 = vrot.slane %v2804, %v3524
      %v3526 = vsel %vm3012, %v3525, %v3521
      %v3527 = vlaneseq
      %v3528 = vshrl.u32 %v3527, 7
      %v3529 = vsub.s32 %v3014, %v3528
      %v3530 = vrot.slane %v2805, %v3529
      %v3531 = vsel %vm3019, %v3530, %v3526
      %v3532 = vlaneseq
      %v3533 = vshrl.u32 %v3532, 7
      %v3534 = vsub.s32 %v3021, %v3533
      %v3535 = vrot.slane %v2806, %v3534
      %v3536 = vsel %vm3026, %v3535, %v3531
      %v3537 = vlaneseq
      %v3538 = vshrl.u32 %v3537, 7
      %v3539 = vsub.s32 %v3028, %v3538
      %v3540 = vrot.slane %v2807, %v3539
      %v3541 = vsel %vm3033, %v3540, %v3536
      %v3542 = vlaneseq
      %v3543 = vshrl.u32 %v3542, 7
      %v3544 = vsub.s32 %v2981, %v3543
      %v3545 = vrot.slane %v2808, %v3544
      %v3546 = vlaneseq
      %v3547 = vshrl.u32 %v3546, 7
      %v3548 = vsub.s32 %v2986, %v3547
      %v3549 = vrot.slane %v2809, %v3548
      %v3550 = vsel %vm2991, %v3549, %v3545
      %v3551 = vlaneseq
      %v3552 = vshrl.u32 %v3551, 7
      %v3553 = vsub.s32 %v2993, %v3552
      %v3554 = vrot.slane %v2810, %v3553
      %v3555 = vsel %vm2998, %v3554, %v3550
      %v3556 = vlaneseq
      %v3557 = vshrl.u32 %v3556, 7
      %v3558 = vsub.s32 %v3000, %v3557
      %v3559 = vrot.slane %v2811, %v3558
      %v3560 = vsel %vm3005, %v3559, %v3555
      %v3561 = vlaneseq
      %v3562 = vshrl.u32 %v3561, 7
      %v3563 = vsub.s32 %v3007, %v3562
      %v3564 = vrot.slane %v2812, %v3563
      %v3565 = vsel %vm3012, %v3564, %v3560
      %v3566 = vlaneseq
      %v3567 = vshrl.u32 %v3566, 7
      %v3568 = vsub.s32 %v3014, %v3567
      %v3569 = vrot.slane %v2813, %v3568
      %v3570 = vsel %vm3019, %v3569, %v3565
      %v3571 = vlaneseq
      %v3572 = vshrl.u32 %v3571, 7
      %v3573 = vsub.s32 %v3021, %v3572
      %v3574 = vrot.slane %v2814, %v3573
      %v3575 = vsel %vm3026, %v3574, %v3570
      %v3576 = vlaneseq
      %v3577 = vshrl.u32 %v3576, 7
      %v3578 = vsub.s32 %v3028, %v3577
      %v3579 = vrot.slane %v2815, %v3578
      %v3580 = vsel %vm3033, %v3579, %v3575
      %v3581 = vlaneseq
      %v3582 = vshrl.u32 %v3581, 7
      %v3583 = vsub.s32 %v2981, %v3582
      %v3584 = vrot.slane %v2816, %v3583
      %v3585 = vlaneseq
      %v3586 = vshrl.u32 %v3585, 7
      %v3587 = vsub.s32 %v2986, %v3586
      %v3588 = vrot.slane %v2817, %v3587
      %v3589 = vsel %vm2991, %v3588, %v3584
      %v3590 = vlaneseq
      %v3591 = vshrl.u32 %v3590, 7
      %v3592 = vsub.s32 %v2993, %v3591
      %v3593 = vrot.slane %v2818, %v3592
      %v3594 = vsel %vm2998, %v3593, %v3589
      %v3595 = vlaneseq
      %v3596 = vshrl.u32 %v3595, 7
      %v3597 = vsub.s32 %v3000, %v3596
      %v3598 = vrot.slane %v2819, %v3597
      %v3599 = vsel %vm3005, %v3598, %v3594
      %v3600 = vlaneseq
      %v3601 = vshrl.u32 %v3600, 7
      %v3602 = vsub.s32 %v3007, %v3601
      %v3603 = vrot.slane %v2820, %v3602
      %v3604 = vsel %vm3012, %v3603, %v3599
      %v3605 = vlaneseq
      %v3606 = vshrl.u32 %v3605, 7
      %v3607 = vsub.s32 %v3014, %v3606
      %v3608 = vrot.slane %v2821, %v3607
      %v3609 = vsel %vm3019, %v3608, %v3604
      %v3610 = vlaneseq
      %v3611 = vshrl.u32 %v3610, 7
      %v3612 = vsub.s32 %v3021, %v3611
      %v3613 = vrot.slane %v2822, %v3612
      %v3614 = vsel %vm3026, %v3613, %v3609
      %v3615 = vlaneseq
      %v3616 = vshrl.u32 %v3615, 7
      %v3617 = vsub.s32 %v3028, %v3616
      %v3618 = vrot.slane %v2823, %v3617
      %v3619 = vsel %vm3033, %v3618, %v3614
      %vm3620 = vcmask 1041409
      %v3621 = vsel %vm3620, %v3073, %v3034
      %vm3622 = vcmask 1042434
      %v3623 = vsel %vm3622, %v3112, %v3621
      %vm3624 = vcmask 1043459
      %v3625 = vsel %vm3624, %v3151, %v3623
      %vm3626 = vcmask 1044484
      %v3627 = vsel %vm3626, %v3190, %v3625
      %vm3628 = vcmask 1045509
      %v3629 = vsel %vm3628, %v3229, %v3627
      %vm3630 = vcmask 1046534
      %v3631 = vsel %vm3630, %v3268, %v3629
      %vm3632 = vcmask 1047559
      %v3633 = vsel %vm3632, %v3307, %v3631
      %v3634 = vsel %vm3620, %v3385, %v3346
      %v3635 = vsel %vm3622, %v3424, %v3634
      %v3636 = vsel %vm3624, %v3463, %v3635
      %v3637 = vsel %vm3626, %v3502, %v3636
      %v3638 = vsel %vm3628, %v3541, %v3637
      %v3639 = vsel %vm3630, %v3580, %v3638
      %v3640 = vsel %vm3632, %v3619, %v3639
      %vm3641 = vcmask 523264
      %v3642 = vsel %vm3641, %v3633, 0
      %v3644 = vsel %vm3641, %v3640, 0
      %3646 = vmatprep.subr.mxu0 %v2825
      %3647 = vmatpush1.msra.mxu0 %v2824
      %3648 = vmatprep.subr.mxu0 %v2827
      %3649 = vmatpush1.msra.mxu0 %v2826
      %3650 = vmatprep.subr.mxu0 %v2829
      %3651 = vmatpush1.msra.mxu0 %v2828
      %3652 = vmatprep.subr.mxu0 %v2831
      %3653 = vmatpush1.msra.mxu0 %v2830
      %3654 = vmatprep.subr.mxu0 %v2833
      %3655 = vmatpush1.msra.mxu0 %v2832
      %3656 = vmatprep.subr.mxu0 %v2835
      %3657 = vmatpush1.msra.mxu0 %v2834
      %3658 = vmatprep.subr.mxu0 %v2837
      %3659 = vmatpush1.msra.mxu0 %v2836
      %3660 = vmatprep.subr.mxu0 %v2839
      %3661 = vmatpush1.msra.mxu0 %v2838
      %3662 = vmatprep.subr.mxu0 0.0
      %3663 = vmatpush1.msra.mxu0 0.0
      %3664 = vmatprep.subr.mxu0 0.0
      %3665 = vmatpush1.msra.mxu0 0.0
      %3666 = vmatprep.subr.mxu0 0.0
      %3667 = vmatpush1.msra.mxu0 0.0
      %3668 = vmatprep.subr.mxu0 0.0
      %3669 = vmatpush1.msra.mxu0 0.0
      %3670 = vmatprep.subr.mxu0 0.0
      %3671 = vmatpush1.msra.mxu0 0.0
      %3672 = vmatprep.subr.mxu0 0.0
      %3673 = vmatpush1.msra.mxu0 0.0
      %3674 = vmatprep.subr.mxu0 0.0
      %3675 = vmatpush1.msra.mxu0 0.0
      %3676 = vmatprep.subr.mxu0 0.0
      %3677 = vmatpush1.msra.mxu0 0.0
      %3678 = vmatprep.subr.mxu0 0.0
      %3679 = vmatpush1.msra.mxu0 0.0
      %3680 = vmatprep.subr.mxu0 0.0
      %3681 = vmatpush1.msra.mxu0 0.0
      %3682 = vmatprep.subr.mxu0 0.0
      %3683 = vmatpush1.msra.mxu0 0.0
      %3684 = vmatprep.subr.mxu0 0.0
      %3685 = vmatpush1.msra.mxu0 0.0
      %3686 = vmatprep.subr.mxu0 0.0
      %3687 = vmatpush1.msra.mxu0 0.0
      %3688 = vmatprep.subr.mxu0 0.0
      %3689 = vmatpush1.msra.mxu0 0.0
      %3690 = vmatprep.subr.mxu0 0.0
      %3691 = vmatpush1.msra.mxu0 0.0
      %3692 = vmatprep.subr.mxu0 0.0
      %3693 = vmatpush1.msra.mxu0 0.0
      %3694 = vmatprep.subr.mxu0 0.0
      %3695 = vmatpush1.msra.mxu0 0.0
      %3696 = vmatprep.subr.mxu0 0.0
      %3697 = vmatpush1.msra.mxu0 0.0
      %3698 = vmatprep.subr.mxu0 0.0
      %3699 = vmatpush1.msra.mxu0 0.0
      %3700 = vmatprep.subr.mxu0 0.0
      %3701 = vmatpush1.msra.mxu0 0.0
      %3702 = vmatprep.subr.mxu0 0.0
      %3703 = vmatpush1.msra.mxu0 0.0
      %3704 = vmatprep.subr.mxu0 0.0
      %3705 = vmatpush1.msra.mxu0 0.0
      %3706 = vmatprep.subr.mxu0 0.0
      %3707 = vmatpush1.msra.mxu0 0.0
      %3708 = vmatprep.subr.mxu0 0.0
      %3709 = vmatpush1.msra.mxu0 0.0
      %3710 = vmatprep.mubr.f32.mxu0 0.0
      %3711 = vmatmul.mubr.f32.gmra.mrb[0].mxu0 %v3642
      %v3712 = vpop.f32.mrb[0].mxu0
      %v3713 = vadd.f32 %v2845, %v3712
      %v3714 = vpop.f32.mrb[0].mxu0
      %v3715 = vadd.f32 %v2849, %v3714
      %3716 = vmatprep.mubr.f32.mxu0 0.0
      %3717 = vmatmul.mubr.f32.gmra.mrb[0].mxu0 %v3644
      %v3718 = vpop.f32.mrb[0].mxu0
      %v3719 = vadd.f32 %v2845, %v3718
      %v3720 = vpop.f32.mrb[0].mxu0
      %v3721 = vadd.f32 %v2849, %v3720
      %3722 = vdwg.mxu0
      %v3723 = vmax.f32 %v3713, 0.0
      %v3724 = vmax.f32 %v3715, 0.0
      %v3725 = vmax.f32 %v3719, 0.0
      %v3726 = vmax.f32 %v3721, 0.0
      %v3727 = vld [vmem:[%s1091] sm:$0xff]
      %v3728 = vld [vmem:[%s1091 + $0x8] sm:$0xff]
      %v3729 = vld [vmem:[%s1091 + $0x10] sm:$0xff]
      %v3730 = vld [vmem:[%s1091 + $0x18] sm:$0xff]
      %v3731 = vld [vmem:[%s1091 + $0x20] sm:$0xff]
      %v3732 = vld [vmem:[%s1091 + $0x28] sm:$0xff]
      %v3733 = vld [vmem:[%s1091 + $0x30] sm:$0xff]
      %v3734 = vld [vmem:[%s1091 + $0x38] sm:$0xff]
      %v3735 = vld [vmem:[%s1091 + $0x40] sm:$0xff]
      %v3736 = vld [vmem:[%s1091 + $0x48] sm:$0xff]
      %v3737 = vld [vmem:[%s1091 + $0x50] sm:$0xff]
      %v3738 = vld [vmem:[%s1091 + $0x58] sm:$0xff]
      %v3739 = vld [vmem:[%s1091 + $0x60] sm:$0xff]
      %v3740 = vld [vmem:[%s1091 + $0x68] sm:$0xff]
      %v3741 = vld [vmem:[%s1091 + $0x70] sm:$0xff]
      %v3742 = vld [vmem:[%s1091 + $0x78] sm:$0xff]
      %v3743 = vld [vmem:[%s1091 + $0x80] sm:$0xff]
      %v3744 = vld [vmem:[%s1091 + $0x88] sm:$0xff]
      %v3745 = vld [vmem:[%s1091 + $0x90] sm:$0xff]
      %v3746 = vld [vmem:[%s1091 + $0x98] sm:$0xff]
      %v3747 = vld [vmem:[%s1091 + $0xa0] sm:$0xff]
      %v3748 = vld [vmem:[%s1091 + $0xa8] sm:$0xff]
      %v3749 = vld [vmem:[%s1091 + $0xb0] sm:$0xff]
      %v3750 = vld [vmem:[%s1091 + $0xb8] sm:$0xff]
      %v3751 = vld [vmem:[%s1091 + $0xc0] sm:$0xff]
      %v3752 = vld [vmem:[%s1091 + $0xc8] sm:$0xff]
      %v3753 = vld [vmem:[%s1091 + $0xd0] sm:$0xff]
      %v3754 = vld [vmem:[%s1091 + $0xd8] sm:$0xff]
      %v3755 = vld [vmem:[%s1091 + $0xe0] sm:$0xff]
      %v3756 = vld [vmem:[%s1091 + $0xe8] sm:$0xff]
      %v3757 = vld [vmem:[%s1091 + $0xf0] sm:$0xff]
      %v3758 = vld [vmem:[%s1091 + $0xf8] sm:$0xff]
      %v3759 = vld [vmem:[%s1091 + $0x100] sm:$0xff]
      %v3760 = vld [vmem:[%s1091 + $0x108] sm:$0xff]
      %v3761 = vld [vmem:[%s1091 + $0x110] sm:$0xff]
      %v3762 = vld [vmem:[%s1091 + $0x118] sm:$0xff]
      %v3763 = vld [vmem:[%s1091 + $0x120] sm:$0xff]
      %v3764 = vld [vmem:[%s1091 + $0x128] sm:$0xff]
      %v3765 = vld [vmem:[%s1091 + $0x130] sm:$0xff]
      %v3766 = vld [vmem:[%s1091 + $0x138] sm:$0xff]
      %v3767 = vld [vmem:[%s1091 + $0x140] sm:$0xff]
      %v3768 = vld [vmem:[%s1091 + $0x148] sm:$0xff]
      %v3769 = vld [vmem:[%s1091 + $0x150] sm:$0xff]
      %v3770 = vld [vmem:[%s1091 + $0x158] sm:$0xff]
      %v3771 = vld [vmem:[%s1091 + $0x160] sm:$0xff]
      %v3772 = vld [vmem:[%s1091 + $0x168] sm:$0xff]
      %v3773 = vld [vmem:[%s1091 + $0x170] sm:$0xff]
      %v3774 = vld [vmem:[%s1091 + $0x178] sm:$0xff]
      %v3775 = vld [vmem:[%s1091 + $0x180] sm:$0xff]
      %v3776 = vld [vmem:[%s1091 + $0x188] sm:$0xff]
      %v3777 = vld [vmem:[%s1091 + $0x190] sm:$0xff]
      %v3778 = vld [vmem:[%s1091 + $0x198] sm:$0xff]
      %v3779 = vld [vmem:[%s1091 + $0x1a0] sm:$0xff]
      %v3780 = vld [vmem:[%s1091 + $0x1a8] sm:$0xff]
      %v3781 = vld [vmem:[%s1091 + $0x1b0] sm:$0xff]
      %v3782 = vld [vmem:[%s1091 + $0x1b8] sm:$0xff]
      %v3783 = vld [vmem:[%s1091 + $0x1c0] sm:$0xff]
      %v3784 = vld [vmem:[%s1091 + $0x1c8] sm:$0xff]
      %v3785 = vld [vmem:[%s1091 + $0x1d0] sm:$0xff]
      %v3786 = vld [vmem:[%s1091 + $0x1d8] sm:$0xff]
      %v3787 = vld [vmem:[%s1091 + $0x1e0] sm:$0xff]
      %v3788 = vld [vmem:[%s1091 + $0x1e8] sm:$0xff]
      %v3789 = vld [vmem:[%s1091 + $0x1f0] sm:$0xff]
      %v3790 = vld [vmem:[%s1091 + $0x1f8] sm:$0xff]
      %v3791 = vld [vmem:[%s1095] sm:$0x3]
      %v3793 = vlaneseq
      %v3794 = vshrl.u32 %v3793, 7
      %v3795 = vsub.s32 0, %v3794
      %v3796 = vrot.slane %v3791, %v3795
      %v3797 = vlaneseq
      %v3798 = vshrl.u32 %v3797, 7
      %v3799 = vsub.s32 1, %v3798
      %v3800 = vrot.slane %v3791, %v3799
      %3803 = vmatprep.subr.mxu0 %v3728
      %3804 = vmatpush1.msra.mxu0 %v3727
      %3805 = vmatprep.subr.mxu0 %v3730
      %3806 = vmatpush1.msra.mxu0 %v3729
      %3807 = vmatprep.subr.mxu0 %v3732
      %3808 = vmatpush1.msra.mxu0 %v3731
      %3809 = vmatprep.subr.mxu0 %v3734
      %3810 = vmatpush1.msra.mxu0 %v3733
      %3811 = vmatprep.subr.mxu0 %v3736
      %3812 = vmatpush1.msra.mxu0 %v3735
      %3813 = vmatprep.subr.mxu0 %v3738
      %3814 = vmatpush1.msra.mxu0 %v3737
      %3815 = vmatprep.subr.mxu0 %v3740
      %3816 = vmatpush1.msra.mxu0 %v3739
      %3817 = vmatprep.subr.mxu0 %v3742
      %3818 = vmatpush1.msra.mxu0 %v3741
      %3819 = vmatprep.subr.mxu0 %v3744
      %3820 = vmatpush1.msra.mxu0 %v3743
      %3821 = vmatprep.subr.mxu0 %v3746
      %3822 = vmatpush1.msra.mxu0 %v3745
      %3823 = vmatprep.subr.mxu0 %v3748
      %3824 = vmatpush1.msra.mxu0 %v3747
      %3825 = vmatprep.subr.mxu0 %v3750
      %3826 = vmatpush1.msra.mxu0 %v3749
      %3827 = vmatprep.subr.mxu0 %v3752
      %3828 = vmatpush1.msra.mxu0 %v3751
      %3829 = vmatprep.subr.mxu0 %v3754
      %3830 = vmatpush1.msra.mxu0 %v3753
      %3831 = vmatprep.subr.mxu0 %v3756
      %3832 = vmatpush1.msra.mxu0 %v3755
      %3833 = vmatprep.subr.mxu0 %v3758
      %3834 = vmatpush1.msra.mxu0 %v3757
      %3835 = vmatprep.subr.mxu0 %v3760
      %3836 = vmatpush1.msra.mxu0 %v3759
      %3837 = vmatprep.subr.mxu0 %v3762
      %3838 = vmatpush1.msra.mxu0 %v3761
      %3839 = vmatprep.subr.mxu0 %v3764
      %3840 = vmatpush1.msra.mxu0 %v3763
      %3841 = vmatprep.subr.mxu0 %v3766
      %3842 = vmatpush1.msra.mxu0 %v3765
      %3843 = vmatprep.subr.mxu0 %v3768
      %3844 = vmatpush1.msra.mxu0 %v3767
      %3845 = vmatprep.subr.mxu0 %v3770
      %3846 = vmatpush1.msra.mxu0 %v3769
      %3847 = vmatprep.subr.mxu0 %v3772
      %3848 = vmatpush1.msra.mxu0 %v3771
      %3849 = vmatprep.subr.mxu0 %v3774
      %3850 = vmatpush1.msra.mxu0 %v3773
      %3851 = vmatprep.subr.mxu0 %v3776
      %3852 = vmatpush1.msra.mxu0 %v3775
      %3853 = vmatprep.subr.mxu0 %v3778
      %3854 = vmatpush1.msra.mxu0 %v3777
      %3855 = vmatprep.subr.mxu0 %v3780
      %3856 = vmatpush1.msra.mxu0 %v3779
      %3857 = vmatprep.subr.mxu0 %v3782
      %3858 = vmatpush1.msra.mxu0 %v3781
      %3859 = vmatprep.subr.mxu0 %v3784
      %3860 = vmatpush1.msra.mxu0 %v3783
      %3861 = vmatprep.subr.mxu0 %v3786
      %3862 = vmatpush1.msra.mxu0 %v3785
      %3863 = vmatprep.subr.mxu0 %v3788
      %3864 = vmatpush1.msra.mxu0 %v3787
      %3865 = vmatprep.subr.mxu0 %v3790
      %3866 = vmatpush1.msra.mxu0 %v3789
      %3867 = vmatprep.mubr.f32.mxu0 %v3724
      %3868 = vmatmul.mubr.f32.gmra.mrb[0].mxu0 %v3723
      %v3869 = vpop.f32.mrb[0].mxu0
      %v3870 = vadd.f32 %v3796, %v3869
      %v3871 = vpop.f32.mrb[0].mxu0
      %v3872 = vadd.f32 %v3800, %v3871
      %3873 = vmatprep.mubr.f32.mxu0 %v3726
      %3874 = vmatmul.mubr.f32.gmra.mrb[0].mxu0 %v3725
      %v3875 = vpop.f32.mrb[0].mxu0
      %v3876 = vadd.f32 %v3796, %v3875
      %v3877 = vpop.f32.mrb[0].mxu0
      %v3878 = vadd.f32 %v3800, %v3877
      %3879 = vdwg.mxu0
      %v3880 = vld [vmem:[%s1099] sm:$0x3]
      %v3881 = vld [vmem:[%s1103] sm:$0x3]
      %v3882 = vrot.slane %v3870, 4
      %v3883 = vadd.f32 %v3870, %v3882
      %v3884 = vrot.slane %v3883, 2
      %v3885 = vadd.f32 %v3883, %v3884
      %v3886 = vrot.slane %v3885, 1
      %v3887 = vadd.f32 %v3885, %v3886
      %v3888 = vrot.slane %v3872, 4
      %v3889 = vadd.f32 %v3872, %v3888
      %v3890 = vrot.slane %v3889, 2
      %v3891 = vadd.f32 %v3889, %v3890
      %v3892 = vrot.slane %v3891, 1
      %v3893 = vadd.f32 %v3891, %v3892
      %v3894 = vrot.slane %v3876, 4
      %v3895 = vadd.f32 %v3876, %v3894
      %v3896 = vrot.slane %v3895, 2
      %v3897 = vadd.f32 %v3895, %v3896
      %v3898 = vrot.slane %v3897, 1
      %v3899 = vadd.f32 %v3897, %v3898
      %v3900 = vrot.slane %v3878, 4
      %v3901 = vadd.f32 %v3878, %v3900
      %v3902 = vrot.slane %v3901, 2
      %v3903 = vadd.f32 %v3901, %v3902
      %v3904 = vrot.slane %v3903, 1
      %v3905 = vadd.f32 %v3903, %v3904
      %v3906 = vrcp.pop 8.0
      %v3907 = vmul.f32 %v3887, %v3906
      %v3908 = vmul.f32 %v3893, %v3906
      %v3909 = vmul.f32 %v3899, %v3906
      %v3910 = vmul.f32 %v3905, %v3906
      %v3911 = vsub.f32 %v3870, %v3907
      %v3912 = vsub.f32 %v3872, %v3908
      %v3913 = vsub.f32 %v3876, %v3909
      %v3914 = vsub.f32 %v3878, %v3910
      %v3915 = vmul.f32 %v3911, %v3911
      %v3916 = vmul.f32 %v3912, %v3912
      %v3917 = vmul.f32 %v3913, %v3913
      %v3918 = vmul.f32 %v3914, %v3914
      %v3919 = vrot.slane %v3915, 4
      %v3920 = vadd.f32 %v3915, %v3919
      %v3921 = vrot.slane %v3920, 2
      %v3922 = vadd.f32 %v3920, %v3921
      %v3923 = vrot.slane %v3922, 1
      %v3924 = vadd.f32 %v3922, %v3923
      %v3925 = vrot.slane %v3916, 4
      %v3926 = vadd.f32 %v3916, %v3925
      %v3927 = vrot.slane %v3926, 2
      %v3928 = vadd.f32 %v3926, %v3927
      %v3929 = vrot.slane %v3928, 1
      %v3930 = vadd.f32 %v3928, %v3929
      %v3931 = vrot.slane %v3917, 4
      %v3932 = vadd.f32 %v3917, %v3931
      %v3933 = vrot.slane %v3932, 2
      %v3934 = vadd.f32 %v3932, %v3933
      %v3935 = vrot.slane %v3934, 1
      %v3936 = vadd.f32 %v3934, %v3935
      %v3937 = vrot.slane %v3918, 4
      %v3938 = vadd.f32 %v3918, %v3937
      %v3939 = vrot.slane %v3938, 2
      %v3940 = vadd.f32 %v3938, %v3939
      %v3941 = vrot.slane %v3940, 1
      %v3942 = vadd.f32 %v3940, %v3941
      %v3943 = vmul.f32 %v3924, %v3906
      %v3944 = vmul.f32 %v3930, %v3906
      %v3945 = vmul.f32 %v3936, %v3906
      %v3946 = vmul.f32 %v3942, %v3906
      %v3947 = vadd.f32 %v3943, 1e-05
      %v3948 = vadd.f32 %v3944, 1e-05
      %v3949 = vadd.f32 %v3945, 1e-05
      %v3950 = vadd.f32 %v3946, 1e-05
      %v3951 = vrsqrt.pop %v3947
      %v3952 = vrsqrt.pop %v3948
      %v3953 = vrsqrt.pop %v3949
      %v3954 = vrsqrt.pop %v3950
      %v3955 = vmul.f32 %v3911, %v3951
      %v3956 = vmul.f32 %v3912, %v3952
      %v3957 = vmul.f32 %v3913, %v3953
      %v3958 = vmul.f32 %v3914, %v3954
      %v3960 = vlaneseq
      %v3961 = vshrl.u32 %v3960, 7
      %v3962 = vsub.s32 0, %v3961
      %v3963 = vrot.slane %v3880, %v3962
      %v3964 = vlaneseq
      %v3965 = vshrl.u32 %v3964, 7
      %v3966 = vsub.s32 1, %v3965
      %v3967 = vrot.slane %v3880, %v3966
      %v3970 = vmul.f32 %v3955, %v3963
      %v3971 = vmul.f32 %v3956, %v3967
      %v3972 = vmul.f32 %v3957, %v3963
      %v3973 = vmul.f32 %v3958, %v3967
      %v3975 = vlaneseq
      %v3976 = vshrl.u32 %v3975, 7
      %v3977 = vsub.s32 0, %v3976
      %v3978 = vrot.slane %v3881, %v3977
      %v3979 = vlaneseq
      %v3980 = vshrl.u32 %v3979, 7
      %v3981 = vsub.s32 1, %v3980
      %v3982 = vrot.slane %v3881, %v3981
      %v3985 = vadd.f32 %v3970, %v3978
      %v3986 = vadd.f32 %v3971, %v3982
      %v3987 = vadd.f32 %v3972, %v3978
      %v3988 = vadd.f32 %v3973, %v3982
      %v3989 = vmax.f32 %v3985, 0.0
      %v3990 = vmax.f32 %v3986, 0.0
      %v3991 = vmax.f32 %v3987, 0.0
      %v3992 = vmax.f32 %v3988, 0.0
      %v3993 = vld [vmem:[%s1108] sm:$0xff]
      %v3994 = vld [vmem:[%s1108 + $0x8] sm:$0xff]
      %v3995 = vld [vmem:[%s1108 + $0x10] sm:$0xff]
      %v3996 = vld [vmem:[%s1108 + $0x18] sm:$0xff]
      %v3997 = vld [vmem:[%s1108 + $0x20] sm:$0xff]
      %v3998 = vld [vmem:[%s1108 + $0x28] sm:$0xff]
      %v3999 = vld [vmem:[%s1108 + $0x30] sm:$0xff]
      %v4000 = vld [vmem:[%s1108 + $0x38] sm:$0xff]
      %v4001 = vld [vmem:[%s1108 + $0x40] sm:$0xff]
      %v4002 = vld [vmem:[%s1108 + $0x48] sm:$0xff]
      %v4003 = vld [vmem:[%s1108 + $0x50] sm:$0xff]
      %v4004 = vld [vmem:[%s1108 + $0x58] sm:$0xff]
      %v4005 = vld [vmem:[%s1108 + $0x60] sm:$0xff]
      %v4006 = vld [vmem:[%s1108 + $0x68] sm:$0xff]
      %v4007 = vld [vmem:[%s1108 + $0x70] sm:$0xff]
      %v4008 = vld [vmem:[%s1108 + $0x78] sm:$0xff]
      %v4009 = vld [vmem:[%s1108 + $0x80] sm:$0xff]
      %v4010 = vld [vmem:[%s1108 + $0x88] sm:$0xff]
      %v4011 = vld [vmem:[%s1108 + $0x90] sm:$0xff]
      %v4012 = vld [vmem:[%s1108 + $0x98] sm:$0xff]
      %v4013 = vld [vmem:[%s1108 + $0xa0] sm:$0xff]
      %v4014 = vld [vmem:[%s1108 + $0xa8] sm:$0xff]
      %v4015 = vld [vmem:[%s1108 + $0xb0] sm:$0xff]
      %v4016 = vld [vmem:[%s1108 + $0xb8] sm:$0xff]
      %v4017 = vld [vmem:[%s1108 + $0xc0] sm:$0xff]
      %v4018 = vld [vmem:[%s1108 + $0xc8] sm:$0xff]
      %v4019 = vld [vmem:[%s1108 + $0xd0] sm:$0xff]
      %v4020 = vld [vmem:[%s1108 + $0xd8] sm:$0xff]
      %v4021 = vld [vmem:[%s1108 + $0xe0] sm:$0xff]
      %v4022 = vld [vmem:[%s1108 + $0xe8] sm:$0xff]
      %v4023 = vld [vmem:[%s1108 + $0xf0] sm:$0xff]
      %v4024 = vld [vmem:[%s1108 + $0xf8] sm:$0xff]
      %v4025 = vld [vmem:[%s1108 + $0x100] sm:$0xff]
      %v4026 = vld [vmem:[%s1108 + $0x108] sm:$0xff]
      %v4027 = vld [vmem:[%s1108 + $0x110] sm:$0xff]
      %v4028 = vld [vmem:[%s1108 + $0x118] sm:$0xff]
      %v4029 = vld [vmem:[%s1108 + $0x120] sm:$0xff]
      %v4030 = vld [vmem:[%s1108 + $0x128] sm:$0xff]
      %v4031 = vld [vmem:[%s1108 + $0x130] sm:$0xff]
      %v4032 = vld [vmem:[%s1108 + $0x138] sm:$0xff]
      %v4033 = vld [vmem:[%s1108 + $0x140] sm:$0xff]
      %v4034 = vld [vmem:[%s1108 + $0x148] sm:$0xff]
      %v4035 = vld [vmem:[%s1108 + $0x150] sm:$0xff]
      %v4036 = vld [vmem:[%s1108 + $0x158] sm:$0xff]
      %v4037 = vld [vmem:[%s1108 + $0x160] sm:$0xff]
      %v4038 = vld [vmem:[%s1108 + $0x168] sm:$0xff]
      %v4039 = vld [vmem:[%s1108 + $0x170] sm:$0xff]
      %v4040 = vld [vmem:[%s1108 + $0x178] sm:$0xff]
      %v4041 = vld [vmem:[%s1108 + $0x180] sm:$0xff]
      %v4042 = vld [vmem:[%s1108 + $0x188] sm:$0xff]
      %v4043 = vld [vmem:[%s1108 + $0x190] sm:$0xff]
      %v4044 = vld [vmem:[%s1108 + $0x198] sm:$0xff]
      %v4045 = vld [vmem:[%s1108 + $0x1a0] sm:$0xff]
      %v4046 = vld [vmem:[%s1108 + $0x1a8] sm:$0xff]
      %v4047 = vld [vmem:[%s1108 + $0x1b0] sm:$0xff]
      %v4048 = vld [vmem:[%s1108 + $0x1b8] sm:$0xff]
      %v4049 = vld [vmem:[%s1108 + $0x1c0] sm:$0xff]
      %v4050 = vld [vmem:[%s1108 + $0x1c8] sm:$0xff]
      %v4051 = vld [vmem:[%s1108 + $0x1d0] sm:$0xff]
      %v4052 = vld [vmem:[%s1108 + $0x1d8] sm:$0xff]
      %v4053 = vld [vmem:[%s1108 + $0x1e0] sm:$0xff]
      %v4054 = vld [vmem:[%s1108 + $0x1e8] sm:$0xff]
      %v4055 = vld [vmem:[%s1108 + $0x1f0] sm:$0xff]
      %v4056 = vld [vmem:[%s1108 + $0x1f8] sm:$0xff]
      %v4057 = vld [vmem:[%s1112] sm:$0x3]
      %v4059 = vlaneseq
      %v4060 = vshrl.u32 %v4059, 7
      %v4061 = vsub.s32 0, %v4060
      %v4062 = vrot.slane %v4057, %v4061
      %v4063 = vlaneseq
      %v4064 = vshrl.u32 %v4063, 7
      %v4065 = vsub.s32 1, %v4064
      %v4066 = vrot.slane %v4057, %v4065
      %4069 = vmatprep.subr.mxu0 %v3994
      %4070 = vmatpush1.msra.mxu0 %v3993
      %4071 = vmatprep.subr.mxu0 %v3996
      %4072 = vmatpush1.msra.mxu0 %v3995
      %4073 = vmatprep.subr.mxu0 %v3998
      %4074 = vmatpush1.msra.mxu0 %v3997
      %4075 = vmatprep.subr.mxu0 %v4000
      %4076 = vmatpush1.msra.mxu0 %v3999
      %4077 = vmatprep.subr.mxu0 %v4002
      %4078 = vmatpush1.msra.mxu0 %v4001
      %4079 = vmatprep.subr.mxu0 %v4004
      %4080 = vmatpush1.msra.mxu0 %v4003
      %4081 = vmatprep.subr.mxu0 %v4006
      %4082 = vmatpush1.msra.mxu0 %v4005
      %4083 = vmatprep.subr.mxu0 %v4008
      %4084 = vmatpush1.msra.mxu0 %v4007
      %4085 = vmatprep.subr.mxu0 %v4010
      %4086 = vmatpush1.msra.mxu0 %v4009
      %4087 = vmatprep.subr.mxu0 %v4012
      %4088 = vmatpush1.msra.mxu0 %v4011
      %4089 = vmatprep.subr.mxu0 %v4014
      %4090 = vmatpush1.msra.mxu0 %v4013
      %4091 = vmatprep.subr.mxu0 %v4016
      %4092 = vmatpush1.msra.mxu0 %v4015
      %4093 = vmatprep.subr.mxu0 %v4018
      %4094 = vmatpush1.msra.mxu0 %v4017
      %4095 = vmatprep.subr.mxu0 %v4020
      %4096 = vmatpush1.msra.mxu0 %v4019
      %4097 = vmatprep.subr.mxu0 %v4022
      %4098 = vmatpush1.msra.mxu0 %v4021
      %4099 = vmatprep.subr.mxu0 %v4024
      %4100 = vmatpush1.msra.mxu0 %v4023
      %4101 = vmatprep.subr.mxu0 %v4026
      %4102 = vmatpush1.msra.mxu0 %v4025
      %4103 = vmatprep.subr.mxu0 %v4028
      %4104 = vmatpush1.msra.mxu0 %v4027
      %4105 = vmatprep.subr.mxu0 %v4030
      %4106 = vmatpush1.msra.mxu0 %v4029
      %4107 = vmatprep.subr.mxu0 %v4032
      %4108 = vmatpush1.msra.mxu0 %v4031
      %4109 = vmatprep.subr.mxu0 %v4034
      %4110 = vmatpush1.msra.mxu0 %v4033
      %4111 = vmatprep.subr.mxu0 %v4036
      %4112 = vmatpush1.msra.mxu0 %v4035
      %4113 = vmatprep.subr.mxu0 %v4038
      %4114 = vmatpush1.msra.mxu0 %v4037
      %4115 = vmatprep.subr.mxu0 %v4040
      %4116 = vmatpush1.msra.mxu0 %v4039
      %4117 = vmatprep.subr.mxu0 %v4042
      %4118 = vmatpush1.msra.mxu0 %v4041
      %4119 = vmatprep.subr.mxu0 %v4044
      %4120 = vmatpush1.msra.mxu0 %v4043
      %4121 = vmatprep.subr.mxu0 %v4046
      %4122 = vmatpush1.msra.mxu0 %v4045
      %4123 = vmatprep.subr.mxu0 %v4048
      %4124 = vmatpush1.msra.mxu0 %v4047
      %4125 = vmatprep.subr.mxu0 %v4050
      %4126 = vmatpush1.msra.mxu0 %v4049
      %4127 = vmatprep.subr.mxu0 %v4052
      %4128 = vmatpush1.msra.mxu0 %v4051
      %4129 = vmatprep.subr.mxu0 %v4054
      %4130 = vmatpush1.msra.mxu0 %v4053
      %4131 = vmatprep.subr.mxu0 %v4056
      %4132 = vmatpush1.msra.mxu0 %v4055
      %4133 = vmatprep.mubr.f32.mxu0 %v3990
      %4134 = vmatmul.mubr.f32.gmra.mrb[0].mxu0 %v3989
      %v4135 = vpop.f32.mrb[0].mxu0
      %v4136 = vadd.f32 %v4062, %v4135
      %v4137 = vpop.f32.mrb[0].mxu0
      %v4138 = vadd.f32 %v4066, %v4137
      %4139 = vmatprep.mubr.f32.mxu0 %v3992
      %4140 = vmatmul.mubr.f32.gmra.mrb[0].mxu0 %v3991
      %v4141 = vpop.f32.mrb[0].mxu0
      %v4142 = vadd.f32 %v4062, %v4141
      %v4143 = vpop.f32.mrb[0].mxu0
      %v4144 = vadd.f32 %v4066, %v4143
      %4145 = vdwg.mxu0
      %v4146 = vld [vmem:[%s1116] sm:$0x3]
      %v4147 = vld [vmem:[%s1120] sm:$0x3]
      %v4148 = vrot.slane %v4136, 4
      %v4149 = vadd.f32 %v4136, %v4148
      %v4150 = vrot.slane %v4149, 2
      %v4151 = vadd.f32 %v4149, %v4150
      %v4152 = vrot.slane %v4151, 1
      %v4153 = vadd.f32 %v4151, %v4152
      %v4154 = vrot.slane %v4138, 4
      %v4155 = vadd.f32 %v4138, %v4154
      %v4156 = vrot.slane %v4155, 2
      %v4157 = vadd.f32 %v4155, %v4156
      %v4158 = vrot.slane %v4157, 1
      %v4159 = vadd.f32 %v4157, %v4158
      %v4160 = vrot.slane %v4142, 4
      %v4161 = vadd.f32 %v4142, %v4160
      %v4162 = vrot.slane %v4161, 2
      %v4163 = vadd.f32 %v4161, %v4162
      %v4164 = vrot.slane %v4163, 1
      %v4165 = vadd.f32 %v4163, %v4164
      %v4166 = vrot.slane %v4144, 4
      %v4167 = vadd.f32 %v4144, %v4166
      %v4168 = vrot.slane %v4167, 2
      %v4169 = vadd.f32 %v4167, %v4168
      %v4170 = vrot.slane %v4169, 1
      %v4171 = vadd.f32 %v4169, %v4170
      %v4172 = vmul.f32 %v4153, %v3906
      %v4173 = vmul.f32 %v4159, %v3906
      %v4174 = vmul.f32 %v4165, %v3906
      %v4175 = vmul.f32 %v4171, %v3906
      %v4176 = vsub.f32 %v4136, %v4172
      %v4177 = vsub.f32 %v4138, %v4173
      %v4178 = vsub.f32 %v4142, %v4174
      %v4179 = vsub.f32 %v4144, %v4175
      %v4180 = vmul.f32 %v4176, %v4176
      %v4181 = vmul.f32 %v4177, %v4177
      %v4182 = vmul.f32 %v4178, %v4178
      %v4183 = vmul.f32 %v4179, %v4179
      %v4184 = vrot.slane %v4180, 4
      %v4185 = vadd.f32 %v4180, %v4184
      %v4186 = vrot.slane %v4185, 2
      %v4187 = vadd.f32 %v4185, %v4186
      %v4188 = vrot.slane %v4187, 1
      %v4189 = vadd.f32 %v4187, %v4188
      %v4190 = vrot.slane %v4181, 4
      %v4191 = vadd.f32 %v4181, %v4190
      %v4192 = vrot.slane %v4191, 2
      %v4193 = vadd.f32 %v4191, %v4192
      %v4194 = vrot.slane %v4193, 1
      %v4195 = vadd.f32 %v4193, %v4194
      %v4196 = vrot.slane %v4182, 4
      %v4197 = vadd.f32 %v4182, %v4196
      %v4198 = vrot.slane %v4197, 2
      %v4199 = vadd.f32 %v4197, %v4198
      %v4200 = vrot.slane %v4199, 1
      %v4201 = vadd.f32 %v4199, %v4200
      %v4202 = vrot.slane %v4183, 4
      %v4203 = vadd.f32 %v4183, %v4202
      %v4204 = vrot.slane %v4203, 2
      %v4205 = vadd.f32 %v4203, %v4204
      %v4206 = vrot.slane %v4205, 1
      %v4207 = vadd.f32 %v4205, %v4206
      %v4208 = vmul.f32 %v4189, %v3906
      %v4209 = vmul.f32 %v4195, %v3906
      %v4210 = vmul.f32 %v4201, %v3906
      %v4211 = vmul.f32 %v4207, %v3906
      %v4212 = vadd.f32 %v4208, 1e-05
      %v4213 = vadd.f32 %v4209, 1e-05
      %v4214 = vadd.f32 %v4210, 1e-05
      %v4215 = vadd.f32 %v4211, 1e-05
      %v4216 = vrsqrt.pop %v4212
      %v4217 = vrsqrt.pop %v4213
      %v4218 = vrsqrt.pop %v4214
      %v4219 = vrsqrt.pop %v4215
      %v4220 = vmul.f32 %v4176, %v4216
      %v4221 = vmul.f32 %v4177, %v4217
      %v4222 = vmul.f32 %v4178, %v4218
      %v4223 = vmul.f32 %v4179, %v4219
      %v4225 = vlaneseq
      %v4226 = vshrl.u32 %v4225, 7
      %v4227 = vsub.s32 0, %v4226
      %v4228 = vrot.slane %v4146, %v4227
      %v4229 = vlaneseq
      %v4230 = vshrl.u32 %v4229, 7
      %v4231 = vsub.s32 1, %v4230
      %v4232 = vrot.slane %v4146, %v4231
      %v4235 = vmul.f32 %v4220, %v4228
      %v4236 = vmul.f32 %v4221, %v4232
      %v4237 = vmul.f32 %v4222, %v4228
      %v4238 = vmul.f32 %v4223, %v4232
      %v4240 = vlaneseq
      %v4241 = vshrl.u32 %v4240, 7
      %v4242 = vsub.s32 0, %v4241
      %v4243 = vrot.slane %v4147, %v4242
      %v4244 = vlaneseq
      %v4245 = vshrl.u32 %v4244, 7
      %v4246 = vsub.s32 1, %v4245
      %v4247 = vrot.slane %v4147, %v4246
      %v4250 = vadd.f32 %v4235, %v4243
      %v4251 = vadd.f32 %v4236, %v4247
      %v4252 = vadd.f32 %v4237, %v4243
      %v4253 = vadd.f32 %v4238, %v4247
      %v4254 = vmax.f32 %v4250, 0.0
      %v4255 = vmax.f32 %v4251, 0.0
      %v4256 = vmax.f32 %v4252, 0.0
      %v4257 = vmax.f32 %v4253, 0.0
      %v4258 = vld [vmem:[%s1125] sm:$0xff]
      %v4259 = vld [vmem:[%s1125 + $0x8] sm:$0xff]
      %v4260 = vld [vmem:[%s1125 + $0x10] sm:$0xff]
      %v4261 = vld [vmem:[%s1125 + $0x18] sm:$0xff]
      %v4262 = vld [vmem:[%s1125 + $0x20] sm:$0xff]
      %v4263 = vld [vmem:[%s1125 + $0x28] sm:$0xff]
      %v4264 = vld [vmem:[%s1125 + $0x30] sm:$0xff]
      %v4265 = vld [vmem:[%s1125 + $0x38] sm:$0xff]
      %v4266 = vld [vmem:[%s1125 + $0x40] sm:$0xff]
      %v4267 = vld [vmem:[%s1125 + $0x48] sm:$0xff]
      %v4268 = vld [vmem:[%s1125 + $0x50] sm:$0xff]
      %v4269 = vld [vmem:[%s1125 + $0x58] sm:$0xff]
      %v4270 = vld [vmem:[%s1125 + $0x60] sm:$0xff]
      %v4271 = vld [vmem:[%s1125 + $0x68] sm:$0xff]
      %v4272 = vld [vmem:[%s1125 + $0x70] sm:$0xff]
      %v4273 = vld [vmem:[%s1125 + $0x78] sm:$0xff]
      %v4274 = vld [vmem:[%s1125 + $0x80] sm:$0xff]
      %v4275 = vld [vmem:[%s1125 + $0x88] sm:$0xff]
      %v4276 = vld [vmem:[%s1125 + $0x90] sm:$0xff]
      %v4277 = vld [vmem:[%s1125 + $0x98] sm:$0xff]
      %v4278 = vld [vmem:[%s1125 + $0xa0] sm:$0xff]
      %v4279 = vld [vmem:[%s1125 + $0xa8] sm:$0xff]
      %v4280 = vld [vmem:[%s1125 + $0xb0] sm:$0xff]
      %v4281 = vld [vmem:[%s1125 + $0xb8] sm:$0xff]
      %v4282 = vld [vmem:[%s1125 + $0xc0] sm:$0xff]
      %v4283 = vld [vmem:[%s1125 + $0xc8] sm:$0xff]
      %v4284 = vld [vmem:[%s1125 + $0xd0] sm:$0xff]
      %v4285 = vld [vmem:[%s1125 + $0xd8] sm:$0xff]
      %v4286 = vld [vmem:[%s1125 + $0xe0] sm:$0xff]
      %v4287 = vld [vmem:[%s1125 + $0xe8] sm:$0xff]
      %v4288 = vld [vmem:[%s1125 + $0xf0] sm:$0xff]
      %v4289 = vld [vmem:[%s1125 + $0xf8] sm:$0xff]
      %v4290 = vld [vmem:[%s1128] sm:$0x1]
      %v4292 = vlaneseq
      %v4293 = vshrl.u32 %v4292, 7
      %v4294 = vsub.s32 0, %v4293
      %v4295 = vrot.slane %v4290, %v4294
      %4297 = vmatprep.subr.mxu0 0.0
      %4298 = vmatpush1.msra.mxu0 %v4258
      %4299 = vmatprep.subr.mxu0 0.0
      %4300 = vmatpush1.msra.mxu0 %v4259
      %4301 = vmatprep.subr.mxu0 0.0
      %4302 = vmatpush1.msra.mxu0 %v4260
      %4303 = vmatprep.subr.mxu0 0.0
      %4304 = vmatpush1.msra.mxu0 %v4261
      %4305 = vmatprep.subr.mxu0 0.0
      %4306 = vmatpush1.msra.mxu0 %v4262
      %4307 = vmatprep.subr.mxu0 0.0
      %4308 = vmatpush1.msra.mxu0 %v4263
      %4309 = vmatprep.subr.mxu0 0.0
      %4310 = vmatpush1.msra.mxu0 %v4264
      %4311 = vmatprep.subr.mxu0 0.0
      %4312 = vmatpush1.msra.mxu0 %v4265
      %4313 = vmatprep.subr.mxu0 0.0
      %4314 = vmatpush1.msra.mxu0 %v4266
      %4315 = vmatprep.subr.mxu0 0.0
      %4316 = vmatpush1.msra.mxu0 %v4267
      %4317 = vmatprep.subr.mxu0 0.0
      %4318 = vmatpush1.msra.mxu0 %v4268
      %4319 = vmatprep.subr.mxu0 0.0
      %4320 = vmatpush1.msra.mxu0 %v4269
      %4321 = vmatprep.subr.mxu0 0.0
      %4322 = vmatpush1.msra.mxu0 %v4270
      %4323 = vmatprep.subr.mxu0 0.0
      %4324 = vmatpush1.msra.mxu0 %v4271
      %4325 = vmatprep.subr.mxu0 0.0
      %4326 = vmatpush1.msra.mxu0 %v4272
      %4327 = vmatprep.subr.mxu0 0.0
      %4328 = vmatpush1.msra.mxu0 %v4273
      %4329 = vmatprep.subr.mxu0 0.0
      %4330 = vmatpush1.msra.mxu0 %v4274
      %4331 = vmatprep.subr.mxu0 0.0
      %4332 = vmatpush1.msra.mxu0 %v4275
      %4333 = vmatprep.subr.mxu0 0.0
      %4334 = vmatpush1.msra.mxu0 %v4276
      %4335 = vmatprep.subr.mxu0 0.0
      %4336 = vmatpush1.msra.mxu0 %v4277
      %4337 = vmatprep.subr.mxu0 0.0
      %4338 = vmatpush1.msra.mxu0 %v4278
      %4339 = vmatprep.subr.mxu0 0.0
      %4340 = vmatpush1.msra.mxu0 %v4279
      %4341 = vmatprep.subr.mxu0 0.0
      %4342 = vmatpush1.msra.mxu0 %v4280
      %4343 = vmatprep.subr.mxu0 0.0
      %4344 = vmatpush1.msra.mxu0 %v4281
      %4345 = vmatprep.subr.mxu0 0.0
      %4346 = vmatpush1.msra.mxu0 %v4282
      %4347 = vmatprep.subr.mxu0 0.0
      %4348 = vmatpush1.msra.mxu0 %v4283
      %4349 = vmatprep.subr.mxu0 0.0
      %4350 = vmatpush1.msra.mxu0 %v4284
      %4351 = vmatprep.subr.mxu0 0.0
      %4352 = vmatpush1.msra.mxu0 %v4285
      %4353 = vmatprep.subr.mxu0 0.0
      %4354 = vmatpush1.msra.mxu0 %v4286
      %4355 = vmatprep.subr.mxu0 0.0
      %4356 = vmatpush1.msra.mxu0 %v4287
      %4357 = vmatprep.subr.mxu0 0.0
      %4358 = vmatpush1.msra.mxu0 %v4288
      %4359 = vmatprep.subr.mxu0 0.0
      %4360 = vmatpush1.msra.mxu0 %v4289
      %4361 = vmatprep.mubr.f32.mxu0 %v4255
      %4362 = vmatmul.mubr.f32.gmra.mrb[0].mxu0 %v4254
      %v4363 = vpop.f32.mrb[0].mxu0
      %v4364 = vadd.f32 %v4295, %v4363
      %v4365 = vpop.f32.mrb[0].mxu0
      %4366 = vmatprep.mubr.f32.mxu0 %v4257
      %4367 = vmatmul.mubr.f32.gmra.mrb[0].mxu0 %v4256
      %v4368 = vpop.f32.mrb[0].mxu0
      %v4369 = vadd.f32 %v4295, %v4368
      %v4370 = vpop.f32.mrb[0].mxu0
      %4371 = vdwg.mxu0
      %v4372 = vld [vmem:[%s1131] sm:$0x1]
      %v4373 = vld [vmem:[%s1134] sm:$0x1]
      %v4374 = vrot.slane %v4364, 4
      %v4375 = vadd.f32 %v4364, %v4374
      %v4376 = vrot.slane %v4375, 2
      %v4377 = vadd.f32 %v4375, %v4376
      %v4378 = vrot.slane %v4377, 1
      %v4379 = vadd.f32 %v4377, %v4378
      %v4380 = vrot.slane %v4369, 4
      %v4381 = vadd.f32 %v4369, %v4380
      %v4382 = vrot.slane %v4381, 2
      %v4383 = vadd.f32 %v4381, %v4382
      %v4384 = vrot.slane %v4383, 1
      %v4385 = vadd.f32 %v4383, %v4384
      %v4386 = vmul.f32 %v4379, %v3906
      %v4387 = vmul.f32 %v4385, %v3906
      %v4388 = vsub.f32 %v4364, %v4386
      %v4389 = vsub.f32 %v4369, %v4387
      %v4390 = vmul.f32 %v4388, %v4388
      %v4391 = vmul.f32 %v4389, %v4389
      %v4392 = vrot.slane %v4390, 4
      %v4393 = vadd.f32 %v4390, %v4392
      %v4394 = vrot.slane %v4393, 2
      %v4395 = vadd.f32 %v4393, %v4394
      %v4396 = vrot.slane %v4395, 1
      %v4397 = vadd.f32 %v4395, %v4396
      %v4398 = vrot.slane %v4391, 4
      %v4399 = vadd.f32 %v4391, %v4398
      %v4400 = vrot.slane %v4399, 2
      %v4401 = vadd.f32 %v4399, %v4400
      %v4402 = vrot.slane %v4401, 1
      %v4403 = vadd.f32 %v4401, %v4402
      %v4404 = vmul.f32 %v4397, %v3906
      %v4405 = vmul.f32 %v4403, %v3906
      %v4406 = vadd.f32 %v4404, 1e-05
      %v4407 = vadd.f32 %v4405, 1e-05
      %v4408 = vrsqrt.pop %v4406
      %v4409 = vrsqrt.pop %v4407
      %v4410 = vmul.f32 %v4388, %v4408
      %v4411 = vmul.f32 %v4389, %v4409
      %v4413 = vlaneseq
      %v4414 = vshrl.u32 %v4413, 7
      %v4415 = vsub.s32 0, %v4414
      %v4416 = vrot.slane %v4372, %v4415
      %v4418 = vmul.f32 %v4410, %v4416
      %v4419 = vmul.f32 %v4411, %v4416
      %v4421 = vlaneseq
      %v4422 = vshrl.u32 %v4421, 7
      %v4423 = vsub.s32 0, %v4422
      %v4424 = vrot.slane %v4373, %v4423
      %v4426 = vadd.f32 %v4418, %v4424
      %v4427 = vadd.f32 %v4419, %v4424
      %v4428 = vmul.f32 %v4426, %v4426
      %v4429 = vmul.f32 %v4427, %v4427
      %4430 = vadd.xlane.f32.xlu0 %v4428
      %v4431 = vpop.xlane.xlu0 %4430
      %4432 = vadd.xlane.f32.xlu0 %v4429
      %v4433 = vpop.xlane.xlu0 %4432
      %v4434 = vrsqrt.pop %v4431
      %v4435 = vmul.f32 %v4431, %v4434
      %vm4436 = vcmp.eq.f32.partialorder %v4431, inf
      %v4437 = vsel %vm4436, %v4431, %v4435
      %vm4438 = vcmp.eq.f32.partialorder %v4431, 0.0
      %v4439 = vand.u32 %v4431, 2147483648
      %v4440 = vsel %vm4438, %v4439, %v4437
      %v4441 = vrsqrt.pop %v4433
      %v4442 = vmul.f32 %v4433, %v4441
      %vm4443 = vcmp.eq.f32.partialorder %v4433, inf
      %v4444 = vsel %vm4443, %v4433, %v4442
      %vm4445 = vcmp.eq.f32.partialorder %v4433, 0.0
      %v4446 = vand.u32 %v4433, 2147483648
      %v4447 = vsel %vm4445, %v4446, %v4444
      %v4448 = vmax.f32 %v4440, 1e-12
      %v4449 = vmax.f32 %v4447, 1e-12
      %v4450 = vrcp.pop %v4448
      %v4451 = vmul.f32 %v4426, %v4450
      %v4452 = vrcp.pop %v4449
      %v4453 = vmul.f32 %v4427, %v4452
      %4454 = vmatprep.subr.mxu0 0.0
      %4455 = vmatpush1.xpose.msra.mxu0 %v4453
      %4456 = vmatprep.subr.mxu0 0.0
      %4457 = vmatpush1.xpose.msra.mxu0 0.0
      %4458 = vmatprep.subr.mxu0 0.0
      %4459 = vmatpush1.xpose.msra.mxu0 0.0
      %4460 = vmatprep.subr.mxu0 0.0
      %4461 = vmatpush1.xpose.msra.mxu0 0.0
      %4462 = vmatprep.subr.mxu0 0.0
      %4463 = vmatpush1.xpose.msra.mxu0 0.0
      %4464 = vmatprep.subr.mxu0 0.0
      %4465 = vmatpush1.xpose.msra.mxu0 0.0
      %4466 = vmatprep.subr.mxu0 0.0
      %4467 = vmatpush1.xpose.msra.mxu0 0.0
      %4468 = vmatprep.subr.mxu0 0.0
      %4469 = vmatpush1.xpose.msra.mxu0 0.0
      %4470 = vmatprep.subr.mxu0 0.0
      %4471 = vmatpush1.xpose.msra.mxu0 0.0
      %4472 = vmatprep.subr.mxu0 0.0
      %4473 = vmatpush1.xpose.msra.mxu0 0.0
      %4474 = vmatprep.subr.mxu0 0.0
      %4475 = vmatpush1.xpose.msra.mxu0 0.0
      %4476 = vmatprep.subr.mxu0 0.0
      %4477 = vmatpush1.xpose.msra.mxu0 0.0
      %4478 = vmatprep.subr.mxu0 0.0
      %4479 = vmatpush1.xpose.msra.mxu0 0.0
      %4480 = vmatprep.subr.mxu0 0.0
      %4481 = vmatpush1.xpose.msra.mxu0 0.0
      %4482 = vmatprep.subr.mxu0 0.0
      %4483 = vmatpush1.xpose.msra.mxu0 0.0
      %4484 = vmatprep.subr.mxu0 0.0
      %4485 = vmatpush1.xpose.msra.mxu0 0.0
      %4486 = vmatprep.subr.mxu0 0.0
      %4487 = vmatpush1.xpose.msra.mxu0 0.0
      %4488 = vmatprep.subr.mxu0 0.0
      %4489 = vmatpush1.xpose.msra.mxu0 0.0
      %4490 = vmatprep.subr.mxu0 0.0
      %4491 = vmatpush1.xpose.msra.mxu0 0.0
      %4492 = vmatprep.subr.mxu0 0.0
      %4493 = vmatpush1.xpose.msra.mxu0 0.0
      %4494 = vmatprep.subr.mxu0 0.0
      %4495 = vmatpush1.xpose.msra.mxu0 0.0
      %4496 = vmatprep.subr.mxu0 0.0
      %4497 = vmatpush1.xpose.msra.mxu0 0.0
      %4498 = vmatprep.subr.mxu0 0.0
      %4499 = vmatpush1.xpose.msra.mxu0 0.0
      %4500 = vmatprep.subr.mxu0 0.0
      %4501 = vmatpush1.xpose.msra.mxu0 0.0
      %4502 = vmatprep.subr.mxu0 0.0
      %4503 = vmatpush1.xpose.msra.mxu0 0.0
      %4504 = vmatprep.subr.mxu0 0.0
      %4505 = vmatpush1.xpose.msra.mxu0 0.0
      %4506 = vmatprep.subr.mxu0 0.0
      %4507 = vmatpush1.xpose.msra.mxu0 0.0
      %4508 = vmatprep.subr.mxu0 0.0
      %4509 = vmatpush1.xpose.msra.mxu0 0.0
      %4510 = vmatprep.subr.mxu0 0.0
      %4511 = vmatpush1.xpose.msra.mxu0 0.0
      %4512 = vmatprep.subr.mxu0 0.0
      %4513 = vmatpush1.xpose.msra.mxu0 0.0
      %4514 = vmatprep.subr.mxu0 0.0
      %4515 = vmatpush1.xpose.msra.mxu0 0.0
      %4516 = vmatprep.subr.mxu0 0.0
      %4517 = vmatpush1.xpose.msra.mxu0 0.0
      %4518 = vmatprep.mubr.f32.mxu0 0.0
      %4519 = vmatmul.mubr.f32.gmra.mrb[0].mxu0 %v4451
      %v4520 = vpop.f32.mrb[0].mxu0
      %v4521 = vadd.f32 0.0, %v4520
      %v4522 = vpop.f32.mrb[0].mxu0
      %4523 = vdwg.mxu0
      %v4524 = vmul.f32 %v4521, 2.0
      %v4525 = vsub.f32 2.0, %v4524
      %4526 = vmatprep.subr.mxu0 0.0
      %4527 = vmatpush1.xpose.msra.mxu0 %v4451
      %4528 = vmatprep.subr.mxu0 0.0
      %4529 = vmatpush1.xpose.msra.mxu0 0.0
      %4530 = vmatprep.subr.mxu0 0.0
      %4531 = vmatpush1.xpose.msra.mxu0 0.0
      %4532 = vmatprep.subr.mxu0 0.0
      %4533 = vmatpush1.xpose.msra.mxu0 0.0
      %4534 = vmatprep.subr.mxu0 0.0
      %4535 = vmatpush1.xpose.msra.mxu0 0.0
      %4536 = vmatprep.subr.mxu0 0.0
      %4537 = vmatpush1.xpose.msra.mxu0 0.0
      %4538 = vmatprep.subr.mxu0 0.0
      %4539 = vmatpush1.xpose.msra.mxu0 0.0
      %4540 = vmatprep.subr.mxu0 0.0
      %4541 = vmatpush1.xpose.msra.mxu0 0.0
      %4542 = vmatprep.subr.mxu0 0.0
      %4543 = vmatpush1.xpose.msra.mxu0 0.0
      %4544 = vmatprep.subr.mxu0 0.0
      %4545 = vmatpush1.xpose.msra.mxu0 0.0
      %4546 = vmatprep.subr.mxu0 0.0
      %4547 = vmatpush1.xpose.msra.mxu0 0.0
      %4548 = vmatprep.subr.mxu0 0.0
      %4549 = vmatpush1.xpose.msra.mxu0 0.0
      %4550 = vmatprep.subr.mxu0 0.0
      %4551 = vmatpush1.xpose.msra.mxu0 0.0
      %4552 = vmatprep.subr.mxu0 0.0
      %4553 = vmatpush1.xpose.msra.mxu0 0.0
      %4554 = vmatprep.subr.mxu0 0.0
      %4555 = vmatpush1.xpose.msra.mxu0 0.0
      %4556 = vmatprep.subr.mxu0 0.0
      %4557 = vmatpush1.xpose.msra.mxu0 0.0
      %4558 = vmatprep.subr.mxu0 0.0
      %4559 = vmatpush1.xpose.msra.mxu0 0.0
      %4560 = vmatprep.subr.mxu0 0.0
      %4561 = vmatpush1.xpose.msra.mxu0 0.0
      %4562 = vmatprep.subr.mxu0 0.0
      %4563 = vmatpush1.xpose.msra.mxu0 0.0
      %4564 = vmatprep.subr.mxu0 0.0
      %4565 = vmatpush1.xpose.msra.mxu0 0.0
      %4566 = vmatprep.subr.mxu0 0.0
      %4567 = vmatpush1.xpose.msra.mxu0 0.0
      %4568 = vmatprep.subr.mxu0 0.0
      %4569 = vmatpush1.xpose.msra.mxu0 0.0
      %4570 = vmatprep.subr.mxu0 0.0
      %4571 = vmatpush1.xpose.msra.mxu0 0.0
      %4572 = vmatprep.subr.mxu0 0.0
      %4573 = vmatpush1.xpose.msra.mxu0 0.0
      %4574 = vmatprep.subr.mxu0 0.0
      %4575 = vmatpush1.xpose.msra.mxu0 0.0
      %4576 = vmatprep.subr.mxu0 0.0
      %4577 = vmatpush1.xpose.msra.mxu0 0.0
      %4578 = vmatprep.subr.mxu0 0.0
      %4579 = vmatpush1.xpose.msra.mxu0 0.0
      %4580 = vmatprep.subr.mxu0 0.0
      %4581 = vmatpush1.xpose.msra.mxu0 0.0
      %4582 = vmatprep.subr.mxu0 0.0
      %4583 = vmatpush1.xpose.msra.mxu0 0.0
      %4584 = vmatprep.subr.mxu0 0.0
      %4585 = vmatpush1.xpose.msra.mxu0 0.0
      %4586 = vmatprep.subr.mxu0 0.0
      %4587 = vmatpush1.xpose.msra.mxu0 0.0
      %4588 = vmatprep.subr.mxu0 0.0
      %4589 = vmatpush1.xpose.msra.mxu0 0.0
      %4590 = vmatprep.mubr.f32.mxu0 0.0
      %4591 = vmatmul.mubr.f32.gmra.mrb[0].mxu0 %v4453
      %v4592 = vpop.f32.mrb[0].mxu0
      %v4593 = vadd.f32 0.0, %v4592
      %v4594 = vpop.f32.mrb[0].mxu0
      %4595 = vdwg.mxu0
      %v4596 = vmul.f32 %v4593, 2.0
      %v4597 = vsub.f32 2.0, %v4596
      %vm4598 = vcmask 64512
      %v4599 = vsel %vm4598, %v4525, inf
      %4600 = vmin.xlane.f32.xlu0 %v4599
      %v4601 = vpop.xlane.xlu0 %4600
      %vm4602 = vcmp.le.f32.partialorder %v4525, %v4601
      %v4603 = vsel %vm4602, %v2981, 8
      %v4604 = vsel %vm4598, %v4603, 2147483647
      %v4605 = vand.u32 %v4604, 65535
      %v4606 = vshra.s32 %v4604, 16
      %v4607 = vcvt.s32.f32 %v4605
      %v4608 = vcvt.s32.f32 %v4606
      %4609 = vmin.xlane.f32.xlu0 %v4608
      %v4610 = vpop.xlane.xlu0 %4609
      %vm4611 = vcmp.eq.f32.partialorder %v4608, %v4610
      %v4612 = vsel %vm4611, %v4607, inf
      %4613 = vmin.xlane.f32.xlu0 %v4612
      %v4614 = vpop.xlane.xlu0 %4613
      %v4615 = vcvt.f32.s32 %v4614
      %v4616 = vcvt.f32.s32 %v4610
      %v4617 = vshll.u32 %v4616, 16
      %v4618 = vadd.s32 %v4617, %v4615
      %vm4619 = vcmp.eq.s32.totalorder %v2981, %v4618
      %v4620 = vsel %vm4619, 1, 0
      %v4621 = vcvt.s32.f32 %v4620
      %v4623 = vsel %vm4598, %v4621, 0
      %4625 = vmatprep.subr.mxu0 0.0
      %4626 = vmatpush1.msra.mxu0 %v4426
      %4627 = vmatprep.subr.mxu0 0.0
      %4628 = vmatpush1.msra.mxu0 0.0
      %4629 = vmatprep.subr.mxu0 0.0
      %4630 = vmatpush1.msra.mxu0 0.0
      %4631 = vmatprep.subr.mxu0 0.0
      %4632 = vmatpush1.msra.mxu0 0.0
      %4633 = vmatprep.subr.mxu0 0.0
      %4634 = vmatpush1.msra.mxu0 0.0
      %4635 = vmatprep.subr.mxu0 0.0
      %4636 = vmatpush1.msra.mxu0 0.0
      %4637 = vmatprep.subr.mxu0 0.0
      %4638 = vmatpush1.msra.mxu0 0.0
      %4639 = vmatprep.subr.mxu0 0.0
      %4640 = vmatpush1.msra.mxu0 0.0
      %4641 = vmatprep.subr.mxu0 0.0
      %4642 = vmatpush1.msra.mxu0 0.0
      %4643 = vmatprep.subr.mxu0 0.0
      %4644 = vmatpush1.msra.mxu0 0.0
      %4645 = vmatprep.subr.mxu0 0.0
      %4646 = vmatpush1.msra.mxu0 0.0
      %4647 = vmatprep.subr.mxu0 0.0
      %4648 = vmatpush1.msra.mxu0 0.0
      %4649 = vmatprep.subr.mxu0 0.0
      %4650 = vmatpush1.msra.mxu0 0.0
      %4651 = vmatprep.subr.mxu0 0.0
      %4652 = vmatpush1.msra.mxu0 0.0
      %4653 = vmatprep.subr.mxu0 0.0
      %4654 = vmatpush1.msra.mxu0 0.0
      %4655 = vmatprep.subr.mxu0 0.0
      %4656 = vmatpush1.msra.mxu0 0.0
      %4657 = vmatprep.subr.mxu0 0.0
      %4658 = vmatpush1.msra.mxu0 0.0
      %4659 = vmatprep.subr.mxu0 0.0
      %4660 = vmatpush1.msra.mxu0 0.0
      %4661 = vmatprep.subr.mxu0 0.0
      %4662 = vmatpush1.msra.mxu0 0.0
      %4663 = vmatprep.subr.mxu0 0.0
      %4664 = vmatpush1.msra.mxu0 0.0
      %4665 = vmatprep.subr.mxu0 0.0
      %4666 = vmatpush1.msra.mxu0 0.0
      %4667 = vmatprep.subr.mxu0 0.0
      %4668 = vmatpush1.msra.mxu0 0.0
      %4669 = vmatprep.subr.mxu0 0.0
      %4670 = vmatpush1.msra.mxu0 0.0
      %4671 = vmatprep.subr.mxu0 0.0
      %4672 = vmatpush1.msra.mxu0 0.0
      %4673 = vmatprep.subr.mxu0 0.0
      %4674 = vmatpush1.msra.mxu0 0.0
      %4675 = vmatprep.subr.mxu0 0.0
      %4676 = vmatpush1.msra.mxu0 0.0
      %4677 = vmatprep.subr.mxu0 0.0
      %4678 = vmatpush1.msra.mxu0 0.0
      %4679 = vmatprep.subr.mxu0 0.0
      %4680 = vmatpush1.msra.mxu0 0.0
      %4681 = vmatprep.subr.mxu0 0.0
      %4682 = vmatpush1.msra.mxu0 0.0
      %4683 = vmatprep.subr.mxu0 0.0
      %4684 = vmatpush1.msra.mxu0 0.0
      %4685 = vmatprep.subr.mxu0 0.0
      %4686 = vmatpush1.msra.mxu0 0.0
      %4687 = vmatprep.subr.mxu0 0.0
      %4688 = vmatpush1.msra.mxu0 0.0
      %4689 = vmatprep.mubr.f32.mxu0 0.0
      %4690 = vmatmul.mubr.f32.gmra.mrb[0].mxu0 %v4623
      %v4691 = vpop.f32.mrb[0].mxu0
      %v4692 = vadd.f32 0.0, %v4691
      %v4693 = vpop.f32.mrb[0].mxu0
      %4694 = vdwg.mxu0
      %v4695 = vsel %vm4598, %v4597, inf
      %4696 = vmin.xlane.f32.xlu0 %v4695
      %v4697 = vpop.xlane.xlu0 %4696
      %vm4698 = vcmp.le.f32.partialorder %v4597, %v4697
      %v4699 = vsel %vm4698, %v2981, 8
      %v4700 = vsel %vm4598, %v4699, 2147483647
      %v4701 = vand.u32 %v4700, 65535
      %v4702 = vshra.s32 %v4700, 16
      %v4703 = vcvt.s32.f32 %v4701
      %v4704 = vcvt.s32.f32 %v4702
      %4705 = vmin.xlane.f32.xlu0 %v4704
      %v4706 = vpop.xlane.xlu0 %4705
      %vm4707 = vcmp.eq.f32.partialorder %v4704, %v4706
      %v4708 = vsel %vm4707, %v4703, inf
      %4709 = vmin.xlane.f32.xlu0 %v4708
      %v4710 = vpop.xlane.xlu0 %4709
      %v4711 = vcvt.f32.s32 %v4710
      %v4712 = vcvt.f32.s32 %v4706
      %v4713 = vshll.u32 %v4712, 16
      %v4714 = vadd.s32 %v4713, %v4711
      %vm4715 = vcmp.eq.s32.totalorder %v2981, %v4714
      %v4716 = vsel %vm4715, 1, 0
      %v4717 = vcvt.s32.f32 %v4716
      %v4719 = vsel %vm4598, %v4717, 0
      %4721 = vmatprep.subr.mxu0 0.0
      %4722 = vmatpush1.msra.mxu0 %v4427
      %4723 = vmatprep.subr.mxu0 0.0
      %4724 = vmatpush1.msra.mxu0 0.0
      %4725 = vmatprep.subr.mxu0 0.0
      %4726 = vmatpush1.msra.mxu0 0.0
      %4727 = vmatprep.subr.mxu0 0.0
      %4728 = vmatpush1.msra.mxu0 0.0
      %4729 = vmatprep.subr.mxu0 0.0
      %4730 = vmatpush1.msra.mxu0 0.0
      %4731 = vmatprep.subr.mxu0 0.0
      %4732 = vmatpush1.msra.mxu0 0.0
      %4733 = vmatprep.subr.mxu0 0.0
      %4734 = vmatpush1.msra.mxu0 0.0
      %4735 = vmatprep.subr.mxu0 0.0
      %4736 = vmatpush1.msra.mxu0 0.0
      %4737 = vmatprep.subr.mxu0 0.0
      %4738 = vmatpush1.msra.mxu0 0.0
      %4739 = vmatprep.subr.mxu0 0.0
      %4740 = vmatpush1.msra.mxu0 0.0
      %4741 = vmatprep.subr.mxu0 0.0
      %4742 = vmatpush1.msra.mxu0 0.0
      %4743 = vmatprep.subr.mxu0 0.0
      %4744 = vmatpush1.msra.mxu0 0.0
      %4745 = vmatprep.subr.mxu0 0.0
      %4746 = vmatpush1.msra.mxu0 0.0
      %4747 = vmatprep.subr.mxu0 0.0
      %4748 = vmatpush1.msra.mxu0 0.0
      %4749 = vmatprep.subr.mxu0 0.0
      %4750 = vmatpush1.msra.mxu0 0.0
      %4751 = vmatprep.subr.mxu0 0.0
      %4752 = vmatpush1.msra.mxu0 0.0
      %4753 = vmatprep.subr.mxu0 0.0
      %4754 = vmatpush1.msra.mxu0 0.0
      %4755 = vmatprep.subr.mxu0 0.0
      %4756 = vmatpush1.msra.mxu0 0.0
      %4757 = vmatprep.subr.mxu0 0.0
      %4758 = vmatpush1.msra.mxu0 0.0
      %4759 = vmatprep.subr.mxu0 0.0
      %4760 = vmatpush1.msra.mxu0 0.0
      %4761 = vmatprep.subr.mxu0 0.0
      %4762 = vmatpush1.msra.mxu0 0.0
      %4763 = vmatprep.subr.mxu0 0.0
      %4764 = vmatpush1.msra.mxu0 0.0
      %4765 = vmatprep.subr.mxu0 0.0
      %4766 = vmatpush1.msra.mxu0 0.0
      %4767 = vmatprep.subr.mxu0 0.0
      %4768 = vmatpush1.msra.mxu0 0.0
      %4769 = vmatprep.subr.mxu0 0.0
      %4770 = vmatpush1.msra.mxu0 0.0
      %4771 = vmatprep.subr.mxu0 0.0
      %4772 = vmatpush1.msra.mxu0 0.0
      %4773 = vmatprep.subr.mxu0 0.0
      %4774 = vmatpush1.msra.mxu0 0.0
      %4775 = vmatprep.subr.mxu0 0.0
      %4776 = vmatpush1.msra.mxu0 0.0
      %4777 = vmatprep.subr.mxu0 0.0
      %4778 = vmatpush1.msra.mxu0 0.0
      %4779 = vmatprep.subr.mxu0 0.0
      %4780 = vmatpush1.msra.mxu0 0.0
      %4781 = vmatprep.subr.mxu0 0.0
      %4782 = vmatpush1.msra.mxu0 0.0
      %4783 = vmatprep.subr.mxu0 0.0
      %4784 = vmatpush1.msra.mxu0 0.0
      %4785 = vmatprep.mubr.f32.mxu0 0.0
      %4786 = vmatmul.mubr.f32.gmra.mrb[0].mxu0 %v4719
      %v4787 = vpop.f32.mrb[0].mxu0
      %v4788 = vadd.f32 0.0, %v4787
      %v4789 = vpop.f32.mrb[0].mxu0
      %4790 = vdwg.mxu0
      %v4791 = vld [vmem:[%s1139] sm:$0xff]
      %v4792 = vld [vmem:[%s1139 + $0x8] sm:$0xff]
      %v4793 = vld [vmem:[%s1139 + $0x10] sm:$0xff]
      %v4794 = vld [vmem:[%s1139 + $0x18] sm:$0xff]
      %v4795 = vld [vmem:[%s1139 + $0x20] sm:$0xff]
      %v4796 = vld [vmem:[%s1139 + $0x28] sm:$0xff]
      %v4797 = vld [vmem:[%s1139 + $0x30] sm:$0xff]
      %v4798 = vld [vmem:[%s1139 + $0x38] sm:$0xff]
      %v4799 = vld [vmem:[%s1139 + $0x40] sm:$0xff]
      %v4800 = vld [vmem:[%s1139 + $0x48] sm:$0xff]
      %v4801 = vld [vmem:[%s1139 + $0x50] sm:$0xff]
      %v4802 = vld [vmem:[%s1139 + $0x58] sm:$0xff]
      %v4803 = vld [vmem:[%s1139 + $0x60] sm:$0xff]
      %v4804 = vld [vmem:[%s1139 + $0x68] sm:$0xff]
      %v4805 = vld [vmem:[%s1139 + $0x70] sm:$0xff]
      %v4806 = vld [vmem:[%s1139 + $0x78] sm:$0xff]
      %v4807 = vld [vmem:[%s1142] sm:$0x1]
      %v4809 = vlaneseq
      %v4810 = vshrl.u32 %v4809, 7
      %v4811 = vsub.s32 0, %v4810
      %v4812 = vrot.slane %v4807, %v4811
      %4814 = vmatprep.subr.mxu0 0.0
      %4815 = vmatpush1.msra.mxu0 %v4791
      %4816 = vmatprep.subr.mxu0 0.0
      %4817 = vmatpush1.msra.mxu0 %v4792
      %4818 = vmatprep.subr.mxu0 0.0
      %4819 = vmatpush1.msra.mxu0 %v4793
      %4820 = vmatprep.subr.mxu0 0.0
      %4821 = vmatpush1.msra.mxu0 %v4794
      %4822 = vmatprep.subr.mxu0 0.0
      %4823 = vmatpush1.msra.mxu0 %v4795
      %4824 = vmatprep.subr.mxu0 0.0
      %4825 = vmatpush1.msra.mxu0 %v4796
      %4826 = vmatprep.subr.mxu0 0.0
      %4827 = vmatpush1.msra.mxu0 %v4797
      %4828 = vmatprep.subr.mxu0 0.0
      %4829 = vmatpush1.msra.mxu0 %v4798
      %4830 = vmatprep.subr.mxu0 0.0
      %4831 = vmatpush1.msra.mxu0 %v4799
      %4832 = vmatprep.subr.mxu0 0.0
      %4833 = vmatpush1.msra.mxu0 %v4800
      %4834 = vmatprep.subr.mxu0 0.0
      %4835 = vmatpush1.msra.mxu0 %v4801
      %4836 = vmatprep.subr.mxu0 0.0
      %4837 = vmatpush1.msra.mxu0 %v4802
      %4838 = vmatprep.subr.mxu0 0.0
      %4839 = vmatpush1.msra.mxu0 %v4803
      %4840 = vmatprep.subr.mxu0 0.0
      %4841 = vmatpush1.msra.mxu0 %v4804
      %4842 = vmatprep.subr.mxu0 0.0
      %4843 = vmatpush1.msra.mxu0 %v4805
      %4844 = vmatprep.subr.mxu0 0.0
      %4845 = vmatpush1.msra.mxu0 %v4806
      %4846 = vmatprep.subr.mxu0 0.0
      %4847 = vmatpush1.msra.mxu0 0.0
      %4848 = vmatprep.subr.mxu0 0.0
      %4849 = vmatpush1.msra.mxu0 0.0
      %4850 = vmatprep.subr.mxu0 0.0
      %4851 = vmatpush1.msra.mxu0 0.0
      %4852 = vmatprep.subr.mxu0 0.0
      %4853 = vmatpush1.msra.mxu0 0.0
      %4854 = vmatprep.subr.mxu0 0.0
      %4855 = vmatpush1.msra.mxu0 0.0
      %4856 = vmatprep.subr.mxu0 0.0
      %4857 = vmatpush1.msra.mxu0 0.0
      %4858 = vmatprep.subr.mxu0 0.0
      %4859 = vmatpush1.msra.mxu0 0.0
      %4860 = vmatprep.subr.mxu0 0.0
      %4861 = vmatpush1.msra.mxu0 0.0
      %4862 = vmatprep.subr.mxu0 0.0
      %4863 = vmatpush1.msra.mxu0 0.0
      %4864 = vmatprep.subr.mxu0 0.0
      %4865 = vmatpush1.msra.mxu0 0.0
      %4866 = vmatprep.subr.mxu0 0.0
      %4867 = vmatpush1.msra.mxu0 0.0
      %4868 = vmatprep.subr.mxu0 0.0
      %4869 = vmatpush1.msra.mxu0 0.0
      %4870 = vmatprep.subr.mxu0 0.0
      %4871 = vmatpush1.msra.mxu0 0.0
      %4872 = vmatprep.subr.mxu0 0.0
      %4873 = vmatpush1.msra.mxu0 0.0
      %4874 = vmatprep.subr.mxu0 0.0
      %4875 = vmatpush1.msra.mxu0 0.0
      %4876 = vmatprep.subr.mxu0 0.0
      %4877 = vmatpush1.msra.mxu0 0.0
      %4878 = vmatprep.mubr.f32.mxu0 0.0
      %4879 = vmatmul.mubr.f32.gmra.mrb[0].mxu0 %v4426
      %v4880 = vpop.f32.mrb[0].mxu0
      %v4881 = vadd.f32 %v4812, %v4880
      %v4882 = vpop.f32.mrb[0].mxu0
      %4883 = vmatprep.mubr.f32.mxu0 0.0
      %4884 = vmatmul.mubr.f32.gmra.mrb[0].mxu0 %v4427
      %v4885 = vpop.f32.mrb[0].mxu0
      %v4886 = vadd.f32 %v4812, %v4885
      %v4887 = vpop.f32.mrb[0].mxu0
      %4888 = vdwg.mxu0
      %v4889 = vld [vmem:[%s1145] sm:$0x1]
      %v4890 = vld [vmem:[%s1148] sm:$0x1]
      %v4891 = vrot.slane %v4881, 4
      %v4892 = vadd.f32 %v4881, %v4891
      %v4893 = vrot.slane %v4892, 2
      %v4894 = vadd.f32 %v4892, %v4893
      %v4895 = vrot.slane %v4894, 1
      %v4896 = vadd.f32 %v4894, %v4895
      %v4897 = vrot.slane %v4886, 4
      %v4898 = vadd.f32 %v4886, %v4897
      %v4899 = vrot.slane %v4898, 2
      %v4900 = vadd.f32 %v4898, %v4899
      %v4901 = vrot.slane %v4900, 1
      %v4902 = vadd.f32 %v4900, %v4901
      %v4903 = vmul.f32 %v4896, %v3906
      %v4904 = vmul.f32 %v4902, %v3906
      %v4905 = vsub.f32 %v4881, %v4903
      %v4906 = vsub.f32 %v4886, %v4904
      %v4907 = vmul.f32 %v4905, %v4905
      %v4908 = vmul.f32 %v4906, %v4906
      %v4909 = vrot.slane %v4907, 4
      %v4910 = vadd.f32 %v4907, %v4909
      %v4911 = vrot.slane %v4910, 2
      %v4912 = vadd.f32 %v4910, %v4911
      %v4913 = vrot.slane %v4912, 1
      %v4914 = vadd.f32 %v4912, %v4913
      %v4915 = vrot.slane %v4908, 4
      %v4916 = vadd.f32 %v4908, %v4915
      %v4917 = vrot.slane %v4916, 2
      %v4918 = vadd.f32 %v4916, %v4917
      %v4919 = vrot.slane %v4918, 1
      %v4920 = vadd.f32 %v4918, %v4919
      %v4921 = vmul.f32 %v4914, %v3906
      %v4922 = vmul.f32 %v4920, %v3906
      %v4923 = vadd.f32 %v4921, 1e-05
      %v4924 = vadd.f32 %v4922, 1e-05
      %v4925 = vrsqrt.pop %v4923
      %v4926 = vrsqrt.pop %v4924
      %v4927 = vmul.f32 %v4905, %v4925
      %v4928 = vmul.f32 %v4906, %v4926
      %v4930 = vlaneseq
      %v4931 = vshrl.u32 %v4930, 7
      %v4932 = vsub.s32 0, %v4931
      %v4933 = vrot.slane %v4889, %v4932
      %v4935 = vmul.f32 %v4927, %v4933
      %v4936 = vmul.f32 %v4928, %v4933
      %v4938 = vlaneseq
      %v4939 = vshrl.u32 %v4938, 7
      %v4940 = vsub.s32 0, %v4939
      %v4941 = vrot.slane %v4890, %v4940
      %v4943 = vadd.f32 %v4935, %v4941
      %v4944 = vadd.f32 %v4936, %v4941
      %v4945 = vmax.f32 %v4943, 0.0
      %v4946 = vmax.f32 %v4944, 0.0
      %v4947 = vld [vmem:[%s1153] sm:$0xff]
      %v4948 = vld [vmem:[%s1153 + $0x8] sm:$0xff]
      %v4949 = vld [vmem:[%s1153 + $0x10] sm:$0xff]
      %v4950 = vld [vmem:[%s1153 + $0x18] sm:$0xff]
      %v4951 = vld [vmem:[%s1153 + $0x20] sm:$0xff]
      %v4952 = vld [vmem:[%s1153 + $0x28] sm:$0xff]
      %v4953 = vld [vmem:[%s1153 + $0x30] sm:$0xff]
      %v4954 = vld [vmem:[%s1153 + $0x38] sm:$0xff]
      %v4955 = vld [vmem:[%s1153 + $0x40] sm:$0xff]
      %v4956 = vld [vmem:[%s1153 + $0x48] sm:$0xff]
      %v4957 = vld [vmem:[%s1153 + $0x50] sm:$0xff]
      %v4958 = vld [vmem:[%s1153 + $0x58] sm:$0xff]
      %v4959 = vld [vmem:[%s1153 + $0x60] sm:$0xff]
      %v4960 = vld [vmem:[%s1153 + $0x68] sm:$0xff]
      %v4961 = vld [vmem:[%s1153 + $0x70] sm:$0xff]
      %v4962 = vld [vmem:[%s1153 + $0x78] sm:$0xff]
      %v4963 = vld [vmem:[%s1156] sm:$0x1]
      %v4965 = vlaneseq
      %v4966 = vshrl.u32 %v4965, 7
      %v4967 = vsub.s32 0, %v4966
      %v4968 = vrot.slane %v4963, %v4967
      %4970 = vmatprep.subr.mxu0 0.0
      %4971 = vmatpush1.msra.mxu0 %v4947
      %4972 = vmatprep.subr.mxu0 0.0
      %4973 = vmatpush1.msra.mxu0 %v4948
      %4974 = vmatprep.subr.mxu0 0.0
      %4975 = vmatpush1.msra.mxu0 %v4949
      %4976 = vmatprep.subr.mxu0 0.0
      %4977 = vmatpush1.msra.mxu0 %v4950
      %4978 = vmatprep.subr.mxu0 0.0
      %4979 = vmatpush1.msra.mxu0 %v4951
      %4980 = vmatprep.subr.mxu0 0.0
      %4981 = vmatpush1.msra.mxu0 %v4952
      %4982 = vmatprep.subr.mxu0 0.0
      %4983 = vmatpush1.msra.mxu0 %v4953
      %4984 = vmatprep.subr.mxu0 0.0
      %4985 = vmatpush1.msra.mxu0 %v4954
      %4986 = vmatprep.subr.mxu0 0.0
      %4987 = vmatpush1.msra.mxu0 %v4955
      %4988 = vmatprep.subr.mxu0 0.0
      %4989 = vmatpush1.msra.mxu0 %v4956
      %4990 = vmatprep.subr.mxu0 0.0
      %4991 = vmatpush1.msra.mxu0 %v4957
      %4992 = vmatprep.subr.mxu0 0.0
      %4993 = vmatpush1.msra.mxu0 %v4958
      %4994 = vmatprep.subr.mxu0 0.0
      %4995 = vmatpush1.msra.mxu0 %v4959
      %4996 = vmatprep.subr.mxu0 0.0
      %4997 = vmatpush1.msra.mxu0 %v4960
      %4998 = vmatprep.subr.mxu0 0.0
      %4999 = vmatpush1.msra.mxu0 %v4961
      %5000 = vmatprep.subr.mxu0 0.0
      %5001 = vmatpush1.msra.mxu0 %v4962
      %5002 = vmatprep.subr.mxu0 0.0
      %5003 = vmatpush1.msra.mxu0 0.0
      %5004 = vmatprep.subr.mxu0 0.0
      %5005 = vmatpush1.msra.mxu0 0.0
      %5006 = vmatprep.subr.mxu0 0.0
      %5007 = vmatpush1.msra.mxu0 0.0
      %5008 = vmatprep.subr.mxu0 0.0
      %5009 = vmatpush1.msra.mxu0 0.0
      %5010 = vmatprep.subr.mxu0 0.0
      %5011 = vmatpush1.msra.mxu0 0.0
      %5012 = vmatprep.subr.mxu0 0.0
      %5013 = vmatpush1.msra.mxu0 0.0
      %5014 = vmatprep.subr.mxu0 0.0
      %5015 = vmatpush1.msra.mxu0 0.0
      %5016 = vmatprep.subr.mxu0 0.0
      %5017 = vmatpush1.msra.mxu0 0.0
      %5018 = vmatprep.subr.mxu0 0.0
      %5019 = vmatpush1.msra.mxu0 0.0
      %5020 = vmatprep.subr.mxu0 0.0
      %5021 = vmatpush1.msra.mxu0 0.0
      %5022 = vmatprep.subr.mxu0 0.0
      %5023 = vmatpush1.msra.mxu0 0.0
      %5024 = vmatprep.subr.mxu0 0.0
      %5025 = vmatpush1.msra.mxu0 0.0
      %5026 = vmatprep.subr.mxu0 0.0
      %5027 = vmatpush1.msra.mxu0 0.0
      %5028 = vmatprep.subr.mxu0 0.0
      %5029 = vmatpush1.msra.mxu0 0.0
      %5030 = vmatprep.subr.mxu0 0.0
      %5031 = vmatpush1.msra.mxu0 0.0
      %5032 = vmatprep.subr.mxu0 0.0
      %5033 = vmatpush1.msra.mxu0 0.0
      %5034 = vmatprep.mubr.f32.mxu0 0.0
      %5035 = vmatmul.mubr.f32.gmra.mrb[0].mxu0 %v4945
      %v5036 = vpop.f32.mrb[0].mxu0
      %v5037 = vadd.f32 %v4968, %v5036
      %v5038 = vpop.f32.mrb[0].mxu0
      %5039 = vmatprep.mubr.f32.mxu0 0.0
      %5040 = vmatmul.mubr.f32.gmra.mrb[0].mxu0 %v4946
      %v5041 = vpop.f32.mrb[0].mxu0
      %v5042 = vadd.f32 %v4968, %v5041
      %v5043 = vpop.f32.mrb[0].mxu0
      %5044 = vdwg.mxu0
      %5045 = vst [vmem:[%s1161] sm:$0xff] %v4426
      %5046 = vst [vmem:[%s1161 + $0x8] sm:$0xff] %v4427
      %5047 = vst [vmem:[%s1167] sm:$0xff] %v4692
      %s5048 = scalar_lea.vmem %s1167, 8
      %5049 = vst [vmem:[%s5048] sm:$0xff] %v4788
      %5050 = vst [vmem:[%s1173] sm:$0xff] %v5037
      %5051 = vst [vmem:[%s1173 + $0x8] sm:$0xff] %v5042
      %s5052 = smul.u32 2, %s37
      %p5053 = scmp.lt.s32.totalorder %s5052, 3
      %s5054 = scalar_select %p5053, %s5052, 3
      %s5055 = smul.addr %s5054, 8
      %s5056 = scalar_lea.vmem %s23, %s5055
      %s5057 = smul.u32 2, %s37
      %p5058 = scmp.lt.s32.totalorder %s5057, 3
      %s5059 = scalar_select %p5058, %s5057, 3
      %s5060 = smul.addr %s5059, 8
      %s5061 = scalar_lea.vmem %s24, %s5060
      %s5062 = smul.u32 2, %s37
      %p5063 = scmp.lt.s32.totalorder %s5062, 3
      %s5064 = scalar_select %p5063, %s5062, 3
      %s5065 = smul.addr %s5064, 8
      %s5066 = scalar_lea.vmem %s25, %s5065
      // Predicated region
      $region113: #{skeleton_simnn_forward.1} parent=111 // pred_check
        %p5067 = pneg %p653
      $region114: #{skeleton_simnn_forward.1} parent=111 // pred_check_branch
        %5069 = sbr.rel (%p5067) target = $region116
      $region115: #{skeleton_simnn_forward.1} parent=111 // pred_region
        %s5070 = smul.u32 2, %s37
      $region116: #{skeleton_simnn_forward.1} parent=111 // pred_fallthru
        _
      // Predicated region
      $region117: #{skeleton_simnn_forward.1} parent=111 // pred_check
        %p5071 = pneg %p679
      $region118: #{skeleton_simnn_forward.1} parent=111 // pred_check_branch
        %5073 = sbr.rel (%p5071) target = $region120
      $region119: #{skeleton_simnn_forward.1} parent=111 // pred_region
        %s5074 = smul.u32 2, %s37
      $region120: #{skeleton_simnn_forward.1} parent=111 // pred_fallthru
        _
      // Predicated region
      $region121: #{skeleton_simnn_forward.1} parent=111 // pred_check
        %p5075 = pneg %p705
      $region122: #{skeleton_simnn_forward.1} parent=111 // pred_check_branch
        %5077 = sbr.rel (%p5075) target = $region124
      $region123: #{skeleton_simnn_forward.1} parent=111 // pred_region
        %s5078 = smul.u32 2, %s37
      $region124: #{skeleton_simnn_forward.1} parent=111 // pred_fallthru
        _
    $region112: #{skeleton_simnn_forward.1} parent=5 // pred_fallthru
      _
    %p5079 = scmp.le.s32.totalorder 2, %s32
    // Predicated region
    $region125: #{skeleton_simnn_forward.1} parent=5 // pred_check
      %p5080 = pneg %p5079
    $region126: #{skeleton_simnn_forward.1} parent=5 // pred_check_branch
      %5082 = sbr.rel (%p5080) target = $region128
    $region127: #{skeleton_simnn_forward.1} parent=5 // pred_region
      %s5083 = ssub.s32 %s32, 2
      // Predicated region
      $region129: #{skeleton_simnn_forward.1} parent=127 // pred_check
        %p5084 = pneg %p659
      $region130: #{skeleton_simnn_forward.1} parent=127 // pred_check_branch
        %5086 = sbr.rel (%p5084) target = $region132
      $region131: #{skeleton_simnn_forward.1} parent=127 // pred_region
        %s5087 = smul.u32 2, %s38
        %p5088 = scmp.lt.s32.totalorder %s5087, 3
        %s5089 = scalar_select %p5088, %s5087, 3
        %s5090 = smul.addr %s5089, 8
        %s5091 = scalar_lea.vmem %s23, %s5090
      $region132: #{skeleton_simnn_forward.1} parent=127 // pred_fallthru
        _
      // Predicated region
      $region133: #{skeleton_simnn_forward.1} parent=127 // pred_check
        %p5092 = pneg %p685
      $region134: #{skeleton_simnn_forward.1} parent=127 // pred_check_branch
        %5094 = sbr.rel (%p5092) target = $region136
      $region135: #{skeleton_simnn_forward.1} parent=127 // pred_region
        %s5095 = smul.u32 2, %s38
        %p5096 = scmp.lt.s32.totalorder %s5095, 3
        %s5097 = scalar_select %p5096, %s5095, 3
        %s5098 = smul.addr %s5097, 8
        %s5099 = scalar_lea.vmem %s24, %s5098
      $region136: #{skeleton_simnn_forward.1} parent=127 // pred_fallthru
        _
      // Predicated region
      $region137: #{skeleton_simnn_forward.1} parent=127 // pred_check
        %p5100 = pneg %p711
      $region138: #{skeleton_simnn_forward.1} parent=127 // pred_check_branch
        %5102 = sbr.rel (%p5100) target = $region140
      $region139: #{skeleton_simnn_forward.1} parent=127 // pred_region
        %s5103 = smul.u32 2, %s38
        %p5104 = scmp.lt.s32.totalorder %s5103, 3
        %s5105 = scalar_select %p5104, %s5103, 3
        %s5106 = smul.addr %s5105, 8
        %s5107 = scalar_lea.vmem %s25, %s5106
      $region140: #{skeleton_simnn_forward.1} parent=127 // pred_fallthru
        _
    $region128: #{skeleton_simnn_forward.1} parent=5 // pred_fallthru
      _
  $region6: #{skeleton_simnn_forward.1} parent=0 // loop_footer
    %s36 = sadd.s32 1, %s32
  $region7: #{skeleton_simnn_forward.1} parent=0 // loop_footer_branch
    %31 = sbr.rel target = $region3
  $region8: #{skeleton_simnn_forward.1} parent=0 // loop_exit
    _

</llo_original>
